<compile_context>
chip_gen: v7x
topology: tpu7x:2x2x1
jax: 0.10.0
libtpu: 0.0.40
codegen_flags: <defaults>
</compile_context>

<pallas_src>
import functools

import jax
import jax.numpy as jnp
import numpy as np
from jax.experimental import pallas as pl
from jax.experimental.pallas import tpu as pltpu

LAT = 100   # lat_vector_size
NGF = 64    # featmap_size_generator
NC = 3      # nc


def _round_up(x, m):
    return ((x + m - 1) // m) * m


# ----------------------------------------------------------------------------
# Pallas kernel: batched matmul with fused bias + activation.
# Full K in one block (K <= ~1K for every layer), so there is no reduction
# grid axis, no scratch accumulator, and each grid step writes its output tile
# exactly once. All three grid axes are independent -> "parallel".
# ----------------------------------------------------------------------------
def _bmm_act_kernel(a_ref, b_ref, bias_ref, o_ref, *, activation):
    out = jnp.dot(a_ref[...], b_ref[...], preferred_element_type=jnp.float32)
    out = out + bias_ref[...]                       # (tm, tn) + (1, tn)
    if activation == "relu":
        out = jnp.maximum(out, 0.0)
    elif activation == "tanh":
        out = jnp.tanh(out)
    o_ref[...] = out.astype(o_ref.dtype)


def bmm_act(a, b, bias, activation):
    """out[g] = act(a[g] @ b[g] + bias).  a:(G,M,K)  b:(G,K,Nc)  bias:(Nc,)."""
    G, M, K = a.shape
    Gb, Kb, Nc = b.shape
    assert Gb == G and Kb == K

    Kp = _round_up(K, 128)                 # lane-pad the reduction dim
    tm = min(512, _round_up(M, 8))         # cap tm at (padded) M; up to 512
    Mp = _round_up(M, tm)
    tn = min(256, _round_up(Nc, 128))      # 256-wide N tiles when available
    Np = _round_up(Nc, tn)

    a_p = jnp.pad(a.astype(jnp.float32), ((0, 0), (0, Mp - M), (0, Kp - K)))
    b_p = jnp.pad(b.astype(jnp.float32), ((0, 0), (0, Kp - K), (0, Np - Nc)))
    bias_p = jnp.pad(bias.astype(jnp.float32), (0, Np - Nc)).reshape(1, Np)

    grid = (G, Mp // tm, Np // tn)
    cost = pl.CostEstimate(
        flops=2 * G * Mp * Kp * Np,
        transcendentals=(G * Mp * Np) if activation == "tanh" else 0,
        bytes_accessed=4 * (G * Mp * Kp + G * Kp * Np + G * Mp * Np),
    )

    out = pl.pallas_call(
        functools.partial(_bmm_act_kernel, activation=activation),
        out_shape=jax.ShapeDtypeStruct((G, Mp, Np), jnp.float32),
        grid_spec=pltpu.PrefetchScalarGridSpec(
            num_scalar_prefetch=0,
            grid=grid,
            in_specs=[
                pl.BlockSpec((None, tm, Kp), lambda g, i, j: (g, i, 0)),
                pl.BlockSpec((None, Kp, tn), lambda g, i, j: (g, 0, j)),
                pl.BlockSpec((1, tn), lambda g, i, j: (0, j)),
            ],
            out_specs=pl.BlockSpec((None, tm, tn), lambda g, i, j: (g, i, j)),
        ),
        compiler_params=pltpu.CompilerParams(
            dimension_semantics=("parallel", "parallel", "parallel")),
        cost_estimate=cost,
    )(a_p, b_p, bias_p)
    return out[:, :M, :Nc]


# ----------------------------------------------------------------------------
# Layer 1: ConvTranspose2d(k=4, s=1, p=0) on a 1x1 input == single matmul.
#   out[n, oh, ow, oc] = sum_ic z[n, ic] * w[ic, oc, oh, ow]
# ----------------------------------------------------------------------------
def conv_transpose_first_nhwc(z, w, activation):
    N = z.shape[0]
    IC, OC, K, _ = w.shape
    A = z.reshape(N, IC)[None]                                   # (1, N, IC)
    B = w.transpose(0, 2, 3, 1).reshape(IC, K * K * OC)[None]    # (1, IC, 16*OC)
    out = bmm_act(A, B, jnp.zeros((K * K * OC,), jnp.float32), activation)
    return out[0].reshape(N, K, K, OC)                           # NHWC (N,4,4,OC)


# ----------------------------------------------------------------------------
# Layers 2-4: ConvTranspose2d(k=4, s=2, p=1) via sub-pixel (parity)
# decomposition, all in NHWC. Each output-pixel parity (oh%2, ow%2) touches
# only a 2x2 subset of the 4x4 taps, so each parity is an (N*H*W, 4*IC)x(4*IC,
# OC) matmul -- no zero-dilated buffer, ~4x fewer FLOPs than full im2col.
#
# For oh = 2*i + ph:  contributing (input-offset-in-padded-x, kernel-row):
#   ph == 0 -> (d=0, r=3), (d=1, r=1)
#   ph == 1 -> (d=1, r=2), (d=2, r=0)
# (same table along the width axis), with x padded spatially by 1.
# ----------------------------------------------------------------------------
_PARITY_TAPS = {0: ((0, 3), (1, 1)), 1: ((1, 2), (2, 0))}


def conv_transpose2x_nhwc(x, w, bias, activation):
    N, H, W, IC = x.shape
    _, OC, K, _ = w.shape  # K == 4
    xp = jnp.pad(x, ((0, 0), (1, 1), (1, 1), (0, 0)))

    A_list, B_list = [], []
    for ph in (0, 1):
        for pw in (0, 1):
            patches, wcols = [], []
            for dh, rh in _PARITY_TAPS[ph]:
                for dw, rw in _PARITY_TAPS[pw]:
                    patches.append(xp[:, dh:dh + H, dw:dw + W, :])  # (N,H,W,IC)
                    wcols.append(w[:, :, rh, rw])                   # (IC,OC)
            A_list.append(jnp.concatenate(patches, axis=-1).reshape(N * H * W, 4 * IC))
            B_list.append(jnp.concatenate(wcols, axis=0))           # (4*IC, OC)

    A = jnp.stack(A_list, axis=0)        # (4, N*H*W, 4*IC)   parity order (ph,pw)
    B = jnp.stack(B_list, axis=0)        # (4, 4*IC, OC)
    out = bmm_act(A, B, bias, activation)                # (4, N*H*W, OC)

    # Interleave parities: y[n, 2i+ph, 2j+pw, :] = out[(ph,pw), n*H*W + i*W + j, :]
    out = out.reshape(2, 2, N, H, W, OC)
    out = out.transpose(2, 3, 0, 4, 1, 5).reshape(N, 2 * H, 2 * W, OC)
    return out


# ----------------------------------------------------------------------------
# Generator forward (NCHW in / NCHW out, NHWC internally)
# ----------------------------------------------------------------------------
def init_params(key):
    ks = jax.random.split(key, 5)
    std = 0.02  # DCGAN-style init, deterministic
    return {
        "w1": jax.random.normal(ks[0], (LAT, NGF * 4, 4, 4), jnp.float32) * std,
        "w2": jax.random.normal(ks[1], (NGF * 4, NGF * 2, 4, 4), jnp.float32) * std,
        "w3": jax.random.normal(ks[2], (NGF * 2, NGF, 4, 4), jnp.float32) * std,
        "w4": jax.random.normal(ks[3], (NGF, NC, 4, 4), jnp.float32) * std,
        "b4": jax.random.normal(ks[4], (NC,), jnp.float32) * std,
    }


def generator_forward(params, z):
    # z: (N, 100, 1, 1) NCHW
    zero128 = jnp.zeros((NGF * 2,), jnp.float32)
    zero64 = jnp.zeros((NGF,), jnp.float32)

    x = conv_transpose_first_nhwc(z, params["w1"], "relu")             # (N,4,4,256)
    x = conv_transpose2x_nhwc(x, params["w2"], zero128, "relu")        # (N,8,8,128)
    x = conv_transpose2x_nhwc(x, params["w3"], zero64, "relu")         # (N,16,16,64)
    x = conv_transpose2x_nhwc(x, params["w4"], params["b4"], "tanh")   # (N,32,32,3)
    return x.transpose(0, 3, 1, 2)                                     # NCHW


# ----------------------------------------------------------------------------
# Pure-JAX reference: true transposed conv via lax.conv_general_dilated
# (validates the whole lowering, not just the matmul kernel).
# ----------------------------------------------------------------------------
def conv_transpose2d_ref(x, w, bias, stride, padding):
    IC, OC, K, _ = w.shape
    w_t = jnp.flip(w, (2, 3)).transpose(1, 0, 2, 3)   # (OC, IC, K, K)
    out = jax.lax.conv_general_dilated(
        x, w_t, window_strides=(1, 1),
        padding=[(K - 1 - padding, K - 1 - padding)] * 2,
        lhs_dilation=(stride, stride),
        dimension_numbers=("NCHW", "OIHW", "NCHW"),
        precision=jax.lax.Precision.HIGHEST)
    return out + bias.reshape(1, OC, 1, 1)


def generator_forward_ref(params, z):
    x = jnp.maximum(conv_transpose2d_ref(z, params["w1"],
                                         jnp.zeros((NGF * 4,), jnp.float32), 1, 0), 0.0)
    x = jnp.maximum(conv_transpose2d_ref(x, params["w2"],
                                         jnp.zeros((NGF * 2,), jnp.float32), 2, 1), 0.0)
    x = jnp.maximum(conv_transpose2d_ref(x, params["w3"],
                                         jnp.zeros((NGF,), jnp.float32), 2, 1), 0.0)
    x = jnp.tanh(conv_transpose2d_ref(x, params["w4"], params["b4"], 2, 1))
    return x


if __name__ == "__main__":
    key = jax.random.PRNGKey(0)
    pkey, zkey = jax.random.split(key)
    params = init_params(pkey)

    batch = 2
    z = jax.random.normal(zkey, (batch, LAT, 1, 1), jnp.float32)

    out = jax.jit(generator_forward)(params, z)
    out = jax.block_until_ready(out)

    ref = jax.jit(generator_forward_ref)(params, z)
    ref = jax.block_until_ready(ref)

    assert out.shape == (batch, NC, 32, 32), out.shape
    np.testing.assert_allclose(np.asarray(out), np.asarray(ref), atol=2e-3, rtol=2e-3)

    print("KERNEL_OK")
</pallas_src>

<mosaic_0001>
module attributes {stable_mosaic.version = 11 : i64} {
  func.func @_bmm_act_kernel(%arg0: i32, %arg1: i32, %arg2: i32, %arg3: memref<1x8x128xf32, #tpu.memory_space<vmem>>, %arg4: memref<1x128x256xf32, #tpu.memory_space<vmem>>, %arg5: memref<1x256xf32, #tpu.memory_space<vmem>>, %arg6: memref<1x8x256xf32, #tpu.memory_space<vmem>>) attributes {dimension_semantics = [#tpu.dimension_semantics<parallel>, #tpu.dimension_semantics<parallel>, #tpu.dimension_semantics<parallel>], iteration_bounds = array<i64: 1, 1, 16>, scalar_prefetch = 0 : i64, scratch_operands = 0 : i64, tpu.core_type = #tpu.core_type<tc>, window_params = [{transform_indices = @transform_0, window_bounds = array<i64: 1, 8, 128>}, {transform_indices = @transform_1, window_bounds = array<i64: 1, 128, 256>}, {transform_indices = @transform_2, window_bounds = array<i64: 1, 256>}, {transform_indices = @transform_3, window_bounds = array<i64: 1, 8, 256>}]} {
    %c0 = arith.constant 0 : index
    %c0_0 = arith.constant 0 : index
    %c0_1 = arith.constant 0 : index
    %0 = vector.load %arg3[%c0, %c0_0, %c0_1] : memref<1x8x128xf32, #tpu.memory_space<vmem>>, vector<1x8x128xf32>
    %1 = vector.shape_cast %0 : vector<1x8x128xf32> to vector<8x128xf32>
    %c0_2 = arith.constant 0 : index
    %c0_3 = arith.constant 0 : index
    %c0_4 = arith.constant 0 : index
    %2 = vector.load %arg4[%c0_2, %c0_3, %c0_4] : memref<1x128x256xf32, #tpu.memory_space<vmem>>, vector<1x128x256xf32>
    %3 = vector.shape_cast %2 : vector<1x128x256xf32> to vector<128x256xf32>
    %cst = arith.constant dense<0.000000e+00> : vector<8x256xf32>
    %4 = tpu.matmul %1, %3, %cst {dimension_numbers = #tpu.dot_dimension_numbers<[1], [0], [0], [1], [0, 0, 1, 1], [], []>} : vector<8x128xf32>, vector<128x256xf32>, vector<8x256xf32> -> vector<8x256xf32>
    %c0_5 = arith.constant 0 : index
    %c0_6 = arith.constant 0 : index
    %5 = vector.load %arg5[%c0_5, %c0_6] : memref<1x256xf32, #tpu.memory_space<vmem>>, vector<1x256xf32>
    %6 = vector.broadcast %5 : vector<1x256xf32> to vector<8x256xf32>
    %7 = arith.addf %4, %6 : vector<8x256xf32>
    %cst_7 = arith.constant 0.000000e+00 : f32
    %8 = vector.broadcast %cst_7 : f32 to vector<8x256xf32>
    %9 = arith.maximumf %7, %8 : vector<8x256xf32>
    %c0_8 = arith.constant 0 : index
    %c0_9 = arith.constant 0 : index
    %c0_10 = arith.constant 0 : index
    %10 = vector.load %arg6[%c0_8, %c0_9, %c0_10] : memref<1x8x256xf32, #tpu.memory_space<vmem>>, vector<1x8x256xf32>
    %11 = vector.shape_cast %10 : vector<1x8x256xf32> to vector<8x256xf32>
    %12 = vector.shape_cast %9 : vector<8x256xf32> to vector<1x8x256xf32>
    tpu.vector_store %arg6[%c0_8, %c0_9, %c0_10], %12 {strides = array<i32>} : memref<1x8x256xf32, #tpu.memory_space<vmem>>, vector<1x8x256xf32>,
    return
  }
  func.func @transform_0(%arg0: i32, %arg1: i32, %arg2: i32) -> (i32, i32, i32) {
    %c0_i32 = arith.constant 0 : i32
    %c0_i32_0 = arith.constant 0 : i32
    return %arg0, %arg1, %c0_i32 : i32, i32, i32
  }
  func.func @transform_1(%arg0: i32, %arg1: i32, %arg2: i32) -> (i32, i32, i32) {
    %c0_i32 = arith.constant 0 : i32
    %c0_i32_0 = arith.constant 0 : i32
    return %arg0, %c0_i32, %arg2 : i32, i32, i32
  }
  func.func @transform_2(%arg0: i32, %arg1: i32, %arg2: i32) -> (i32, i32) {
    %c0_i32 = arith.constant 0 : i32
    %c0_i32_0 = arith.constant 0 : i32
    return %c0_i32, %arg2 : i32, i32
  }
  func.func @transform_3(%arg0: i32, %arg1: i32, %arg2: i32) -> (i32, i32, i32) {
    %c0_i32 = arith.constant 0 : i32
    return %arg0, %arg1, %arg2 : i32, i32, i32
  }
}

module attributes {stable_mosaic.version = 11 : i64} {
  func.func @_bmm_act_kernel(%arg0: i32, %arg1: i32, %arg2: i32, %arg3: memref<1x32x1024xf32, #tpu.memory_space<vmem>>, %arg4: memref<1x1024x128xf32, #tpu.memory_space<vmem>>, %arg5: memref<1x128xf32, #tpu.memory_space<vmem>>, %arg6: memref<1x32x128xf32, #tpu.memory_space<vmem>>) attributes {dimension_semantics = [#tpu.dimension_semantics<parallel>, #tpu.dimension_semantics<parallel>, #tpu.dimension_semantics<parallel>], iteration_bounds = array<i64: 4, 1, 1>, scalar_prefetch = 0 : i64, scratch_operands = 0 : i64, tpu.core_type = #tpu.core_type<tc>, window_params = [{transform_indices = @transform_0, window_bounds = array<i64: 1, 32, 1024>}, {transform_indices = @transform_1, window_bounds = array<i64: 1, 1024, 128>}, {transform_indices = @transform_2, window_bounds = array<i64: 1, 128>}, {transform_indices = @transform_3, window_bounds = array<i64: 1, 32, 128>}]} {
    %c0 = arith.constant 0 : index
    %c0_0 = arith.constant 0 : index
    %c0_1 = arith.constant 0 : index
    %0 = vector.load %arg3[%c0, %c0_0, %c0_1] : memref<1x32x1024xf32, #tpu.memory_space<vmem>>, vector<1x32x1024xf32>
    %1 = vector.shape_cast %0 : vector<1x32x1024xf32> to vector<32x1024xf32>
    %c0_2 = arith.constant 0 : index
    %c0_3 = arith.constant 0 : index
    %c0_4 = arith.constant 0 : index
    %2 = vector.load %arg4[%c0_2, %c0_3, %c0_4] : memref<1x1024x128xf32, #tpu.memory_space<vmem>>, vector<1x1024x128xf32>
    %3 = vector.shape_cast %2 : vector<1x1024x128xf32> to vector<1024x128xf32>
    %cst = arith.constant dense<0.000000e+00> : vector<32x128xf32>
    %4 = tpu.matmul %1, %3, %cst {dimension_numbers = #tpu.dot_dimension_numbers<[1], [0], [0], [1], [0, 0, 1, 1], [], []>} : vector<32x1024xf32>, vector<1024x128xf32>, vector<32x128xf32> -> vector<32x128xf32>
    %c0_5 = arith.constant 0 : index
    %c0_6 = arith.constant 0 : index
    %5 = vector.load %arg5[%c0_5, %c0_6] : memref<1x128xf32, #tpu.memory_space<vmem>>, vector<1x128xf32>
    %6 = vector.broadcast %5 : vector<1x128xf32> to vector<32x128xf32>
    %7 = arith.addf %4, %6 : vector<32x128xf32>
    %cst_7 = arith.constant 0.000000e+00 : f32
    %8 = vector.broadcast %cst_7 : f32 to vector<32x128xf32>
    %9 = arith.maximumf %7, %8 : vector<32x128xf32>
    %c0_8 = arith.constant 0 : index
    %c0_9 = arith.constant 0 : index
    %c0_10 = arith.constant 0 : index
    %10 = vector.load %arg6[%c0_8, %c0_9, %c0_10] : memref<1x32x128xf32, #tpu.memory_space<vmem>>, vector<1x32x128xf32>
    %11 = vector.shape_cast %10 : vector<1x32x128xf32> to vector<32x128xf32>
    %12 = vector.shape_cast %9 : vector<32x128xf32> to vector<1x32x128xf32>
    tpu.vector_store %arg6[%c0_8, %c0_9, %c0_10], %12 {strides = array<i32>} : memref<1x32x128xf32, #tpu.memory_space<vmem>>, vector<1x32x128xf32>,
    return
  }
  func.func @transform_0(%arg0: i32, %arg1: i32, %arg2: i32) -> (i32, i32, i32) {
    %c0_i32 = arith.constant 0 : i32
    %c0_i32_0 = arith.constant 0 : i32
    return %arg0, %arg1, %c0_i32 : i32, i32, i32
  }
  func.func @transform_1(%arg0: i32, %arg1: i32, %arg2: i32) -> (i32, i32, i32) {
    %c0_i32 = arith.constant 0 : i32
    %c0_i32_0 = arith.constant 0 : i32
    return %arg0, %c0_i32, %arg2 : i32, i32, i32
  }
  func.func @transform_2(%arg0: i32, %arg1: i32, %arg2: i32) -> (i32, i32) {
    %c0_i32 = arith.constant 0 : i32
    %c0_i32_0 = arith.constant 0 : i32
    return %c0_i32, %arg2 : i32, i32
  }
  func.func @transform_3(%arg0: i32, %arg1: i32, %arg2: i32) -> (i32, i32, i32) {
    %c0_i32 = arith.constant 0 : i32
    return %arg0, %arg1, %arg2 : i32, i32, i32
  }
}

module attributes {stable_mosaic.version = 11 : i64} {
  func.func @_bmm_act_kernel(%arg0: i32, %arg1: i32, %arg2: i32, %arg3: memref<1x128x512xf32, #tpu.memory_space<vmem>>, %arg4: memref<1x512x128xf32, #tpu.memory_space<vmem>>, %arg5: memref<1x128xf32, #tpu.memory_space<vmem>>, %arg6: memref<1x128x128xf32, #tpu.memory_space<vmem>>) attributes {dimension_semantics = [#tpu.dimension_semantics<parallel>, #tpu.dimension_semantics<parallel>, #tpu.dimension_semantics<parallel>], iteration_bounds = array<i64: 4, 1, 1>, scalar_prefetch = 0 : i64, scratch_operands = 0 : i64, tpu.core_type = #tpu.core_type<tc>, window_params = [{transform_indices = @transform_0, window_bounds = array<i64: 1, 128, 512>}, {transform_indices = @transform_1, window_bounds = array<i64: 1, 512, 128>}, {transform_indices = @transform_2, window_bounds = array<i64: 1, 128>}, {transform_indices = @transform_3, window_bounds = array<i64: 1, 128, 128>}]} {
    %c0 = arith.constant 0 : index
    %c0_0 = arith.constant 0 : index
    %c0_1 = arith.constant 0 : index
    %0 = vector.load %arg3[%c0, %c0_0, %c0_1] : memref<1x128x512xf32, #tpu.memory_space<vmem>>, vector<1x128x512xf32>
    %1 = vector.shape_cast %0 : vector<1x128x512xf32> to vector<128x512xf32>
    %c0_2 = arith.constant 0 : index
    %c0_3 = arith.constant 0 : index
    %c0_4 = arith.constant 0 : index
    %2 = vector.load %arg4[%c0_2, %c0_3, %c0_4] : memref<1x512x128xf32, #tpu.memory_space<vmem>>, vector<1x512x128xf32>
    %3 = vector.shape_cast %2 : vector<1x512x128xf32> to vector<512x128xf32>
    %cst = arith.constant dense<0.000000e+00> : vector<128x128xf32>
    %4 = tpu.matmul %1, %3, %cst {dimension_numbers = #tpu.dot_dimension_numbers<[1], [0], [0], [1], [0, 0, 1, 1], [], []>} : vector<128x512xf32>, vector<512x128xf32>, vector<128x128xf32> -> vector<128x128xf32>
    %c0_5 = arith.constant 0 : index
    %c0_6 = arith.constant 0 : index
    %5 = vector.load %arg5[%c0_5, %c0_6] : memref<1x128xf32, #tpu.memory_space<vmem>>, vector<1x128xf32>
    %6 = vector.broadcast %5 : vector<1x128xf32> to vector<128x128xf32>
    %7 = arith.addf %4, %6 : vector<128x128xf32>
    %cst_7 = arith.constant 0.000000e+00 : f32
    %8 = vector.broadcast %cst_7 : f32 to vector<128x128xf32>
    %9 = arith.maximumf %7, %8 : vector<128x128xf32>
    %c0_8 = arith.constant 0 : index
    %c0_9 = arith.constant 0 : index
    %c0_10 = arith.constant 0 : index
    %10 = vector.load %arg6[%c0_8, %c0_9, %c0_10] : memref<1x128x128xf32, #tpu.memory_space<vmem>>, vector<1x128x128xf32>
    %11 = vector.shape_cast %10 : vector<1x128x128xf32> to vector<128x128xf32>
    %12 = vector.shape_cast %9 : vector<128x128xf32> to vector<1x128x128xf32>
    tpu.vector_store %arg6[%c0_8, %c0_9, %c0_10], %12 {strides = array<i32>} : memref<1x128x128xf32, #tpu.memory_space<vmem>>, vector<1x128x128xf32>,
    return
  }
  func.func @transform_0(%arg0: i32, %arg1: i32, %arg2: i32) -> (i32, i32, i32) {
    %c0_i32 = arith.constant 0 : i32
    %c0_i32_0 = arith.constant 0 : i32
    return %arg0, %arg1, %c0_i32 : i32, i32, i32
  }
  func.func @transform_1(%arg0: i32, %arg1: i32, %arg2: i32) -> (i32, i32, i32) {
    %c0_i32 = arith.constant 0 : i32
    %c0_i32_0 = arith.constant 0 : i32
    return %arg0, %c0_i32, %arg2 : i32, i32, i32
  }
  func.func @transform_2(%arg0: i32, %arg1: i32, %arg2: i32) -> (i32, i32) {
    %c0_i32 = arith.constant 0 : i32
    %c0_i32_0 = arith.constant 0 : i32
    return %c0_i32, %arg2 : i32, i32
  }
  func.func @transform_3(%arg0: i32, %arg1: i32, %arg2: i32) -> (i32, i32, i32) {
    %c0_i32 = arith.constant 0 : i32
    return %arg0, %arg1, %arg2 : i32, i32, i32
  }
}

module attributes {stable_mosaic.version = 11 : i64} {
  func.func @_bmm_act_kernel(%arg0: i32, %arg1: i32, %arg2: i32, %arg3: memref<1x512x256xf32, #tpu.memory_space<vmem>>, %arg4: memref<1x256x128xf32, #tpu.memory_space<vmem>>, %arg5: memref<1x128xf32, #tpu.memory_space<vmem>>, %arg6: memref<1x512x128xf32, #tpu.memory_space<vmem>>) attributes {dimension_semantics = [#tpu.dimension_semantics<parallel>, #tpu.dimension_semantics<parallel>, #tpu.dimension_semantics<parallel>], iteration_bounds = array<i64: 4, 1, 1>, scalar_prefetch = 0 : i64, scratch_operands = 0 : i64, tpu.core_type = #tpu.core_type<tc>, window_params = [{transform_indices = @transform_0, window_bounds = array<i64: 1, 512, 256>}, {transform_indices = @transform_1, window_bounds = array<i64: 1, 256, 128>}, {transform_indices = @transform_2, window_bounds = array<i64: 1, 128>}, {transform_indices = @transform_3, window_bounds = array<i64: 1, 512, 128>}]} {
    %c0 = arith.constant 0 : index
    %c0_0 = arith.constant 0 : index
    %c0_1 = arith.constant 0 : index
    %0 = vector.load %arg3[%c0, %c0_0, %c0_1] : memref<1x512x256xf32, #tpu.memory_space<vmem>>, vector<1x512x256xf32>
    %1 = vector.shape_cast %0 : vector<1x512x256xf32> to vector<512x256xf32>
    %c0_2 = arith.constant 0 : index
    %c0_3 = arith.constant 0 : index
    %c0_4 = arith.constant 0 : index
    %2 = vector.load %arg4[%c0_2, %c0_3, %c0_4] : memref<1x256x128xf32, #tpu.memory_space<vmem>>, vector<1x256x128xf32>
    %3 = vector.shape_cast %2 : vector<1x256x128xf32> to vector<256x128xf32>
    %cst = arith.constant dense<0.000000e+00> : vector<512x128xf32>
    %4 = tpu.matmul %1, %3, %cst {dimension_numbers = #tpu.dot_dimension_numbers<[1], [0], [0], [1], [0, 0, 1, 1], [], []>} : vector<512x256xf32>, vector<256x128xf32>, vector<512x128xf32> -> vector<512x128xf32>
    %c0_5 = arith.constant 0 : index
    %c0_6 = arith.constant 0 : index
    %5 = vector.load %arg5[%c0_5, %c0_6] : memref<1x128xf32, #tpu.memory_space<vmem>>, vector<1x128xf32>
    %6 = vector.broadcast %5 : vector<1x128xf32> to vector<512x128xf32>
    %7 = arith.addf %4, %6 : vector<512x128xf32>
    %8 = math.tanh %7 : vector<512x128xf32>
    %c0_7 = arith.constant 0 : index
    %c0_8 = arith.constant 0 : index
    %c0_9 = arith.constant 0 : index
    %9 = vector.load %arg6[%c0_7, %c0_8, %c0_9] : memref<1x512x128xf32, #tpu.memory_space<vmem>>, vector<1x512x128xf32>
    %10 = vector.shape_cast %9 : vector<1x512x128xf32> to vector<512x128xf32>
    %11 = vector.shape_cast %8 : vector<512x128xf32> to vector<1x512x128xf32>
    tpu.vector_store %arg6[%c0_7, %c0_8, %c0_9], %11 {strides = array<i32>} : memref<1x512x128xf32, #tpu.memory_space<vmem>>, vector<1x512x128xf32>,
    return
  }
  func.func @transform_0(%arg0: i32, %arg1: i32, %arg2: i32) -> (i32, i32, i32) {
    %c0_i32 = arith.constant 0 : i32
    %c0_i32_0 = arith.constant 0 : i32
    return %arg0, %arg1, %c0_i32 : i32, i32, i32
  }
  func.func @transform_1(%arg0: i32, %arg1: i32, %arg2: i32) -> (i32, i32, i32) {
    %c0_i32 = arith.constant 0 : i32
    %c0_i32_0 = arith.constant 0 : i32
    return %arg0, %c0_i32, %arg2 : i32, i32, i32
  }
  func.func @transform_2(%arg0: i32, %arg1: i32, %arg2: i32) -> (i32, i32) {
    %c0_i32 = arith.constant 0 : i32
    %c0_i32_0 = arith.constant 0 : i32
    return %c0_i32, %arg2 : i32, i32
  }
  func.func @transform_3(%arg0: i32, %arg1: i32, %arg2: i32) -> (i32, i32, i32) {
    %c0_i32 = arith.constant 0 : i32
    return %arg0, %arg1, %arg2 : i32, i32, i32
  }
}

</mosaic_0001>

<llo_original>
// kernel: squeeze.49
$region0: #{squeeze.49}
  %s0 = inlined_call_operand.vmem [shape: f32[1,2,4096], index: 0, kind: input, shape index: {}]
  %s1 = inlined_call_operand.vmem [shape: f32[2,4,4,256], index: 1, kind: output, shape index: {}]
  $region1: #{squeeze.49} parent=0
    #allocation0 [shape = 'u8[65536]{0}', space=vmem, size = 0x10000, scoped, tag = 'scoped mem for output reshape']
    #allocation1 [shape = 'u8[131072]{0}', space=vmem, size = 0x20000, scoped, tag = 'scoped mem for input reshape']
    %s3 = sshllo.u32 0, 2
    %s4 = smul.addr 2, 31
    %s5 = scalar_lea.vmem %s0, %s4
    %v6 = vld [vmem:[%s5] sm:%s3]
    %s7 = scalar_lea.vmem [#allocation1], 248
    %8 = vst [vmem:[%s7] sm:%s3] %v6
    %s9 = smul.addr 2, 30
    %s10 = scalar_lea.vmem %s0, %s9
    %v11 = vld [vmem:[%s10] sm:%s3]
    %s12 = scalar_lea.vmem [#allocation1], 240
    %13 = vst [vmem:[%s12] sm:%s3] %v11
    %s14 = smul.addr 2, 29
    %s15 = scalar_lea.vmem %s0, %s14
    %v16 = vld [vmem:[%s15] sm:%s3]
    %s17 = scalar_lea.vmem [#allocation1], 232
    %18 = vst [vmem:[%s17] sm:%s3] %v16
    %s19 = smul.addr 2, 28
    %s20 = scalar_lea.vmem %s0, %s19
    %v21 = vld [vmem:[%s20] sm:%s3]
    %s22 = scalar_lea.vmem [#allocation1], 224
    %23 = vst [vmem:[%s22] sm:%s3] %v21
    %s24 = smul.addr 2, 27
    %s25 = scalar_lea.vmem %s0, %s24
    %v26 = vld [vmem:[%s25] sm:%s3]
    %s27 = scalar_lea.vmem [#allocation1], 216
    %28 = vst [vmem:[%s27] sm:%s3] %v26
    %s29 = smul.addr 2, 26
    %s30 = scalar_lea.vmem %s0, %s29
    %v31 = vld [vmem:[%s30] sm:%s3]
    %s32 = scalar_lea.vmem [#allocation1], 208
    %33 = vst [vmem:[%s32] sm:%s3] %v31
    %s34 = smul.addr 2, 25
    %s35 = scalar_lea.vmem %s0, %s34
    %v36 = vld [vmem:[%s35] sm:%s3]
    %s37 = scalar_lea.vmem [#allocation1], 200
    %38 = vst [vmem:[%s37] sm:%s3] %v36
    %s39 = smul.addr 2, 24
    %s40 = scalar_lea.vmem %s0, %s39
    %v41 = vld [vmem:[%s40] sm:%s3]
    %s42 = scalar_lea.vmem [#allocation1], 192
    %43 = vst [vmem:[%s42] sm:%s3] %v41
    %s44 = smul.addr 2, 23
    %s45 = scalar_lea.vmem %s0, %s44
    %v46 = vld [vmem:[%s45] sm:%s3]
    %s47 = scalar_lea.vmem [#allocation1], 184
    %48 = vst [vmem:[%s47] sm:%s3] %v46
    %s49 = smul.addr 2, 22
    %s50 = scalar_lea.vmem %s0, %s49
    %v51 = vld [vmem:[%s50] sm:%s3]
    %s52 = scalar_lea.vmem [#allocation1], 176
    %53 = vst [vmem:[%s52] sm:%s3] %v51
    %s54 = smul.addr 2, 21
    %s55 = scalar_lea.vmem %s0, %s54
    %v56 = vld [vmem:[%s55] sm:%s3]
    %s57 = scalar_lea.vmem [#allocation1], 168
    %58 = vst [vmem:[%s57] sm:%s3] %v56
    %s59 = smul.addr 2, 20
    %s60 = scalar_lea.vmem %s0, %s59
    %v61 = vld [vmem:[%s60] sm:%s3]
    %s62 = scalar_lea.vmem [#allocation1], 160
    %63 = vst [vmem:[%s62] sm:%s3] %v61
    %s64 = smul.addr 2, 19
    %s65 = scalar_lea.vmem %s0, %s64
    %v66 = vld [vmem:[%s65] sm:%s3]
    %s67 = scalar_lea.vmem [#allocation1], 152
    %68 = vst [vmem:[%s67] sm:%s3] %v66
    %s69 = smul.addr 2, 18
    %s70 = scalar_lea.vmem %s0, %s69
    %v71 = vld [vmem:[%s70] sm:%s3]
    %s72 = scalar_lea.vmem [#allocation1], 144
    %73 = vst [vmem:[%s72] sm:%s3] %v71
    %s74 = smul.addr 2, 17
    %s75 = scalar_lea.vmem %s0, %s74
    %v76 = vld [vmem:[%s75] sm:%s3]
    %s77 = scalar_lea.vmem [#allocation1], 136
    %78 = vst [vmem:[%s77] sm:%s3] %v76
    %s79 = smul.addr 2, 16
    %s80 = scalar_lea.vmem %s0, %s79
    %v81 = vld [vmem:[%s80] sm:%s3]
    %s82 = scalar_lea.vmem [#allocation1], 128
    %83 = vst [vmem:[%s82] sm:%s3] %v81
    %s84 = smul.addr 2, 15
    %s85 = scalar_lea.vmem %s0, %s84
    %v86 = vld [vmem:[%s85] sm:%s3]
    %s87 = scalar_lea.vmem [#allocation1], 120
    %88 = vst [vmem:[%s87] sm:%s3] %v86
    %s89 = smul.addr 2, 14
    %s90 = scalar_lea.vmem %s0, %s89
    %v91 = vld [vmem:[%s90] sm:%s3]
    %s92 = scalar_lea.vmem [#allocation1], 112
    %93 = vst [vmem:[%s92] sm:%s3] %v91
    %s94 = smul.addr 2, 13
    %s95 = scalar_lea.vmem %s0, %s94
    %v96 = vld [vmem:[%s95] sm:%s3]
    %s97 = scalar_lea.vmem [#allocation1], 104
    %98 = vst [vmem:[%s97] sm:%s3] %v96
    %s99 = smul.addr 2, 12
    %s100 = scalar_lea.vmem %s0, %s99
    %v101 = vld [vmem:[%s100] sm:%s3]
    %s102 = scalar_lea.vmem [#allocation1], 96
    %103 = vst [vmem:[%s102] sm:%s3] %v101
    %s104 = smul.addr 2, 11
    %s105 = scalar_lea.vmem %s0, %s104
    %v106 = vld [vmem:[%s105] sm:%s3]
    %s107 = scalar_lea.vmem [#allocation1], 88
    %108 = vst [vmem:[%s107] sm:%s3] %v106
    %s109 = smul.addr 2, 10
    %s110 = scalar_lea.vmem %s0, %s109
    %v111 = vld [vmem:[%s110] sm:%s3]
    %s112 = scalar_lea.vmem [#allocation1], 80
    %113 = vst [vmem:[%s112] sm:%s3] %v111
    %s114 = smul.addr 2, 9
    %s115 = scalar_lea.vmem %s0, %s114
    %v116 = vld [vmem:[%s115] sm:%s3]
    %s117 = scalar_lea.vmem [#allocation1], 72
    %118 = vst [vmem:[%s117] sm:%s3] %v116
    %s119 = smul.addr 2, 8
    %s120 = scalar_lea.vmem %s0, %s119
    %v121 = vld [vmem:[%s120] sm:%s3]
    %s122 = scalar_lea.vmem [#allocation1], 64
    %123 = vst [vmem:[%s122] sm:%s3] %v121
    %s124 = smul.addr 2, 7
    %s125 = scalar_lea.vmem %s0, %s124
    %v126 = vld [vmem:[%s125] sm:%s3]
    %s127 = scalar_lea.vmem [#allocation1], 56
    %128 = vst [vmem:[%s127] sm:%s3] %v126
    %s129 = smul.addr 2, 6
    %s130 = scalar_lea.vmem %s0, %s129
    %v131 = vld [vmem:[%s130] sm:%s3]
    %s132 = scalar_lea.vmem [#allocation1], 48
    %133 = vst [vmem:[%s132] sm:%s3] %v131
    %s134 = smul.addr 2, 5
    %s135 = scalar_lea.vmem %s0, %s134
    %v136 = vld [vmem:[%s135] sm:%s3]
    %s137 = scalar_lea.vmem [#allocation1], 40
    %138 = vst [vmem:[%s137] sm:%s3] %v136
    %s139 = smul.addr 2, 4
    %s140 = scalar_lea.vmem %s0, %s139
    %v141 = vld [vmem:[%s140] sm:%s3]
    %s142 = scalar_lea.vmem [#allocation1], 32
    %143 = vst [vmem:[%s142] sm:%s3] %v141
    %s144 = smul.addr 2, 3
    %s145 = scalar_lea.vmem %s0, %s144
    %v146 = vld [vmem:[%s145] sm:%s3]
    %s147 = scalar_lea.vmem [#allocation1], 24
    %148 = vst [vmem:[%s147] sm:%s3] %v146
    %s149 = smul.addr 2, 2
    %s150 = scalar_lea.vmem %s0, %s149
    %v151 = vld [vmem:[%s150] sm:%s3]
    %s152 = scalar_lea.vmem [#allocation1], 16
    %153 = vst [vmem:[%s152] sm:%s3] %v151
    %s154 = scalar_lea.vmem %s0, 2
    %v155 = vld [vmem:[%s154] sm:%s3]
    %s156 = scalar_lea.vmem [#allocation1], 8
    %157 = vst [vmem:[%s156] sm:%s3] %v155
    %v158 = vld [vmem:[%s0] sm:%s3]
    %159 = vst [vmem:[#allocation1] sm:%s3] %v158
    %v160 = vld [vmem:[#allocation1] sm:$0x3]
    %161 = vst [vmem:[#allocation0] sm:$0x1] %v160
    %s162 = scalar_lea.vmem [#allocation0], 63
    %163 = vst [vmem:[%s162] sm:$0x2] %v160
    %s164 = scalar_lea.vmem [#allocation1], 8
    %v165 = vld [vmem:[%s164] sm:$0x3]
    %s166 = scalar_lea.vmem [#allocation0], 8
    %167 = vst [vmem:[%s166] sm:$0x1] %v165
    %s168 = scalar_lea.vmem [#allocation0], 71
    %169 = vst [vmem:[%s168] sm:$0x2] %v165
    %s170 = scalar_lea.vmem [#allocation1], 16
    %v171 = vld [vmem:[%s170] sm:$0x3]
    %s172 = scalar_lea.vmem [#allocation0], 1
    %173 = vst [vmem:[%s172] sm:$0x1] %v171
    %s174 = scalar_lea.vmem [#allocation0], 64
    %175 = vst [vmem:[%s174] sm:$0x2] %v171
    %s176 = scalar_lea.vmem [#allocation1], 24
    %v177 = vld [vmem:[%s176] sm:$0x3]
    %s178 = scalar_lea.vmem [#allocation0], 9
    %179 = vst [vmem:[%s178] sm:$0x1] %v177
    %s180 = scalar_lea.vmem [#allocation0], 72
    %181 = vst [vmem:[%s180] sm:$0x2] %v177
    %s182 = scalar_lea.vmem [#allocation1], 32
    %v183 = vld [vmem:[%s182] sm:$0x3]
    %s184 = scalar_lea.vmem [#allocation0], 2
    %185 = vst [vmem:[%s184] sm:$0x1] %v183
    %s186 = scalar_lea.vmem [#allocation0], 65
    %187 = vst [vmem:[%s186] sm:$0x2] %v183
    %s188 = scalar_lea.vmem [#allocation1], 40
    %v189 = vld [vmem:[%s188] sm:$0x3]
    %s190 = scalar_lea.vmem [#allocation0], 10
    %191 = vst [vmem:[%s190] sm:$0x1] %v189
    %s192 = scalar_lea.vmem [#allocation0], 73
    %193 = vst [vmem:[%s192] sm:$0x2] %v189
    %s194 = scalar_lea.vmem [#allocation1], 48
    %v195 = vld [vmem:[%s194] sm:$0x3]
    %s196 = scalar_lea.vmem [#allocation0], 3
    %197 = vst [vmem:[%s196] sm:$0x1] %v195
    %s198 = scalar_lea.vmem [#allocation0], 66
    %199 = vst [vmem:[%s198] sm:$0x2] %v195
    %s200 = scalar_lea.vmem [#allocation1], 56
    %v201 = vld [vmem:[%s200] sm:$0x3]
    %s202 = scalar_lea.vmem [#allocation0], 11
    %203 = vst [vmem:[%s202] sm:$0x1] %v201
    %s204 = scalar_lea.vmem [#allocation0], 74
    %205 = vst [vmem:[%s204] sm:$0x2] %v201
    %s206 = scalar_lea.vmem [#allocation1], 64
    %v207 = vld [vmem:[%s206] sm:$0x3]
    %s208 = scalar_lea.vmem [#allocation0], 16
    %209 = vst [vmem:[%s208] sm:$0x1] %v207
    %s210 = scalar_lea.vmem [#allocation0], 79
    %211 = vst [vmem:[%s210] sm:$0x2] %v207
    %s212 = scalar_lea.vmem [#allocation1], 72
    %v213 = vld [vmem:[%s212] sm:$0x3]
    %s214 = scalar_lea.vmem [#allocation0], 24
    %215 = vst [vmem:[%s214] sm:$0x1] %v213
    %s216 = scalar_lea.vmem [#allocation0], 87
    %217 = vst [vmem:[%s216] sm:$0x2] %v213
    %s218 = scalar_lea.vmem [#allocation1], 80
    %v219 = vld [vmem:[%s218] sm:$0x3]
    %s220 = scalar_lea.vmem [#allocation0], 17
    %221 = vst [vmem:[%s220] sm:$0x1] %v219
    %s222 = scalar_lea.vmem [#allocation0], 80
    %223 = vst [vmem:[%s222] sm:$0x2] %v219
    %s224 = scalar_lea.vmem [#allocation1], 88
    %v225 = vld [vmem:[%s224] sm:$0x3]
    %s226 = scalar_lea.vmem [#allocation0], 25
    %227 = vst [vmem:[%s226] sm:$0x1] %v225
    %s228 = scalar_lea.vmem [#allocation0], 88
    %229 = vst [vmem:[%s228] sm:$0x2] %v225
    %s230 = scalar_lea.vmem [#allocation1], 96
    %v231 = vld [vmem:[%s230] sm:$0x3]
    %s232 = scalar_lea.vmem [#allocation0], 18
    %233 = vst [vmem:[%s232] sm:$0x1] %v231
    %s234 = scalar_lea.vmem [#allocation0], 81
    %235 = vst [vmem:[%s234] sm:$0x2] %v231
    %s236 = scalar_lea.vmem [#allocation1], 104
    %v237 = vld [vmem:[%s236] sm:$0x3]
    %s238 = scalar_lea.vmem [#allocation0], 26
    %239 = vst [vmem:[%s238] sm:$0x1] %v237
    %s240 = scalar_lea.vmem [#allocation0], 89
    %241 = vst [vmem:[%s240] sm:$0x2] %v237
    %s242 = scalar_lea.vmem [#allocation1], 112
    %v243 = vld [vmem:[%s242] sm:$0x3]
    %s244 = scalar_lea.vmem [#allocation0], 19
    %245 = vst [vmem:[%s244] sm:$0x1] %v243
    %s246 = scalar_lea.vmem [#allocation0], 82
    %247 = vst [vmem:[%s246] sm:$0x2] %v243
    %s248 = scalar_lea.vmem [#allocation1], 120
    %v249 = vld [vmem:[%s248] sm:$0x3]
    %s250 = scalar_lea.vmem [#allocation0], 27
    %251 = vst [vmem:[%s250] sm:$0x1] %v249
    %s252 = scalar_lea.vmem [#allocation0], 90
    %253 = vst [vmem:[%s252] sm:$0x2] %v249
    %s254 = scalar_lea.vmem [#allocation1], 128
    %v255 = vld [vmem:[%s254] sm:$0x3]
    %s256 = scalar_lea.vmem [#allocation0], 32
    %257 = vst [vmem:[%s256] sm:$0x1] %v255
    %s258 = scalar_lea.vmem [#allocation0], 95
    %259 = vst [vmem:[%s258] sm:$0x2] %v255
    %s260 = scalar_lea.vmem [#allocation1], 136
    %v261 = vld [vmem:[%s260] sm:$0x3]
    %s262 = scalar_lea.vmem [#allocation0], 40
    %263 = vst [vmem:[%s262] sm:$0x1] %v261
    %s264 = scalar_lea.vmem [#allocation0], 103
    %265 = vst [vmem:[%s264] sm:$0x2] %v261
    %s266 = scalar_lea.vmem [#allocation1], 144
    %v267 = vld [vmem:[%s266] sm:$0x3]
    %s268 = scalar_lea.vmem [#allocation0], 33
    %269 = vst [vmem:[%s268] sm:$0x1] %v267
    %s270 = scalar_lea.vmem [#allocation0], 96
    %271 = vst [vmem:[%s270] sm:$0x2] %v267
    %s272 = scalar_lea.vmem [#allocation1], 152
    %v273 = vld [vmem:[%s272] sm:$0x3]
    %s274 = scalar_lea.vmem [#allocation0], 41
    %275 = vst [vmem:[%s274] sm:$0x1] %v273
    %s276 = scalar_lea.vmem [#allocation0], 104
    %277 = vst [vmem:[%s276] sm:$0x2] %v273
    %s278 = scalar_lea.vmem [#allocation1], 160
    %v279 = vld [vmem:[%s278] sm:$0x3]
    %s280 = scalar_lea.vmem [#allocation0], 34
    %281 = vst [vmem:[%s280] sm:$0x1] %v279
    %s282 = scalar_lea.vmem [#allocation0], 97
    %283 = vst [vmem:[%s282] sm:$0x2] %v279
    %s284 = scalar_lea.vmem [#allocation1], 168
    %v285 = vld [vmem:[%s284] sm:$0x3]
    %s286 = scalar_lea.vmem [#allocation0], 42
    %287 = vst [vmem:[%s286] sm:$0x1] %v285
    %s288 = scalar_lea.vmem [#allocation0], 105
    %289 = vst [vmem:[%s288] sm:$0x2] %v285
    %s290 = scalar_lea.vmem [#allocation1], 176
    %v291 = vld [vmem:[%s290] sm:$0x3]
    %s292 = scalar_lea.vmem [#allocation0], 35
    %293 = vst [vmem:[%s292] sm:$0x1] %v291
    %s294 = scalar_lea.vmem [#allocation0], 98
    %295 = vst [vmem:[%s294] sm:$0x2] %v291
    %s296 = scalar_lea.vmem [#allocation1], 184
    %v297 = vld [vmem:[%s296] sm:$0x3]
    %s298 = scalar_lea.vmem [#allocation0], 43
    %299 = vst [vmem:[%s298] sm:$0x1] %v297
    %s300 = scalar_lea.vmem [#allocation0], 106
    %301 = vst [vmem:[%s300] sm:$0x2] %v297
    %s302 = scalar_lea.vmem [#allocation1], 192
    %v303 = vld [vmem:[%s302] sm:$0x3]
    %s304 = scalar_lea.vmem [#allocation0], 48
    %305 = vst [vmem:[%s304] sm:$0x1] %v303
    %s306 = scalar_lea.vmem [#allocation0], 111
    %307 = vst [vmem:[%s306] sm:$0x2] %v303
    %s308 = scalar_lea.vmem [#allocation1], 200
    %v309 = vld [vmem:[%s308] sm:$0x3]
    %s310 = scalar_lea.vmem [#allocation0], 56
    %311 = vst [vmem:[%s310] sm:$0x1] %v309
    %s312 = scalar_lea.vmem [#allocation0], 119
    %313 = vst [vmem:[%s312] sm:$0x2] %v309
    %s314 = scalar_lea.vmem [#allocation1], 208
    %v315 = vld [vmem:[%s314] sm:$0x3]
    %s316 = scalar_lea.vmem [#allocation0], 49
    %317 = vst [vmem:[%s316] sm:$0x1] %v315
    %s318 = scalar_lea.vmem [#allocation0], 112
    %319 = vst [vmem:[%s318] sm:$0x2] %v315
    %s320 = scalar_lea.vmem [#allocation1], 216
    %v321 = vld [vmem:[%s320] sm:$0x3]
    %s322 = scalar_lea.vmem [#allocation0], 57
    %323 = vst [vmem:[%s322] sm:$0x1] %v321
    %s324 = scalar_lea.vmem [#allocation0], 120
    %325 = vst [vmem:[%s324] sm:$0x2] %v321
    %s326 = scalar_lea.vmem [#allocation1], 224
    %v327 = vld [vmem:[%s326] sm:$0x3]
    %s328 = scalar_lea.vmem [#allocation0], 50
    %329 = vst [vmem:[%s328] sm:$0x1] %v327
    %s330 = scalar_lea.vmem [#allocation0], 113
    %331 = vst [vmem:[%s330] sm:$0x2] %v327
    %s332 = scalar_lea.vmem [#allocation1], 232
    %v333 = vld [vmem:[%s332] sm:$0x3]
    %s334 = scalar_lea.vmem [#allocation0], 58
    %335 = vst [vmem:[%s334] sm:$0x1] %v333
    %s336 = scalar_lea.vmem [#allocation0], 121
    %337 = vst [vmem:[%s336] sm:$0x2] %v333
    %s338 = scalar_lea.vmem [#allocation1], 240
    %v339 = vld [vmem:[%s338] sm:$0x3]
    %s340 = scalar_lea.vmem [#allocation0], 51
    %341 = vst [vmem:[%s340] sm:$0x1] %v339
    %s342 = scalar_lea.vmem [#allocation0], 114
    %343 = vst [vmem:[%s342] sm:$0x2] %v339
    %s344 = scalar_lea.vmem [#allocation1], 248
    %v345 = vld [vmem:[%s344] sm:$0x3]
    %s346 = scalar_lea.vmem [#allocation0], 59
    %347 = vst [vmem:[%s346] sm:$0x1] %v345
    %s348 = scalar_lea.vmem [#allocation0], 122
    %349 = vst [vmem:[%s348] sm:$0x2] %v345
    %s351 = sshllo.u32 0, 4
    %v353 = vld [vmem:[#allocation0] sm:%s351]
    %s354 = sshllo.u32 0, 4
    %355 = vst [vmem:[%s1] sm:%s354] %v353
    %s356 = scalar_lea.vmem [#allocation0], 8
    %v357 = vld [vmem:[%s356] sm:%s351]
    %s358 = sshllo.u32 0, 4
    %s359 = scalar_lea.vmem %s1, 4
    %360 = vst [vmem:[%s359] sm:%s358] %v357
    %s361 = scalar_lea.vmem [#allocation0], 16
    %v362 = vld [vmem:[%s361] sm:%s351]
    %s363 = sshllo.u32 0, 4
    %s364 = smul.addr 4, 2
    %s365 = scalar_lea.vmem %s1, %s364
    %366 = vst [vmem:[%s365] sm:%s363] %v362
    %s367 = scalar_lea.vmem [#allocation0], 24
    %v368 = vld [vmem:[%s367] sm:%s351]
    %s369 = sshllo.u32 0, 4
    %s370 = smul.addr 4, 3
    %s371 = scalar_lea.vmem %s1, %s370
    %372 = vst [vmem:[%s371] sm:%s369] %v368
    %s373 = scalar_lea.vmem [#allocation0], 32
    %v374 = vld [vmem:[%s373] sm:%s351]
    %s375 = sshllo.u32 0, 4
    %s376 = smul.addr 4, 4
    %s377 = scalar_lea.vmem %s1, %s376
    %378 = vst [vmem:[%s377] sm:%s375] %v374
    %s379 = scalar_lea.vmem [#allocation0], 40
    %v380 = vld [vmem:[%s379] sm:%s351]
    %s381 = sshllo.u32 0, 4
    %s382 = smul.addr 4, 5
    %s383 = scalar_lea.vmem %s1, %s382
    %384 = vst [vmem:[%s383] sm:%s381] %v380
    %s385 = scalar_lea.vmem [#allocation0], 48
    %v386 = vld [vmem:[%s385] sm:%s351]
    %s387 = sshllo.u32 0, 4
    %s388 = smul.addr 4, 6
    %s389 = scalar_lea.vmem %s1, %s388
    %390 = vst [vmem:[%s389] sm:%s387] %v386
    %s391 = scalar_lea.vmem [#allocation0], 56
    %v392 = vld [vmem:[%s391] sm:%s351]
    %s393 = sshllo.u32 0, 4
    %s394 = smul.addr 4, 7
    %s395 = scalar_lea.vmem %s1, %s394
    %396 = vst [vmem:[%s395] sm:%s393] %v392
    %s397 = scalar_lea.vmem [#allocation0], 64
    %v398 = vld [vmem:[%s397] sm:%s351]
    %s399 = sshllo.u32 0, 4
    %s400 = smul.addr 4, 8
    %s401 = scalar_lea.vmem %s1, %s400
    %402 = vst [vmem:[%s401] sm:%s399] %v398
    %s403 = scalar_lea.vmem [#allocation0], 72
    %v404 = vld [vmem:[%s403] sm:%s351]
    %s405 = sshllo.u32 0, 4
    %s406 = smul.addr 4, 9
    %s407 = scalar_lea.vmem %s1, %s406
    %408 = vst [vmem:[%s407] sm:%s405] %v404
    %s409 = scalar_lea.vmem [#allocation0], 80
    %v410 = vld [vmem:[%s409] sm:%s351]
    %s411 = sshllo.u32 0, 4
    %s412 = smul.addr 4, 10
    %s413 = scalar_lea.vmem %s1, %s412
    %414 = vst [vmem:[%s413] sm:%s411] %v410
    %s415 = scalar_lea.vmem [#allocation0], 88
    %v416 = vld [vmem:[%s415] sm:%s351]
    %s417 = sshllo.u32 0, 4
    %s418 = smul.addr 4, 11
    %s419 = scalar_lea.vmem %s1, %s418
    %420 = vst [vmem:[%s419] sm:%s417] %v416
    %s421 = scalar_lea.vmem [#allocation0], 96
    %v422 = vld [vmem:[%s421] sm:%s351]
    %s423 = sshllo.u32 0, 4
    %s424 = smul.addr 4, 12
    %s425 = scalar_lea.vmem %s1, %s424
    %426 = vst [vmem:[%s425] sm:%s423] %v422
    %s427 = scalar_lea.vmem [#allocation0], 104
    %v428 = vld [vmem:[%s427] sm:%s351]
    %s429 = sshllo.u32 0, 4
    %s430 = smul.addr 4, 13
    %s431 = scalar_lea.vmem %s1, %s430
    %432 = vst [vmem:[%s431] sm:%s429] %v428
    %s433 = scalar_lea.vmem [#allocation0], 112
    %v434 = vld [vmem:[%s433] sm:%s351]
    %s435 = sshllo.u32 0, 4
    %s436 = smul.addr 4, 14
    %s437 = scalar_lea.vmem %s1, %s436
    %438 = vst [vmem:[%s437] sm:%s435] %v434
    %s439 = scalar_lea.vmem [#allocation0], 120
    %v440 = vld [vmem:[%s439] sm:%s351]
    %s441 = sshllo.u32 0, 4
    %s442 = smul.addr 4, 15
    %s443 = scalar_lea.vmem %s1, %s442
    %444 = vst [vmem:[%s443] sm:%s441] %v440

// kernel: generator_forward.4
$region0: #{generator_forward.4}
  #allocation0 [shape = 'u32[]', space=smem, size = 0x4, offset = 0x4, fixed_abs, tag = 'smem constant byte address 0x4 - core index']
  #allocation1 [shape = 'u32[144,128]{1,0:T(1,128)}', space=vmem, size = 0x12000, scoped, tag = 'internal scratch']
  %s0 = inlined_call_operand.vmem [shape: f32[1,8,128], index: 0, kind: input, shape index: {}]
  %s1 = inlined_call_operand.vmem [shape: f32[1,128,4096], index: 1, kind: input, shape index: {}]
  %s2 = inlined_call_operand.vmem [shape: f32[1,4096], index: 2, kind: input, shape index: {}]
  %s3 = inlined_call_operand.vmem [shape: f32[1,8,4096], index: 3, kind: output, shape index: {}]
  %s4 = sld [smem:[#allocation0]]
  $region68: #{generator_forward.4} parent=0
    _
  %s6 = ssub.s32 1, %s4
  %s7 = scalar_select 0, %s6, %s4
  $region1: #{generator_forward.4} parent=0
    #allocation2 [shape = 'u8[262144]{0}', space=vmem, size = 0x40000, scoped, tag = 'input window, operand 1']
    loop: start=0, step=1, limit=18
    $region2: #{generator_forward.4} parent=1 // loop_pre_header
      _
    $region3: #{generator_forward.4} parent=1 // loop_header
      %s9 = sphi 0, %s13
      %p10 = scmp.ge.s32.totalorder %s9, 18
      %s16 = sphi 0, %s35
      %s17 = sphi 0, %s31
      %s18 = sphi 0, %s27
      %s19 = sphi 0, %s16
      %s20 = sphi 0, %s17
      %s21 = sphi 0, %s18
      %s22 = sphi 0, %s19
      %s23 = sphi 0, %s20
      %s24 = sphi 0, %s21
      %s40 = sphi 0, %s42
      %s43 = sphi 0, %s40
      %s44 = sphi 0, %s43
      %s60 = sphi 0, %s44
      %s68 = sphi 0, %s70
      %s71 = sphi 0, %s68
      %s72 = sphi 0, %s71
      %s88 = sphi 0, %s72
      %s94 = sphi 0, %s96
      %s97 = sphi 0, %s94
      %s98 = sphi 0, %s97
      %s114 = sphi 0, %s98
      %s124 = sphi 0, %s126
      %s127 = sphi 0, %s124
      %s128 = sphi 0, %s127
      %s144 = sphi 0, %s128
    $region4: #{generator_forward.4} parent=1 // loop_header_branch
      %12 = sbr.rel (%p10) target = $region8
    $region5: #{generator_forward.4} parent=1 // loop_body
      %s14 = ssub.s32 %s9, 1
      %s15 = ssub.s32 %s9, 2
      %s25 = sadd.s32 1, %s18
      %p26 = scmp.ge.s32.totalorder %s25, 16
      %s27 = scalar_select %p26, 0, %s25
      %s28 = sadd.s32 1, %s17
      %s29 = scalar_select %p26, %s28, %s17
      %p30 = scmp.ge.s32.totalorder %s29, 1
      %s31 = scalar_select %p30, 0, %s29
      %s32 = sadd.s32 1, %s16
      %s33 = scalar_select %p30, %s32, %s16
      %p34 = scmp.ge.s32.totalorder %s33, 1
      %s35 = scalar_select %p34, 0, %s33
      %s36 = ssub.s32 %s16, %s35
      %s37 = ssub.s32 %s17, %s31
      %s38 = sor.u32 %s36, %s37
      %p39 = scmp.eq.s32.totalorder %s38, 0
      %s41 = sadd.s32 %s40, 1
      %s42 = scalar_select %p39, %s40, %s41
      %p45 = pneg %p39
      %p46 = scmp.eq.s32.totalorder %s9, 15
      %p47 = por %p45, %p46
      %p48 = scmp.ne.s32.totalorder %s40, %s43
      %p49 = scmp.eq.s32.totalorder %s9, 0
      %p50 = por %p48, %p49
      %p51 = scmp.ne.s32.totalorder %s40, %s43
      %p52 = scmp.eq.s32.totalorder %s14, 15
      %p53 = por %p51, %p52
      %p54 = scmp.ne.s32.totalorder %s43, %s44
      %p55 = scmp.eq.s32.totalorder %s14, 0
      %p56 = por %p54, %p55
      %p57 = scmp.ne.s32.totalorder %s43, %s44
      %p58 = scmp.eq.s32.totalorder %s15, 15
      %p59 = por %p57, %p58
      %p61 = scmp.ne.s32.totalorder %s44, %s60
      %p62 = scmp.eq.s32.totalorder %s15, 0
      %p63 = por %p61, %p62
      %s64 = ssub.s32 %s16, %s35
      %s65 = ssub.s32 %s18, %s27
      %s66 = sor.u32 %s64, %s65
      %p67 = scmp.eq.s32.totalorder %s66, 0
      %s69 = sadd.s32 %s68, 1
      %s70 = scalar_select %p67, %s68, %s69
      %p73 = pneg %p67
      %p74 = scmp.eq.s32.totalorder %s9, 15
      %p75 = por %p73, %p74
      %p76 = scmp.ne.s32.totalorder %s68, %s71
      %p77 = scmp.eq.s32.totalorder %s9, 0
      %p78 = por %p76, %p77
      %p79 = scmp.ne.s32.totalorder %s68, %s71
      %p80 = scmp.eq.s32.totalorder %s14, 15
      %p81 = por %p79, %p80
      %p82 = scmp.ne.s32.totalorder %s71, %s72
      %p83 = scmp.eq.s32.totalorder %s14, 0
      %p84 = por %p82, %p83
      %p85 = scmp.ne.s32.totalorder %s71, %s72
      %p86 = scmp.eq.s32.totalorder %s15, 15
      %p87 = por %p85, %p86
      %p89 = scmp.ne.s32.totalorder %s72, %s88
      %p90 = scmp.eq.s32.totalorder %s15, 0
      %p91 = por %p89, %p90
      %s92 = ssub.s32 %s18, %s27
      %p93 = scmp.eq.s32.totalorder %s92, 0
      %s95 = sadd.s32 %s94, 1
      %s96 = scalar_select %p93, %s94, %s95
      %p99 = pneg %p93
      %p100 = scmp.eq.s32.totalorder %s9, 15
      %p101 = por %p99, %p100
      %p102 = scmp.ne.s32.totalorder %s94, %s97
      %p103 = scmp.eq.s32.totalorder %s9, 0
      %p104 = por %p102, %p103
      %p105 = scmp.ne.s32.totalorder %s94, %s97
      %p106 = scmp.eq.s32.totalorder %s14, 15
      %p107 = por %p105, %p106
      %p108 = scmp.ne.s32.totalorder %s97, %s98
      %p109 = scmp.eq.s32.totalorder %s14, 0
      %p110 = por %p108, %p109
      %p111 = scmp.ne.s32.totalorder %s97, %s98
      %p112 = scmp.eq.s32.totalorder %s15, 15
      %p113 = por %p111, %p112
      %p115 = scmp.ne.s32.totalorder %s98, %s114
      %p116 = scmp.eq.s32.totalorder %s15, 0
      %p117 = por %p115, %p116
      %s118 = ssub.s32 %s16, %s35
      %s119 = ssub.s32 %s17, %s31
      %s120 = sor.u32 %s118, %s119
      %s121 = ssub.s32 %s18, %s27
      %s122 = sor.u32 %s120, %s121
      %p123 = scmp.eq.s32.totalorder %s122, 0
      %s125 = sadd.s32 %s124, 1
      %s126 = scalar_select %p123, %s124, %s125
      %p129 = pneg %p123
      %p130 = scmp.eq.s32.totalorder %s9, 15
      %p131 = por %p129, %p130
      %p132 = scmp.ne.s32.totalorder %s124, %s127
      %p133 = scmp.eq.s32.totalorder %s9, 0
      %p134 = por %p132, %p133
      %p135 = scmp.ne.s32.totalorder %s124, %s127
      %p136 = scmp.eq.s32.totalorder %s14, 15
      %p137 = por %p135, %p136
      %p138 = scmp.ne.s32.totalorder %s127, %s128
      %p139 = scmp.eq.s32.totalorder %s14, 0
      %p140 = por %p138, %p139
      %p141 = scmp.ne.s32.totalorder %s127, %s128
      %p142 = scmp.eq.s32.totalorder %s15, 15
      %p143 = por %p141, %p142
      %p145 = scmp.ne.s32.totalorder %s128, %s144
      %p146 = scmp.eq.s32.totalorder %s15, 0
      %p147 = por %p145, %p146
      %p148 = scmp.le.s32.totalorder 1, %s9
      %p149 = scmp.lt.s32.totalorder %s9, 17
      %p150 = pnand %p148, %p149
      %p151 = pneg %p150
      // Predicated region
      $region9: #{generator_forward.4} parent=5 // pred_check
        _
      $region10: #{generator_forward.4} parent=5 // pred_check_branch
        %153 = sbr.rel (%p150) target = $region12
      $region11: #{generator_forward.4} parent=5 // pred_region
        %s154 = ssub.s32 %s9, 1
        // Predicated region
        $region13: #{generator_forward.4} parent=11 // pred_check
          %p155 = pneg %p56
        $region14: #{generator_forward.4} parent=11 // pred_check_branch
          %157 = sbr.rel (%p155) target = $region16
        $region15: #{generator_forward.4} parent=11 // pred_region
          %p158 = scmp.lt.s32.totalorder %s19, 0
          %s159 = scalar_select %p158, %s19, 0
          %p160 = scmp.lt.s32.totalorder %s20, 0
          %s161 = scalar_select %p160, %s20, 0
          %s162 = sadd.s32 %s161, %s159
          %s163 = smul.addr %s162, 8
          %s164 = scalar_lea.vmem %s0, %s163
        $region16: #{generator_forward.4} parent=11 // pred_fallthru
          _
      $region12: #{generator_forward.4} parent=5 // pred_fallthru
        _
      %p165 = scmp.lt.s32.totalorder %s9, 16
      // Predicated region
      $region17: #{generator_forward.4} parent=5 // pred_check
        %p166 = pneg %p165
      $region18: #{generator_forward.4} parent=5 // pred_check_branch
        %168 = sbr.rel (%p166) target = $region20
      $region19: #{generator_forward.4} parent=5 // pred_region
        // Predicated region
        $region21: #{generator_forward.4} parent=19 // pred_check
          %p169 = pneg %p78
        $region22: #{generator_forward.4} parent=19 // pred_check_branch
          %171 = sbr.rel (%p169) target = $region24
        $region23: #{generator_forward.4} parent=19 // pred_region
          %s172 = sand.u32 %s68, 1
          %s173 = sand.u32 %s68, 1
          %s174 = smul.addr %s173, 256
          %s175 = scalar_lea.vmem [#allocation2], %s174
          %s176 = smul.u32 2, %s18
          %s177 = smul.addr %s16, 512
          %s178 = sadd.s32 %s176, %s177
          %s179 = smul.addr %s178, 8
          %s180 = scalar_lea.vmem %s1, %s179
          // Predicated region
          $region25: #{generator_forward.4} parent=23 // pred_check
            _
          $region26: #{generator_forward.4} parent=23 // pred_check_branch
            %182 = sbr.rel (0) target = $region28
          $region27: #{generator_forward.4} parent=23 // pred_region
            // Predicated region
            $region29: #{generator_forward.4} parent=27 // pred_check
              _
            $region30: #{generator_forward.4} parent=27 // pred_check_branch
              %184 = sbr.rel (0) target = $region32
            $region31: #{generator_forward.4} parent=27 // pred_region
              loop: start=0, step=1, limit=1
              $region33: #{generator_forward.4} parent=31 // loop_pre_header
                _
              $region34: #{generator_forward.4} parent=31 // loop_header
                %s186 = sphi 0, %s190
                %p187 = scmp.ge.s32.totalorder %s186, 1
                %s191 = sphi %s180, %s180
                %s192 = sphi %s175, %s175
              $region35: #{generator_forward.4} parent=31 // loop_header_branch
                %189 = sbr.rel (%p187) target = $region39
              $region36: #{generator_forward.4} parent=31 // loop_body
                %v193 = vld [vmem:[%s191] sm:$0xff]
                %194 = vst [vmem:[%s192] sm:$0xff] %v193
                %v195 = vld [vmem:[%s191 + $0x8] sm:$0xff]
                %196 = vst [vmem:[%s192 + $0x8] sm:$0xff] %v195
                %v197 = vld [vmem:[%s191 + $0x100] sm:$0xff]
                %198 = vst [vmem:[%s192 + $0x10] sm:$0xff] %v197
                %v199 = vld [vmem:[%s191 + $0x108] sm:$0xff]
                %200 = vst [vmem:[%s192 + $0x18] sm:$0xff] %v199
                %v201 = vld [vmem:[%s191 + $0x200] sm:$0xff]
                %202 = vst [vmem:[%s192 + $0x20] sm:$0xff] %v201
                %v203 = vld [vmem:[%s191 + $0x208] sm:$0xff]
                %204 = vst [vmem:[%s192 + $0x28] sm:$0xff] %v203
                %v205 = vld [vmem:[%s191 + $0x300] sm:$0xff]
                %206 = vst [vmem:[%s192 + $0x30] sm:$0xff] %v205
                %v207 = vld [vmem:[%s191 + $0x308] sm:$0xff]
                %208 = vst [vmem:[%s192 + $0x38] sm:$0xff] %v207
                %v209 = vld [vmem:[%s191 + $0x400] sm:$0xff]
                %210 = vst [vmem:[%s192 + $0x40] sm:$0xff] %v209
                %v211 = vld [vmem:[%s191 + $0x408] sm:$0xff]
                %212 = vst [vmem:[%s192 + $0x48] sm:$0xff] %v211
                %v213 = vld [vmem:[%s191 + $0x500] sm:$0xff]
                %214 = vst [vmem:[%s192 + $0x50] sm:$0xff] %v213
                %v215 = vld [vmem:[%s191 + $0x508] sm:$0xff]
                %216 = vst [vmem:[%s192 + $0x58] sm:$0xff] %v215
                %v217 = vld [vmem:[%s191 + $0x600] sm:$0xff]
                %218 = vst [vmem:[%s192 + $0x60] sm:$0xff] %v217
                %v219 = vld [vmem:[%s191 + $0x608] sm:$0xff]
                %220 = vst [vmem:[%s192 + $0x68] sm:$0xff] %v219
                %v221 = vld [vmem:[%s191 + $0x700] sm:$0xff]
                %222 = vst [vmem:[%s192 + $0x70] sm:$0xff] %v221
                %v223 = vld [vmem:[%s191 + $0x708] sm:$0xff]
                %224 = vst [vmem:[%s192 + $0x78] sm:$0xff] %v223
                %v225 = vld [vmem:[%s191 + $0x800] sm:$0xff]
                %226 = vst [vmem:[%s192 + $0x80] sm:$0xff] %v225
                %v227 = vld [vmem:[%s191 + $0x808] sm:$0xff]
                %228 = vst [vmem:[%s192 + $0x88] sm:$0xff] %v227
                %v229 = vld [vmem:[%s191 + $0x900] sm:$0xff]
                %230 = vst [vmem:[%s192 + $0x90] sm:$0xff] %v229
                %v231 = vld [vmem:[%s191 + $0x908] sm:$0xff]
                %232 = vst [vmem:[%s192 + $0x98] sm:$0xff] %v231
                %v233 = vld [vmem:[%s191 + $0xa00] sm:$0xff]
                %234 = vst [vmem:[%s192 + $0xa0] sm:$0xff] %v233
                %v235 = vld [vmem:[%s191 + $0xa08] sm:$0xff]
                %236 = vst [vmem:[%s192 + $0xa8] sm:$0xff] %v235
                %v237 = vld [vmem:[%s191 + $0xb00] sm:$0xff]
                %238 = vst [vmem:[%s192 + $0xb0] sm:$0xff] %v237
                %v239 = vld [vmem:[%s191 + $0xb08] sm:$0xff]
                %240 = vst [vmem:[%s192 + $0xb8] sm:$0xff] %v239
                %v241 = vld [vmem:[%s191 + $0xc00] sm:$0xff]
                %242 = vst [vmem:[%s192 + $0xc0] sm:$0xff] %v241
                %v243 = vld [vmem:[%s191 + $0xc08] sm:$0xff]
                %244 = vst [vmem:[%s192 + $0xc8] sm:$0xff] %v243
                %v245 = vld [vmem:[%s191 + $0xd00] sm:$0xff]
                %246 = vst [vmem:[%s192 + $0xd0] sm:$0xff] %v245
                %v247 = vld [vmem:[%s191 + $0xd08] sm:$0xff]
                %248 = vst [vmem:[%s192 + $0xd8] sm:$0xff] %v247
                %v249 = vld [vmem:[%s191 + $0xe00] sm:$0xff]
                %250 = vst [vmem:[%s192 + $0xe0] sm:$0xff] %v249
                %v251 = vld [vmem:[%s191 + $0xe08] sm:$0xff]
                %252 = vst [vmem:[%s192 + $0xe8] sm:$0xff] %v251
                %v253 = vld [vmem:[%s191 + $0xf00] sm:$0xff]
                %254 = vst [vmem:[%s192 + $0xf0] sm:$0xff] %v253
                %v255 = vld [vmem:[%s191 + $0xf08] sm:$0xff]
                %256 = vst [vmem:[%s192 + $0xf8] sm:$0xff] %v255
              $region37: #{generator_forward.4} parent=31 // loop_footer
                %s190 = sadd.s32 1, %s186
              $region38: #{generator_forward.4} parent=31 // loop_footer_branch
                %185 = sbr.rel target = $region34
              $region39: #{generator_forward.4} parent=31 // loop_exit
                _
            $region32: #{generator_forward.4} parent=27 // pred_fallthru
              _
            // Predicated region
            $region40: #{generator_forward.4} parent=27 // pred_check
              _
            $region41: #{generator_forward.4} parent=27 // pred_check_branch
              %258 = sbr.rel target = $region43
            $region42: #{generator_forward.4} parent=27 // pred_region
              _
            $region43: #{generator_forward.4} parent=27 // pred_fallthru
              _
          $region28: #{generator_forward.4} parent=23 // pred_fallthru
            _
          %259 = vnop
        $region24: #{generator_forward.4} parent=19 // pred_fallthru
          _
        // Predicated region
        $region44: #{generator_forward.4} parent=19 // pred_check
          %p260 = pneg %p104
        $region45: #{generator_forward.4} parent=19 // pred_check_branch
          %262 = sbr.rel (%p260) target = $region47
        $region46: #{generator_forward.4} parent=19 // pred_region
          %s263 = smul.u32 2, %s18
          %p264 = scmp.lt.s32.totalorder %s263, 31
          %s265 = scalar_select %p264, %s263, 31
          %s266 = scalar_lea.vmem %s2, %s265
          %s267 = smul.u32 2, %s18
        $region47: #{generator_forward.4} parent=19 // pred_fallthru
          _
      $region20: #{generator_forward.4} parent=5 // pred_fallthru
        _
      %p268 = scmp.le.s32.totalorder 1, %s9
      %p269 = scmp.lt.s32.totalorder %s9, 17
      %p270 = pnand %p268, %p269
      %p271 = pneg %p270
      // Predicated region
      $region48: #{generator_forward.4} parent=5 // pred_check
        _
      $region49: #{generator_forward.4} parent=5 // pred_check_branch
        %273 = sbr.rel (%p270) target = $region51
      $region50: #{generator_forward.4} parent=5 // pred_region
        %s274 = ssub.s32 %s9, 1
        %s275 = sand.u32 %s71, 1
        %s276 = sand.u32 %s71, 1
        %s277 = smul.addr %s276, 256
        %s278 = scalar_lea.vmem [#allocation2], %s277
        // Predicated region
        $region52: #{generator_forward.4} parent=50 // pred_check
          %p279 = pneg %p84
        $region53: #{generator_forward.4} parent=50 // pred_check_branch
          %281 = sbr.rel (%p279) target = $region55
        $region54: #{generator_forward.4} parent=50 // pred_region
          _
        $region55: #{generator_forward.4} parent=50 // pred_fallthru
          _
        %p282 = scmp.lt.s32.totalorder %s19, 0
        %s283 = scalar_select %p282, %s19, 0
        %p284 = scmp.lt.s32.totalorder %s20, 0
        %s285 = scalar_select %p284, %s20, 0
        %s286 = sadd.s32 %s285, %s283
        %s287 = smul.addr %s286, 8
        %s288 = scalar_lea.vmem %s0, %s287
        %p289 = pneg %p56
        %p290 = pneg %p53
        %s291 = sand.u32 %s71, 1
        %s292 = sand.u32 %s71, 1
        %s293 = smul.addr %s292, 256
        %s294 = scalar_lea.vmem [#allocation2], %s293
        %p295 = pneg %p84
        %p296 = pneg %p81
        %s297 = smul.u32 2, %s21
        %p298 = scmp.lt.s32.totalorder %s297, 31
        %s299 = scalar_select %p298, %s297, 31
        %s300 = scalar_lea.vmem %s2, %s299
        %p301 = pneg %p110
        %p302 = pneg %p107
        %p303 = pneg %p140
        %p304 = pneg %p137
        %s305 = smul.u32 2, %s21
        %p306 = scmp.lt.s32.totalorder %s19, 0
        %s307 = scalar_select %p306, %s19, 0
        %p308 = scmp.lt.s32.totalorder %s20, 0
        %s309 = scalar_select %p308, %s20, 0
        %p310 = scmp.lt.s32.totalorder %s305, 31
        %s311 = scalar_select %p310, %s305, 31
        %s312 = smul.addr %s309, 32
        %s313 = sadd.s32 %s311, %s312
        %s314 = smul.addr %s307, 32
        %s315 = sadd.s32 %s313, %s314
        %s316 = smul.addr %s315, 8
        %s317 = scalar_lea.vmem %s3, %s316
        %p318 = scmp.lt.s32.totalorder %s19, 0
        %s319 = scalar_select %p318, %s19, 0
        %p320 = scmp.lt.s32.totalorder %s20, 0
        %s321 = scalar_select %p320, %s20, 0
        %s322 = sadd.s32 %s321, %s319
        %s323 = smul.addr %s322, 8
        %s324 = scalar_lea.vmem %s0, %s323
        %s325 = smul.u32 2, %s21
        %s326 = smul.u32 2, %s21
        %p327 = scmp.lt.s32.totalorder %s326, 31
        %s328 = scalar_select %p327, %s326, 31
        %s329 = scalar_lea.vmem %s2, %s328
        %s330 = smul.u32 2, %s21
        %s331 = smul.u32 2, %s21
        %p332 = scmp.lt.s32.totalorder %s19, 0
        %s333 = scalar_select %p332, %s19, 0
        %p334 = scmp.lt.s32.totalorder %s20, 0
        %s335 = scalar_select %p334, %s20, 0
        %p336 = scmp.lt.s32.totalorder %s331, 31
        %s337 = scalar_select %p336, %s331, 31
        %s338 = smul.addr %s335, 32
        %s339 = sadd.s32 %s337, %s338
        %s340 = smul.addr %s333, 32
        %s341 = sadd.s32 %s339, %s340
        %s342 = smul.addr %s341, 8
        %s343 = scalar_lea.vmem %s3, %s342
        %s344 = smul.u32 2, %s21
        %v345 = vld [vmem:[%s324] sm:$0xff]
        %v346 = vld [vmem:[%s278] sm:$0xff]
        %v347 = vld [vmem:[%s278 + $0x8] sm:$0xff]
        %v348 = vld [vmem:[%s278 + $0x10] sm:$0xff]
        %v349 = vld [vmem:[%s278 + $0x18] sm:$0xff]
        %v350 = vld [vmem:[%s278 + $0x20] sm:$0xff]
        %v351 = vld [vmem:[%s278 + $0x28] sm:$0xff]
        %v352 = vld [vmem:[%s278 + $0x30] sm:$0xff]
        %v353 = vld [vmem:[%s278 + $0x38] sm:$0xff]
        %v354 = vld [vmem:[%s278 + $0x40] sm:$0xff]
        %v355 = vld [vmem:[%s278 + $0x48] sm:$0xff]
        %v356 = vld [vmem:[%s278 + $0x50] sm:$0xff]
        %v357 = vld [vmem:[%s278 + $0x58] sm:$0xff]
        %v358 = vld [vmem:[%s278 + $0x60] sm:$0xff]
        %v359 = vld [vmem:[%s278 + $0x68] sm:$0xff]
        %v360 = vld [vmem:[%s278 + $0x70] sm:$0xff]
        %v361 = vld [vmem:[%s278 + $0x78] sm:$0xff]
        %v362 = vld [vmem:[%s278 + $0x80] sm:$0xff]
        %v363 = vld [vmem:[%s278 + $0x88] sm:$0xff]
        %v364 = vld [vmem:[%s278 + $0x90] sm:$0xff]
        %v365 = vld [vmem:[%s278 + $0x98] sm:$0xff]
        %v366 = vld [vmem:[%s278 + $0xa0] sm:$0xff]
        %v367 = vld [vmem:[%s278 + $0xa8] sm:$0xff]
        %v368 = vld [vmem:[%s278 + $0xb0] sm:$0xff]
        %v369 = vld [vmem:[%s278 + $0xb8] sm:$0xff]
        %v370 = vld [vmem:[%s278 + $0xc0] sm:$0xff]
        %v371 = vld [vmem:[%s278 + $0xc8] sm:$0xff]
        %v372 = vld [vmem:[%s278 + $0xd0] sm:$0xff]
        %v373 = vld [vmem:[%s278 + $0xd8] sm:$0xff]
        %v374 = vld [vmem:[%s278 + $0xe0] sm:$0xff]
        %v375 = vld [vmem:[%s278 + $0xe8] sm:$0xff]
        %v376 = vld [vmem:[%s278 + $0xf0] sm:$0xff]
        %v377 = vld [vmem:[%s278 + $0xf8] sm:$0xff]
        %v378 = vld [vmem:[%s329] sm:$0x3]
        %v380 = vlaneseq
        %v381 = vshrl.u32 %v380, 7
        %v382 = vsub.s32 0, %v381
        %v383 = vrot.slane %v378, %v382
        %v384 = vlaneseq
        %v385 = vshrl.u32 %v384, 7
        %v386 = vsub.s32 1, %v385
        %v387 = vrot.slane %v378, %v386
        %390 = vmatprep.subr.mxu0 %v347
        %391 = vmatpush1.msra.mxu0 %v346
        %392 = vmatprep.subr.mxu0 %v349
        %393 = vmatpush1.msra.mxu0 %v348
        %394 = vmatprep.subr.mxu0 %v351
        %395 = vmatpush1.msra.mxu0 %v350
        %396 = vmatprep.subr.mxu0 %v353
        %397 = vmatpush1.msra.mxu0 %v352
        %398 = vmatprep.subr.mxu0 %v355
        %399 = vmatpush1.msra.mxu0 %v354
        %400 = vmatprep.subr.mxu0 %v357
        %401 = vmatpush1.msra.mxu0 %v356
        %402 = vmatprep.subr.mxu0 %v359
        %403 = vmatpush1.msra.mxu0 %v358
        %404 = vmatprep.subr.mxu0 %v361
        %405 = vmatpush1.msra.mxu0 %v360
        %406 = vmatprep.subr.mxu0 %v363
        %407 = vmatpush1.msra.mxu0 %v362
        %408 = vmatprep.subr.mxu0 %v365
        %409 = vmatpush1.msra.mxu0 %v364
        %410 = vmatprep.subr.mxu0 %v367
        %411 = vmatpush1.msra.mxu0 %v366
        %412 = vmatprep.subr.mxu0 %v369
        %413 = vmatpush1.msra.mxu0 %v368
        %414 = vmatprep.subr.mxu0 %v371
        %415 = vmatpush1.msra.mxu0 %v370
        %416 = vmatprep.subr.mxu0 %v373
        %417 = vmatpush1.msra.mxu0 %v372
        %418 = vmatprep.subr.mxu0 %v375
        %419 = vmatpush1.msra.mxu0 %v374
        %420 = vmatprep.subr.mxu0 %v377
        %421 = vmatpush1.msra.mxu0 %v376
        %422 = vmatprep.subr.mxu0 0.0
        %423 = vmatpush1.msra.mxu0 0.0
        %424 = vmatprep.subr.mxu0 0.0
        %425 = vmatpush1.msra.mxu0 0.0
        %426 = vmatprep.subr.mxu0 0.0
        %427 = vmatpush1.msra.mxu0 0.0
        %428 = vmatprep.subr.mxu0 0.0
        %429 = vmatpush1.msra.mxu0 0.0
        %430 = vmatprep.subr.mxu0 0.0
        %431 = vmatpush1.msra.mxu0 0.0
        %432 = vmatprep.subr.mxu0 0.0
        %433 = vmatpush1.msra.mxu0 0.0
        %434 = vmatprep.subr.mxu0 0.0
        %435 = vmatpush1.msra.mxu0 0.0
        %436 = vmatprep.subr.mxu0 0.0
        %437 = vmatpush1.msra.mxu0 0.0
        %438 = vmatprep.subr.mxu0 0.0
        %439 = vmatpush1.msra.mxu0 0.0
        %440 = vmatprep.subr.mxu0 0.0
        %441 = vmatpush1.msra.mxu0 0.0
        %442 = vmatprep.subr.mxu0 0.0
        %443 = vmatpush1.msra.mxu0 0.0
        %444 = vmatprep.subr.mxu0 0.0
        %445 = vmatpush1.msra.mxu0 0.0
        %446 = vmatprep.subr.mxu0 0.0
        %447 = vmatpush1.msra.mxu0 0.0
        %448 = vmatprep.subr.mxu0 0.0
        %449 = vmatpush1.msra.mxu0 0.0
        %450 = vmatprep.subr.mxu0 0.0
        %451 = vmatpush1.msra.mxu0 0.0
        %452 = vmatprep.subr.mxu0 0.0
        %453 = vmatpush1.msra.mxu0 0.0
        %454 = vmatprep.mubr.f32.mxu0 0.0
        %455 = vmatmul.mubr.f32.gmra.mrb[0].mxu0 %v345
        %v456 = vpop.f32.mrb[0].mxu0
        %v457 = vadd.f32 %v383, %v456
        %v458 = vpop.f32.mrb[0].mxu0
        %v459 = vadd.f32 %v387, %v458
        %460 = vdwg.mxu0
        %v461 = vmax.f32 %v457, 0.0
        %v462 = vmax.f32 %v459, 0.0
        %463 = vst [vmem:[%s343] sm:$0xff] %v461
        %464 = vst [vmem:[%s343 + $0x8] sm:$0xff] %v462
        %s465 = smul.u32 2, %s21
        %p466 = scmp.lt.s32.totalorder %s19, 0
        %s467 = scalar_select %p466, %s19, 0
        %p468 = scmp.lt.s32.totalorder %s20, 0
        %s469 = scalar_select %p468, %s20, 0
        %p470 = scmp.lt.s32.totalorder %s465, 31
        %s471 = scalar_select %p470, %s465, 31
        %s472 = smul.addr %s469, 32
        %s473 = sadd.s32 %s471, %s472
        %s474 = smul.addr %s467, 32
        %s475 = sadd.s32 %s473, %s474
        %s476 = smul.addr %s475, 8
        %s477 = scalar_lea.vmem %s3, %s476
        // Predicated region
        $region56: #{generator_forward.4} parent=50 // pred_check
          %p478 = pneg %p137
        $region57: #{generator_forward.4} parent=50 // pred_check_branch
          %480 = sbr.rel (%p478) target = $region59
        $region58: #{generator_forward.4} parent=50 // pred_region
          %s481 = smul.u32 2, %s21
        $region59: #{generator_forward.4} parent=50 // pred_fallthru
          _
      $region51: #{generator_forward.4} parent=5 // pred_fallthru
        _
      %p482 = scmp.le.s32.totalorder 2, %s9
      // Predicated region
      $region60: #{generator_forward.4} parent=5 // pred_check
        %p483 = pneg %p482
      $region61: #{generator_forward.4} parent=5 // pred_check_branch
        %485 = sbr.rel (%p483) target = $region63
      $region62: #{generator_forward.4} parent=5 // pred_region
        %s486 = ssub.s32 %s9, 2
        // Predicated region
        $region64: #{generator_forward.4} parent=62 // pred_check
          %p487 = pneg %p143
        $region65: #{generator_forward.4} parent=62 // pred_check_branch
          %489 = sbr.rel (%p487) target = $region67
        $region66: #{generator_forward.4} parent=62 // pred_region
          %s490 = smul.u32 2, %s24
          %p491 = scmp.lt.s32.totalorder %s22, 0
          %s492 = scalar_select %p491, %s22, 0
          %p493 = scmp.lt.s32.totalorder %s23, 0
          %s494 = scalar_select %p493, %s23, 0
          %p495 = scmp.lt.s32.totalorder %s490, 31
          %s496 = scalar_select %p495, %s490, 31
          %s497 = smul.addr %s494, 32
          %s498 = sadd.s32 %s496, %s497
          %s499 = smul.addr %s492, 32
          %s500 = sadd.s32 %s498, %s499
          %s501 = smul.addr %s500, 8
          %s502 = scalar_lea.vmem %s3, %s501
        $region67: #{generator_forward.4} parent=62 // pred_fallthru
          _
      $region63: #{generator_forward.4} parent=5 // pred_fallthru
        _
    $region6: #{generator_forward.4} parent=1 // loop_footer
      %s13 = sadd.s32 1, %s9
    $region7: #{generator_forward.4} parent=1 // loop_footer_branch
      %8 = sbr.rel target = $region3
    $region8: #{generator_forward.4} parent=1 // loop_exit
      _

// kernel: generator_forward.5
$region0: #{generator_forward.5}
  #allocation0 [shape = 'u32[]', space=smem, size = 0x4, offset = 0x4, fixed_abs, tag = 'smem constant byte address 0x4 - core index']
  #allocation1 [shape = 'u32[144,128]{1,0:T(1,128)}', space=vmem, size = 0x12000, scoped, tag = 'internal scratch']
  %s0 = inlined_call_operand.vmem [shape: f32[4,32,1024], index: 0, kind: input, shape index: {}]
  %s1 = inlined_call_operand.vmem [shape: f32[4,1024,128], index: 1, kind: input, shape index: {}]
  %s2 = inlined_call_operand.vmem [shape: f32[1,128], index: 2, kind: input, shape index: {}]
  %s3 = inlined_call_operand.vmem [shape: f32[4,32,128], index: 3, kind: output, shape index: {}]
  %s4 = sld [smem:[#allocation0]]
  $region45: #{generator_forward.5} parent=0
    _
  %s6 = ssub.s32 1, %s4
  %s7 = scalar_select 0, %s6, %s4
  loop: start=0, step=1, limit=6
  $region2: #{generator_forward.5} parent=0 // loop_pre_header
    _
  $region3: #{generator_forward.5} parent=0 // loop_header
    %s9 = sphi 0, %s13
    %p10 = scmp.ge.s32.totalorder %s9, 6
    %s16 = sphi 0, %s35
    %s17 = sphi 0, %s31
    %s18 = sphi 0, %s27
    %s19 = sphi 0, %s16
    %s20 = sphi 0, %s17
    %s21 = sphi 0, %s18
    %s22 = sphi 0, %s19
    %s23 = sphi 0, %s20
    %s24 = sphi 0, %s21
    %s40 = sphi 0, %s42
    %s43 = sphi 0, %s40
    %s44 = sphi 0, %s43
    %s60 = sphi 0, %s44
    %s68 = sphi 0, %s70
    %s71 = sphi 0, %s68
    %s72 = sphi 0, %s71
    %s88 = sphi 0, %s72
    %s94 = sphi 0, %s96
    %s97 = sphi 0, %s94
    %s98 = sphi 0, %s97
    %s114 = sphi 0, %s98
    %s124 = sphi 0, %s126
    %s127 = sphi 0, %s124
    %s128 = sphi 0, %s127
    %s144 = sphi 0, %s128
  $region4: #{generator_forward.5} parent=0 // loop_header_branch
    %12 = sbr.rel (%p10) target = $region8
  $region5: #{generator_forward.5} parent=0 // loop_body
    %s14 = ssub.s32 %s9, 1
    %s15 = ssub.s32 %s9, 2
    %s25 = sadd.s32 1, %s18
    %p26 = scmp.ge.s32.totalorder %s25, 1
    %s27 = scalar_select %p26, 0, %s25
    %s28 = sadd.s32 1, %s17
    %s29 = scalar_select %p26, %s28, %s17
    %p30 = scmp.ge.s32.totalorder %s29, 1
    %s31 = scalar_select %p30, 0, %s29
    %s32 = sadd.s32 1, %s16
    %s33 = scalar_select %p30, %s32, %s16
    %p34 = scmp.ge.s32.totalorder %s33, 4
    %s35 = scalar_select %p34, 0, %s33
    %s36 = ssub.s32 %s16, %s35
    %s37 = ssub.s32 %s17, %s31
    %s38 = sor.u32 %s36, %s37
    %p39 = scmp.eq.s32.totalorder %s38, 0
    %s41 = sadd.s32 %s40, 1
    %s42 = scalar_select %p39, %s40, %s41
    %p45 = pneg %p39
    %p46 = scmp.eq.s32.totalorder %s9, 3
    %p47 = por %p45, %p46
    %p48 = scmp.ne.s32.totalorder %s40, %s43
    %p49 = scmp.eq.s32.totalorder %s9, 0
    %p50 = por %p48, %p49
    %p51 = scmp.ne.s32.totalorder %s40, %s43
    %p52 = scmp.eq.s32.totalorder %s14, 3
    %p53 = por %p51, %p52
    %p54 = scmp.ne.s32.totalorder %s43, %s44
    %p55 = scmp.eq.s32.totalorder %s14, 0
    %p56 = por %p54, %p55
    %p57 = scmp.ne.s32.totalorder %s43, %s44
    %p58 = scmp.eq.s32.totalorder %s15, 3
    %p59 = por %p57, %p58
    %p61 = scmp.ne.s32.totalorder %s44, %s60
    %p62 = scmp.eq.s32.totalorder %s15, 0
    %p63 = por %p61, %p62
    %s64 = ssub.s32 %s16, %s35
    %s65 = ssub.s32 %s18, %s27
    %s66 = sor.u32 %s64, %s65
    %p67 = scmp.eq.s32.totalorder %s66, 0
    %s69 = sadd.s32 %s68, 1
    %s70 = scalar_select %p67, %s68, %s69
    %p73 = pneg %p67
    %p74 = scmp.eq.s32.totalorder %s9, 3
    %p75 = por %p73, %p74
    %p76 = scmp.ne.s32.totalorder %s68, %s71
    %p77 = scmp.eq.s32.totalorder %s9, 0
    %p78 = por %p76, %p77
    %p79 = scmp.ne.s32.totalorder %s68, %s71
    %p80 = scmp.eq.s32.totalorder %s14, 3
    %p81 = por %p79, %p80
    %p82 = scmp.ne.s32.totalorder %s71, %s72
    %p83 = scmp.eq.s32.totalorder %s14, 0
    %p84 = por %p82, %p83
    %p85 = scmp.ne.s32.totalorder %s71, %s72
    %p86 = scmp.eq.s32.totalorder %s15, 3
    %p87 = por %p85, %p86
    %p89 = scmp.ne.s32.totalorder %s72, %s88
    %p90 = scmp.eq.s32.totalorder %s15, 0
    %p91 = por %p89, %p90
    %s92 = ssub.s32 %s18, %s27
    %p93 = scmp.eq.s32.totalorder %s92, 0
    %s95 = sadd.s32 %s94, 1
    %s96 = scalar_select %p93, %s94, %s95
    %p99 = pneg %p93
    %p100 = scmp.eq.s32.totalorder %s9, 3
    %p101 = por %p99, %p100
    %p102 = scmp.ne.s32.totalorder %s94, %s97
    %p103 = scmp.eq.s32.totalorder %s9, 0
    %p104 = por %p102, %p103
    %p105 = scmp.ne.s32.totalorder %s94, %s97
    %p106 = scmp.eq.s32.totalorder %s14, 3
    %p107 = por %p105, %p106
    %p108 = scmp.ne.s32.totalorder %s97, %s98
    %p109 = scmp.eq.s32.totalorder %s14, 0
    %p110 = por %p108, %p109
    %p111 = scmp.ne.s32.totalorder %s97, %s98
    %p112 = scmp.eq.s32.totalorder %s15, 3
    %p113 = por %p111, %p112
    %p115 = scmp.ne.s32.totalorder %s98, %s114
    %p116 = scmp.eq.s32.totalorder %s15, 0
    %p117 = por %p115, %p116
    %s118 = ssub.s32 %s16, %s35
    %s119 = ssub.s32 %s17, %s31
    %s120 = sor.u32 %s118, %s119
    %s121 = ssub.s32 %s18, %s27
    %s122 = sor.u32 %s120, %s121
    %p123 = scmp.eq.s32.totalorder %s122, 0
    %s125 = sadd.s32 %s124, 1
    %s126 = scalar_select %p123, %s124, %s125
    %p129 = pneg %p123
    %p130 = scmp.eq.s32.totalorder %s9, 3
    %p131 = por %p129, %p130
    %p132 = scmp.ne.s32.totalorder %s124, %s127
    %p133 = scmp.eq.s32.totalorder %s9, 0
    %p134 = por %p132, %p133
    %p135 = scmp.ne.s32.totalorder %s124, %s127
    %p136 = scmp.eq.s32.totalorder %s14, 3
    %p137 = por %p135, %p136
    %p138 = scmp.ne.s32.totalorder %s127, %s128
    %p139 = scmp.eq.s32.totalorder %s14, 0
    %p140 = por %p138, %p139
    %p141 = scmp.ne.s32.totalorder %s127, %s128
    %p142 = scmp.eq.s32.totalorder %s15, 3
    %p143 = por %p141, %p142
    %p145 = scmp.ne.s32.totalorder %s128, %s144
    %p146 = scmp.eq.s32.totalorder %s15, 0
    %p147 = por %p145, %p146
    %p148 = scmp.le.s32.totalorder 1, %s9
    %p149 = scmp.lt.s32.totalorder %s9, 5
    %p150 = pnand %p148, %p149
    %p151 = pneg %p150
    // Predicated region
    $region9: #{generator_forward.5} parent=5 // pred_check
      _
    $region10: #{generator_forward.5} parent=5 // pred_check_branch
      %153 = sbr.rel (%p150) target = $region12
    $region11: #{generator_forward.5} parent=5 // pred_region
      %s154 = ssub.s32 %s9, 1
      // Predicated region
      $region13: #{generator_forward.5} parent=11 // pred_check
        %p155 = pneg %p110
      $region14: #{generator_forward.5} parent=11 // pred_check_branch
        %157 = sbr.rel (%p155) target = $region16
      $region15: #{generator_forward.5} parent=11 // pred_region
        %p158 = scmp.lt.s32.totalorder %s21, 0
        %s159 = scalar_select %p158, %s21, 0
        %s160 = scalar_lea.vmem %s2, %s159
      $region16: #{generator_forward.5} parent=11 // pred_fallthru
        _
    $region12: #{generator_forward.5} parent=5 // pred_fallthru
      _
    %p161 = scmp.lt.s32.totalorder %s9, 4
    // Predicated region
    $region17: #{generator_forward.5} parent=5 // pred_check
      %p162 = pneg %p161
    $region18: #{generator_forward.5} parent=5 // pred_check_branch
      %164 = sbr.rel (%p162) target = $region20
    $region19: #{generator_forward.5} parent=5 // pred_region
      // Predicated region
      $region21: #{generator_forward.5} parent=19 // pred_check
        %p165 = pneg %p50
      $region22: #{generator_forward.5} parent=19 // pred_check_branch
        %167 = sbr.rel (%p165) target = $region24
      $region23: #{generator_forward.5} parent=19 // pred_region
        %s168 = smul.u32 4, %s17
        %p169 = scmp.lt.s32.totalorder %s16, 3
        %s170 = scalar_select %p169, %s16, 3
        %p171 = scmp.lt.s32.totalorder %s168, 3
        %s172 = scalar_select %p171, %s168, 3
        %s173 = smul.addr %s172, 8
        %s174 = smul.addr %s170, 32
        %s175 = sadd.s32 %s173, %s174
        %s176 = smul.addr %s175, 8
        %s177 = scalar_lea.vmem %s0, %s176
        %s178 = smul.u32 4, %s17
      $region24: #{generator_forward.5} parent=19 // pred_fallthru
        _
      // Predicated region
      $region25: #{generator_forward.5} parent=19 // pred_check
        %p179 = pneg %p78
      $region26: #{generator_forward.5} parent=19 // pred_check_branch
        %181 = sbr.rel (%p179) target = $region28
      $region27: #{generator_forward.5} parent=19 // pred_region
        %p182 = scmp.lt.s32.totalorder %s16, 3
        %s183 = scalar_select %p182, %s16, 3
        %p184 = scmp.lt.s32.totalorder %s18, 0
        %s185 = scalar_select %p184, %s18, 0
        %s186 = smul.addr %s183, 128
        %s187 = sadd.s32 %s185, %s186
        %s188 = smul.addr %s187, 8
        %s189 = scalar_lea.vmem %s1, %s188
      $region28: #{generator_forward.5} parent=19 // pred_fallthru
        _
    $region20: #{generator_forward.5} parent=5 // pred_fallthru
      _
    %p190 = scmp.le.s32.totalorder 1, %s9
    %p191 = scmp.lt.s32.totalorder %s9, 5
    %p192 = pnand %p190, %p191
    %p193 = pneg %p192
    // Predicated region
    $region29: #{generator_forward.5} parent=5 // pred_check
      _
    $region30: #{generator_forward.5} parent=5 // pred_check_branch
      %195 = sbr.rel (%p192) target = $region32
    $region31: #{generator_forward.5} parent=5 // pred_region
      %s196 = ssub.s32 %s9, 1
      %s197 = smul.u32 4, %s20
      %p198 = scmp.lt.s32.totalorder %s19, 3
      %s199 = scalar_select %p198, %s19, 3
      %p200 = scmp.lt.s32.totalorder %s197, 3
      %s201 = scalar_select %p200, %s197, 3
      %s202 = smul.addr %s201, 8
      %s203 = smul.addr %s199, 32
      %s204 = sadd.s32 %s202, %s203
      %s205 = smul.addr %s204, 8
      %s206 = scalar_lea.vmem %s0, %s205
      %p207 = pneg %p56
      %p208 = pneg %p53
      %p209 = scmp.lt.s32.totalorder %s19, 3
      %s210 = scalar_select %p209, %s19, 3
      %p211 = scmp.lt.s32.totalorder %s21, 0
      %s212 = scalar_select %p211, %s21, 0
      %s213 = smul.addr %s210, 128
      %s214 = sadd.s32 %s212, %s213
      %s215 = smul.addr %s214, 8
      %s216 = scalar_lea.vmem %s1, %s215
      %p217 = pneg %p84
      %p218 = pneg %p81
      %p219 = scmp.lt.s32.totalorder %s21, 0
      %s220 = scalar_select %p219, %s21, 0
      %s221 = scalar_lea.vmem %s2, %s220
      %p222 = pneg %p110
      %p223 = pneg %p107
      %p224 = pneg %p140
      %p225 = pneg %p137
      %s226 = smul.u32 4, %s20
      %p227 = scmp.lt.s32.totalorder %s19, 3
      %s228 = scalar_select %p227, %s19, 3
      %p229 = scmp.lt.s32.totalorder %s226, 3
      %s230 = scalar_select %p229, %s226, 3
      %p231 = scmp.lt.s32.totalorder %s21, 0
      %s232 = scalar_select %p231, %s21, 0
      %s233 = sadd.s32 %s232, %s230
      %s234 = smul.addr %s228, 4
      %s235 = sadd.s32 %s233, %s234
      %s236 = smul.addr %s235, 8
      %s237 = scalar_lea.vmem %s3, %s236
      %s238 = smul.u32 4, %s20
      %p239 = scmp.lt.s32.totalorder %s19, 3
      %s240 = scalar_select %p239, %s19, 3
      %p241 = scmp.lt.s32.totalorder %s238, 3
      %s242 = scalar_select %p241, %s238, 3
      %s243 = smul.addr %s242, 8
      %s244 = smul.addr %s240, 32
      %s245 = sadd.s32 %s243, %s244
      %s246 = smul.addr %s245, 8
      %s247 = scalar_lea.vmem %s0, %s246
      %s248 = smul.u32 4, %s20
      %p249 = scmp.lt.s32.totalorder %s19, 3
      %s250 = scalar_select %p249, %s19, 3
      %p251 = scmp.lt.s32.totalorder %s21, 0
      %s252 = scalar_select %p251, %s21, 0
      %s253 = smul.addr %s250, 128
      %s254 = sadd.s32 %s252, %s253
      %s255 = smul.addr %s254, 8
      %s256 = scalar_lea.vmem %s1, %s255
      %p257 = scmp.lt.s32.totalorder %s21, 0
      %s258 = scalar_select %p257, %s21, 0
      %s259 = scalar_lea.vmem %s2, %s258
      %s260 = smul.u32 4, %s20
      %p261 = scmp.lt.s32.totalorder %s19, 3
      %s262 = scalar_select %p261, %s19, 3
      %p263 = scmp.lt.s32.totalorder %s260, 3
      %s264 = scalar_select %p263, %s260, 3
      %p265 = scmp.lt.s32.totalorder %s21, 0
      %s266 = scalar_select %p265, %s21, 0
      %s267 = sadd.s32 %s266, %s264
      %s268 = smul.addr %s262, 4
      %s269 = sadd.s32 %s267, %s268
      %s270 = smul.addr %s269, 8
      %s271 = scalar_lea.vmem %s3, %s270
      %s272 = smul.u32 4, %s20
      %v273 = vld [vmem:[%s247] sm:$0xff]
      %v274 = vld [vmem:[%s247 + $0x8] sm:$0xff]
      %v275 = vld [vmem:[%s247 + $0x10] sm:$0xff]
      %v276 = vld [vmem:[%s247 + $0x18] sm:$0xff]
      %v277 = vld [vmem:[%s247 + $0x20] sm:$0xff]
      %v278 = vld [vmem:[%s247 + $0x28] sm:$0xff]
      %v279 = vld [vmem:[%s247 + $0x30] sm:$0xff]
      %v280 = vld [vmem:[%s247 + $0x38] sm:$0xff]
      %v281 = vld [vmem:[%s247 + $0x40] sm:$0xff]
      %v282 = vld [vmem:[%s247 + $0x48] sm:$0xff]
      %v283 = vld [vmem:[%s247 + $0x50] sm:$0xff]
      %v284 = vld [vmem:[%s247 + $0x58] sm:$0xff]
      %v285 = vld [vmem:[%s247 + $0x60] sm:$0xff]
      %v286 = vld [vmem:[%s247 + $0x68] sm:$0xff]
      %v287 = vld [vmem:[%s247 + $0x70] sm:$0xff]
      %v288 = vld [vmem:[%s247 + $0x78] sm:$0xff]
      %v289 = vld [vmem:[%s247 + $0x80] sm:$0xff]
      %v290 = vld [vmem:[%s247 + $0x88] sm:$0xff]
      %v291 = vld [vmem:[%s247 + $0x90] sm:$0xff]
      %v292 = vld [vmem:[%s247 + $0x98] sm:$0xff]
      %v293 = vld [vmem:[%s247 + $0xa0] sm:$0xff]
      %v294 = vld [vmem:[%s247 + $0xa8] sm:$0xff]
      %v295 = vld [vmem:[%s247 + $0xb0] sm:$0xff]
      %v296 = vld [vmem:[%s247 + $0xb8] sm:$0xff]
      %v297 = vld [vmem:[%s247 + $0xc0] sm:$0xff]
      %v298 = vld [vmem:[%s247 + $0xc8] sm:$0xff]
      %v299 = vld [vmem:[%s247 + $0xd0] sm:$0xff]
      %v300 = vld [vmem:[%s247 + $0xd8] sm:$0xff]
      %v301 = vld [vmem:[%s247 + $0xe0] sm:$0xff]
      %v302 = vld [vmem:[%s247 + $0xe8] sm:$0xff]
      %v303 = vld [vmem:[%s247 + $0xf0] sm:$0xff]
      %v304 = vld [vmem:[%s247 + $0xf8] sm:$0xff]
      %v305 = vld [vmem:[%s256] sm:$0xff]
      %v306 = vld [vmem:[%s256 + $0x8] sm:$0xff]
      %v307 = vld [vmem:[%s256 + $0x10] sm:$0xff]
      %v308 = vld [vmem:[%s256 + $0x18] sm:$0xff]
      %v309 = vld [vmem:[%s256 + $0x20] sm:$0xff]
      %v310 = vld [vmem:[%s256 + $0x28] sm:$0xff]
      %v311 = vld [vmem:[%s256 + $0x30] sm:$0xff]
      %v312 = vld [vmem:[%s256 + $0x38] sm:$0xff]
      %v313 = vld [vmem:[%s256 + $0x40] sm:$0xff]
      %v314 = vld [vmem:[%s256 + $0x48] sm:$0xff]
      %v315 = vld [vmem:[%s256 + $0x50] sm:$0xff]
      %v316 = vld [vmem:[%s256 + $0x58] sm:$0xff]
      %v317 = vld [vmem:[%s256 + $0x60] sm:$0xff]
      %v318 = vld [vmem:[%s256 + $0x68] sm:$0xff]
      %v319 = vld [vmem:[%s256 + $0x70] sm:$0xff]
      %v320 = vld [vmem:[%s256 + $0x78] sm:$0xff]
      %v321 = vld [vmem:[%s256 + $0x80] sm:$0xff]
      %v322 = vld [vmem:[%s256 + $0x88] sm:$0xff]
      %v323 = vld [vmem:[%s256 + $0x90] sm:$0xff]
      %v324 = vld [vmem:[%s256 + $0x98] sm:$0xff]
      %v325 = vld [vmem:[%s256 + $0xa0] sm:$0xff]
      %v326 = vld [vmem:[%s256 + $0xa8] sm:$0xff]
      %v327 = vld [vmem:[%s256 + $0xb0] sm:$0xff]
      %v328 = vld [vmem:[%s256 + $0xb8] sm:$0xff]
      %v329 = vld [vmem:[%s256 + $0xc0] sm:$0xff]
      %v330 = vld [vmem:[%s256 + $0xc8] sm:$0xff]
      %v331 = vld [vmem:[%s256 + $0xd0] sm:$0xff]
      %v332 = vld [vmem:[%s256 + $0xd8] sm:$0xff]
      %v333 = vld [vmem:[%s256 + $0xe0] sm:$0xff]
      %v334 = vld [vmem:[%s256 + $0xe8] sm:$0xff]
      %v335 = vld [vmem:[%s256 + $0xf0] sm:$0xff]
      %v336 = vld [vmem:[%s256 + $0xf8] sm:$0xff]
      %v337 = vld [vmem:[%s256 + $0x100] sm:$0xff]
      %v338 = vld [vmem:[%s256 + $0x108] sm:$0xff]
      %v339 = vld [vmem:[%s256 + $0x110] sm:$0xff]
      %v340 = vld [vmem:[%s256 + $0x118] sm:$0xff]
      %v341 = vld [vmem:[%s256 + $0x120] sm:$0xff]
      %v342 = vld [vmem:[%s256 + $0x128] sm:$0xff]
      %v343 = vld [vmem:[%s256 + $0x130] sm:$0xff]
      %v344 = vld [vmem:[%s256 + $0x138] sm:$0xff]
      %v345 = vld [vmem:[%s256 + $0x140] sm:$0xff]
      %v346 = vld [vmem:[%s256 + $0x148] sm:$0xff]
      %v347 = vld [vmem:[%s256 + $0x150] sm:$0xff]
      %v348 = vld [vmem:[%s256 + $0x158] sm:$0xff]
      %v349 = vld [vmem:[%s256 + $0x160] sm:$0xff]
      %v350 = vld [vmem:[%s256 + $0x168] sm:$0xff]
      %v351 = vld [vmem:[%s256 + $0x170] sm:$0xff]
      %v352 = vld [vmem:[%s256 + $0x178] sm:$0xff]
      %v353 = vld [vmem:[%s256 + $0x180] sm:$0xff]
      %v354 = vld [vmem:[%s256 + $0x188] sm:$0xff]
      %v355 = vld [vmem:[%s256 + $0x190] sm:$0xff]
      %v356 = vld [vmem:[%s256 + $0x198] sm:$0xff]
      %v357 = vld [vmem:[%s256 + $0x1a0] sm:$0xff]
      %v358 = vld [vmem:[%s256 + $0x1a8] sm:$0xff]
      %v359 = vld [vmem:[%s256 + $0x1b0] sm:$0xff]
      %v360 = vld [vmem:[%s256 + $0x1b8] sm:$0xff]
      %v361 = vld [vmem:[%s256 + $0x1c0] sm:$0xff]
      %v362 = vld [vmem:[%s256 + $0x1c8] sm:$0xff]
      %v363 = vld [vmem:[%s256 + $0x1d0] sm:$0xff]
      %v364 = vld [vmem:[%s256 + $0x1d8] sm:$0xff]
      %v365 = vld [vmem:[%s256 + $0x1e0] sm:$0xff]
      %v366 = vld [vmem:[%s256 + $0x1e8] sm:$0xff]
      %v367 = vld [vmem:[%s256 + $0x1f0] sm:$0xff]
      %v368 = vld [vmem:[%s256 + $0x1f8] sm:$0xff]
      %v369 = vld [vmem:[%s256 + $0x200] sm:$0xff]
      %v370 = vld [vmem:[%s256 + $0x208] sm:$0xff]
      %v371 = vld [vmem:[%s256 + $0x210] sm:$0xff]
      %v372 = vld [vmem:[%s256 + $0x218] sm:$0xff]
      %v373 = vld [vmem:[%s256 + $0x220] sm:$0xff]
      %v374 = vld [vmem:[%s256 + $0x228] sm:$0xff]
      %v375 = vld [vmem:[%s256 + $0x230] sm:$0xff]
      %v376 = vld [vmem:[%s256 + $0x238] sm:$0xff]
      %v377 = vld [vmem:[%s256 + $0x240] sm:$0xff]
      %v378 = vld [vmem:[%s256 + $0x248] sm:$0xff]
      %v379 = vld [vmem:[%s256 + $0x250] sm:$0xff]
      %v380 = vld [vmem:[%s256 + $0x258] sm:$0xff]
      %v381 = vld [vmem:[%s256 + $0x260] sm:$0xff]
      %v382 = vld [vmem:[%s256 + $0x268] sm:$0xff]
      %v383 = vld [vmem:[%s256 + $0x270] sm:$0xff]
      %v384 = vld [vmem:[%s256 + $0x278] sm:$0xff]
      %v385 = vld [vmem:[%s256 + $0x280] sm:$0xff]
      %v386 = vld [vmem:[%s256 + $0x288] sm:$0xff]
      %v387 = vld [vmem:[%s256 + $0x290] sm:$0xff]
      %v388 = vld [vmem:[%s256 + $0x298] sm:$0xff]
      %v389 = vld [vmem:[%s256 + $0x2a0] sm:$0xff]
      %v390 = vld [vmem:[%s256 + $0x2a8] sm:$0xff]
      %v391 = vld [vmem:[%s256 + $0x2b0] sm:$0xff]
      %v392 = vld [vmem:[%s256 + $0x2b8] sm:$0xff]
      %v393 = vld [vmem:[%s256 + $0x2c0] sm:$0xff]
      %v394 = vld [vmem:[%s256 + $0x2c8] sm:$0xff]
      %v395 = vld [vmem:[%s256 + $0x2d0] sm:$0xff]
      %v396 = vld [vmem:[%s256 + $0x2d8] sm:$0xff]
      %v397 = vld [vmem:[%s256 + $0x2e0] sm:$0xff]
      %v398 = vld [vmem:[%s256 + $0x2e8] sm:$0xff]
      %v399 = vld [vmem:[%s256 + $0x2f0] sm:$0xff]
      %v400 = vld [vmem:[%s256 + $0x2f8] sm:$0xff]
      %v401 = vld [vmem:[%s256 + $0x300] sm:$0xff]
      %v402 = vld [vmem:[%s256 + $0x308] sm:$0xff]
      %v403 = vld [vmem:[%s256 + $0x310] sm:$0xff]
      %v404 = vld [vmem:[%s256 + $0x318] sm:$0xff]
      %v405 = vld [vmem:[%s256 + $0x320] sm:$0xff]
      %v406 = vld [vmem:[%s256 + $0x328] sm:$0xff]
      %v407 = vld [vmem:[%s256 + $0x330] sm:$0xff]
      %v408 = vld [vmem:[%s256 + $0x338] sm:$0xff]
      %v409 = vld [vmem:[%s256 + $0x340] sm:$0xff]
      %v410 = vld [vmem:[%s256 + $0x348] sm:$0xff]
      %v411 = vld [vmem:[%s256 + $0x350] sm:$0xff]
      %v412 = vld [vmem:[%s256 + $0x358] sm:$0xff]
      %v413 = vld [vmem:[%s256 + $0x360] sm:$0xff]
      %v414 = vld [vmem:[%s256 + $0x368] sm:$0xff]
      %v415 = vld [vmem:[%s256 + $0x370] sm:$0xff]
      %v416 = vld [vmem:[%s256 + $0x378] sm:$0xff]
      %v417 = vld [vmem:[%s256 + $0x380] sm:$0xff]
      %v418 = vld [vmem:[%s256 + $0x388] sm:$0xff]
      %v419 = vld [vmem:[%s256 + $0x390] sm:$0xff]
      %v420 = vld [vmem:[%s256 + $0x398] sm:$0xff]
      %v421 = vld [vmem:[%s256 + $0x3a0] sm:$0xff]
      %v422 = vld [vmem:[%s256 + $0x3a8] sm:$0xff]
      %v423 = vld [vmem:[%s256 + $0x3b0] sm:$0xff]
      %v424 = vld [vmem:[%s256 + $0x3b8] sm:$0xff]
      %v425 = vld [vmem:[%s256 + $0x3c0] sm:$0xff]
      %v426 = vld [vmem:[%s256 + $0x3c8] sm:$0xff]
      %v427 = vld [vmem:[%s256 + $0x3d0] sm:$0xff]
      %v428 = vld [vmem:[%s256 + $0x3d8] sm:$0xff]
      %v429 = vld [vmem:[%s256 + $0x3e0] sm:$0xff]
      %v430 = vld [vmem:[%s256 + $0x3e8] sm:$0xff]
      %v431 = vld [vmem:[%s256 + $0x3f0] sm:$0xff]
      %v432 = vld [vmem:[%s256 + $0x3f8] sm:$0xff]
      %v433 = vld [vmem:[%s259] sm:$0x1]
      %v435 = vlaneseq
      %v436 = vshrl.u32 %v435, 7
      %v437 = vsub.s32 0, %v436
      %v438 = vrot.slane %v433, %v437
      %440 = vmatprep.subr.mxu0 0.0
      %441 = vmatpush1.msra.mxu0 %v305
      %442 = vmatprep.subr.mxu0 0.0
      %443 = vmatpush1.msra.mxu0 %v306
      %444 = vmatprep.subr.mxu0 0.0
      %445 = vmatpush1.msra.mxu0 %v307
      %446 = vmatprep.subr.mxu0 0.0
      %447 = vmatpush1.msra.mxu0 %v308
      %448 = vmatprep.subr.mxu0 0.0
      %449 = vmatpush1.msra.mxu0 %v309
      %450 = vmatprep.subr.mxu0 0.0
      %451 = vmatpush1.msra.mxu0 %v310
      %452 = vmatprep.subr.mxu0 0.0
      %453 = vmatpush1.msra.mxu0 %v311
      %454 = vmatprep.subr.mxu0 0.0
      %455 = vmatpush1.msra.mxu0 %v312
      %456 = vmatprep.subr.mxu0 0.0
      %457 = vmatpush1.msra.mxu0 %v313
      %458 = vmatprep.subr.mxu0 0.0
      %459 = vmatpush1.msra.mxu0 %v314
      %460 = vmatprep.subr.mxu0 0.0
      %461 = vmatpush1.msra.mxu0 %v315
      %462 = vmatprep.subr.mxu0 0.0
      %463 = vmatpush1.msra.mxu0 %v316
      %464 = vmatprep.subr.mxu0 0.0
      %465 = vmatpush1.msra.mxu0 %v317
      %466 = vmatprep.subr.mxu0 0.0
      %467 = vmatpush1.msra.mxu0 %v318
      %468 = vmatprep.subr.mxu0 0.0
      %469 = vmatpush1.msra.mxu0 %v319
      %470 = vmatprep.subr.mxu0 0.0
      %471 = vmatpush1.msra.mxu0 %v320
      %472 = vmatprep.subr.mxu0 0.0
      %473 = vmatpush1.msra.mxu0 %v321
      %474 = vmatprep.subr.mxu0 0.0
      %475 = vmatpush1.msra.mxu0 %v322
      %476 = vmatprep.subr.mxu0 0.0
      %477 = vmatpush1.msra.mxu0 %v323
      %478 = vmatprep.subr.mxu0 0.0
      %479 = vmatpush1.msra.mxu0 %v324
      %480 = vmatprep.subr.mxu0 0.0
      %481 = vmatpush1.msra.mxu0 %v325
      %482 = vmatprep.subr.mxu0 0.0
      %483 = vmatpush1.msra.mxu0 %v326
      %484 = vmatprep.subr.mxu0 0.0
      %485 = vmatpush1.msra.mxu0 %v327
      %486 = vmatprep.subr.mxu0 0.0
      %487 = vmatpush1.msra.mxu0 %v328
      %488 = vmatprep.subr.mxu0 0.0
      %489 = vmatpush1.msra.mxu0 %v329
      %490 = vmatprep.subr.mxu0 0.0
      %491 = vmatpush1.msra.mxu0 %v330
      %492 = vmatprep.subr.mxu0 0.0
      %493 = vmatpush1.msra.mxu0 %v331
      %494 = vmatprep.subr.mxu0 0.0
      %495 = vmatpush1.msra.mxu0 %v332
      %496 = vmatprep.subr.mxu0 0.0
      %497 = vmatpush1.msra.mxu0 %v333
      %498 = vmatprep.subr.mxu0 0.0
      %499 = vmatpush1.msra.mxu0 %v334
      %500 = vmatprep.subr.mxu0 0.0
      %501 = vmatpush1.msra.mxu0 %v335
      %502 = vmatprep.subr.mxu0 0.0
      %503 = vmatpush1.msra.mxu0 %v336
      %504 = vmatprep.mubr.f32.mxu0 %v274
      %505 = vmatmul.mubr.f32.gmra.mrb[0].mxu0 %v273
      %v506 = vpop.f32.mrb[0].mxu0
      %v507 = vadd.f32 %v438, %v506
      %v508 = vpop.f32.mrb[0].mxu0
      %509 = vmatprep.mubr.f32.mxu0 %v282
      %510 = vmatmul.mubr.f32.gmra.mrb[0].mxu0 %v281
      %v511 = vpop.f32.mrb[0].mxu0
      %v512 = vadd.f32 %v438, %v511
      %v513 = vpop.f32.mrb[0].mxu0
      %514 = vmatprep.mubr.f32.mxu0 %v290
      %515 = vmatmul.mubr.f32.gmra.mrb[0].mxu0 %v289
      %v516 = vpop.f32.mrb[0].mxu0
      %v517 = vadd.f32 %v438, %v516
      %v518 = vpop.f32.mrb[0].mxu0
      %519 = vmatprep.mubr.f32.mxu0 %v298
      %520 = vmatmul.mubr.f32.gmra.mrb[0].mxu0 %v297
      %v521 = vpop.f32.mrb[0].mxu0
      %v522 = vadd.f32 %v438, %v521
      %v523 = vpop.f32.mrb[0].mxu0
      %524 = vdwg.mxu0
      %525 = vmatprep.subr.mxu0 0.0
      %526 = vmatpush1.msra.mxu0 %v337
      %527 = vmatprep.subr.mxu0 0.0
      %528 = vmatpush1.msra.mxu0 %v338
      %529 = vmatprep.subr.mxu0 0.0
      %530 = vmatpush1.msra.mxu0 %v339
      %531 = vmatprep.subr.mxu0 0.0
      %532 = vmatpush1.msra.mxu0 %v340
      %533 = vmatprep.subr.mxu0 0.0
      %534 = vmatpush1.msra.mxu0 %v341
      %535 = vmatprep.subr.mxu0 0.0
      %536 = vmatpush1.msra.mxu0 %v342
      %537 = vmatprep.subr.mxu0 0.0
      %538 = vmatpush1.msra.mxu0 %v343
      %539 = vmatprep.subr.mxu0 0.0
      %540 = vmatpush1.msra.mxu0 %v344
      %541 = vmatprep.subr.mxu0 0.0
      %542 = vmatpush1.msra.mxu0 %v345
      %543 = vmatprep.subr.mxu0 0.0
      %544 = vmatpush1.msra.mxu0 %v346
      %545 = vmatprep.subr.mxu0 0.0
      %546 = vmatpush1.msra.mxu0 %v347
      %547 = vmatprep.subr.mxu0 0.0
      %548 = vmatpush1.msra.mxu0 %v348
      %549 = vmatprep.subr.mxu0 0.0
      %550 = vmatpush1.msra.mxu0 %v349
      %551 = vmatprep.subr.mxu0 0.0
      %552 = vmatpush1.msra.mxu0 %v350
      %553 = vmatprep.subr.mxu0 0.0
      %554 = vmatpush1.msra.mxu0 %v351
      %555 = vmatprep.subr.mxu0 0.0
      %556 = vmatpush1.msra.mxu0 %v352
      %557 = vmatprep.subr.mxu0 0.0
      %558 = vmatpush1.msra.mxu0 %v353
      %559 = vmatprep.subr.mxu0 0.0
      %560 = vmatpush1.msra.mxu0 %v354
      %561 = vmatprep.subr.mxu0 0.0
      %562 = vmatpush1.msra.mxu0 %v355
      %563 = vmatprep.subr.mxu0 0.0
      %564 = vmatpush1.msra.mxu0 %v356
      %565 = vmatprep.subr.mxu0 0.0
      %566 = vmatpush1.msra.mxu0 %v357
      %567 = vmatprep.subr.mxu0 0.0
      %568 = vmatpush1.msra.mxu0 %v358
      %569 = vmatprep.subr.mxu0 0.0
      %570 = vmatpush1.msra.mxu0 %v359
      %571 = vmatprep.subr.mxu0 0.0
      %572 = vmatpush1.msra.mxu0 %v360
      %573 = vmatprep.subr.mxu0 0.0
      %574 = vmatpush1.msra.mxu0 %v361
      %575 = vmatprep.subr.mxu0 0.0
      %576 = vmatpush1.msra.mxu0 %v362
      %577 = vmatprep.subr.mxu0 0.0
      %578 = vmatpush1.msra.mxu0 %v363
      %579 = vmatprep.subr.mxu0 0.0
      %580 = vmatpush1.msra.mxu0 %v364
      %581 = vmatprep.subr.mxu0 0.0
      %582 = vmatpush1.msra.mxu0 %v365
      %583 = vmatprep.subr.mxu0 0.0
      %584 = vmatpush1.msra.mxu0 %v366
      %585 = vmatprep.subr.mxu0 0.0
      %586 = vmatpush1.msra.mxu0 %v367
      %587 = vmatprep.subr.mxu0 0.0
      %588 = vmatpush1.msra.mxu0 %v368
      %589 = vmatprep.mubr.f32.mxu0 %v276
      %590 = vmatmul.mubr.f32.gmra.mrb[0].mxu0 %v275
      %v591 = vpop.f32.mrb[0].mxu0
      %v592 = vadd.f32 %v507, %v591
      %v593 = vpop.f32.mrb[0].mxu0
      %594 = vmatprep.mubr.f32.mxu0 %v284
      %595 = vmatmul.mubr.f32.gmra.mrb[0].mxu0 %v283
      %v596 = vpop.f32.mrb[0].mxu0
      %v597 = vadd.f32 %v512, %v596
      %v598 = vpop.f32.mrb[0].mxu0
      %599 = vmatprep.mubr.f32.mxu0 %v292
      %600 = vmatmul.mubr.f32.gmra.mrb[0].mxu0 %v291
      %v601 = vpop.f32.mrb[0].mxu0
      %v602 = vadd.f32 %v517, %v601
      %v603 = vpop.f32.mrb[0].mxu0
      %604 = vmatprep.mubr.f32.mxu0 %v300
      %605 = vmatmul.mubr.f32.gmra.mrb[0].mxu0 %v299
      %v606 = vpop.f32.mrb[0].mxu0
      %v607 = vadd.f32 %v522, %v606
      %v608 = vpop.f32.mrb[0].mxu0
      %609 = vdwg.mxu0
      %610 = vmatprep.subr.mxu0 0.0
      %611 = vmatpush1.msra.mxu0 %v369
      %612 = vmatprep.subr.mxu0 0.0
      %613 = vmatpush1.msra.mxu0 %v370
      %614 = vmatprep.subr.mxu0 0.0
      %615 = vmatpush1.msra.mxu0 %v371
      %616 = vmatprep.subr.mxu0 0.0
      %617 = vmatpush1.msra.mxu0 %v372
      %618 = vmatprep.subr.mxu0 0.0
      %619 = vmatpush1.msra.mxu0 %v373
      %620 = vmatprep.subr.mxu0 0.0
      %621 = vmatpush1.msra.mxu0 %v374
      %622 = vmatprep.subr.mxu0 0.0
      %623 = vmatpush1.msra.mxu0 %v375
      %624 = vmatprep.subr.mxu0 0.0
      %625 = vmatpush1.msra.mxu0 %v376
      %626 = vmatprep.subr.mxu0 0.0
      %627 = vmatpush1.msra.mxu0 %v377
      %628 = vmatprep.subr.mxu0 0.0
      %629 = vmatpush1.msra.mxu0 %v378
      %630 = vmatprep.subr.mxu0 0.0
      %631 = vmatpush1.msra.mxu0 %v379
      %632 = vmatprep.subr.mxu0 0.0
      %633 = vmatpush1.msra.mxu0 %v380
      %634 = vmatprep.subr.mxu0 0.0
      %635 = vmatpush1.msra.mxu0 %v381
      %636 = vmatprep.subr.mxu0 0.0
      %637 = vmatpush1.msra.mxu0 %v382
      %638 = vmatprep.subr.mxu0 0.0
      %639 = vmatpush1.msra.mxu0 %v383
      %640 = vmatprep.subr.mxu0 0.0
      %641 = vmatpush1.msra.mxu0 %v384
      %642 = vmatprep.subr.mxu0 0.0
      %643 = vmatpush1.msra.mxu0 %v385
      %644 = vmatprep.subr.mxu0 0.0
      %645 = vmatpush1.msra.mxu0 %v386
      %646 = vmatprep.subr.mxu0 0.0
      %647 = vmatpush1.msra.mxu0 %v387
      %648 = vmatprep.subr.mxu0 0.0
      %649 = vmatpush1.msra.mxu0 %v388
      %650 = vmatprep.subr.mxu0 0.0
      %651 = vmatpush1.msra.mxu0 %v389
      %652 = vmatprep.subr.mxu0 0.0
      %653 = vmatpush1.msra.mxu0 %v390
      %654 = vmatprep.subr.mxu0 0.0
      %655 = vmatpush1.msra.mxu0 %v391
      %656 = vmatprep.subr.mxu0 0.0
      %657 = vmatpush1.msra.mxu0 %v392
      %658 = vmatprep.subr.mxu0 0.0
      %659 = vmatpush1.msra.mxu0 %v393
      %660 = vmatprep.subr.mxu0 0.0
      %661 = vmatpush1.msra.mxu0 %v394
      %662 = vmatprep.subr.mxu0 0.0
      %663 = vmatpush1.msra.mxu0 %v395
      %664 = vmatprep.subr.mxu0 0.0
      %665 = vmatpush1.msra.mxu0 %v396
      %666 = vmatprep.subr.mxu0 0.0
      %667 = vmatpush1.msra.mxu0 %v397
      %668 = vmatprep.subr.mxu0 0.0
      %669 = vmatpush1.msra.mxu0 %v398
      %670 = vmatprep.subr.mxu0 0.0
      %671 = vmatpush1.msra.mxu0 %v399
      %672 = vmatprep.subr.mxu0 0.0
      %673 = vmatpush1.msra.mxu0 %v400
      %674 = vmatprep.mubr.f32.mxu0 %v278
      %675 = vmatmul.mubr.f32.gmra.mrb[0].mxu0 %v277
      %v676 = vpop.f32.mrb[0].mxu0
      %v677 = vadd.f32 %v592, %v676
      %v678 = vpop.f32.mrb[0].mxu0
      %679 = vmatprep.mubr.f32.mxu0 %v286
      %680 = vmatmul.mubr.f32.gmra.mrb[0].mxu0 %v285
      %v681 = vpop.f32.mrb[0].mxu0
      %v682 = vadd.f32 %v597, %v681
      %v683 = vpop.f32.mrb[0].mxu0
      %684 = vmatprep.mubr.f32.mxu0 %v294
      %685 = vmatmul.mubr.f32.gmra.mrb[0].mxu0 %v293
      %v686 = vpop.f32.mrb[0].mxu0
      %v687 = vadd.f32 %v602, %v686
      %v688 = vpop.f32.mrb[0].mxu0
      %689 = vmatprep.mubr.f32.mxu0 %v302
      %690 = vmatmul.mubr.f32.gmra.mrb[0].mxu0 %v301
      %v691 = vpop.f32.mrb[0].mxu0
      %v692 = vadd.f32 %v607, %v691
      %v693 = vpop.f32.mrb[0].mxu0
      %694 = vdwg.mxu0
      %695 = vmatprep.subr.mxu0 0.0
      %696 = vmatpush1.msra.mxu0 %v401
      %697 = vmatprep.subr.mxu0 0.0
      %698 = vmatpush1.msra.mxu0 %v402
      %699 = vmatprep.subr.mxu0 0.0
      %700 = vmatpush1.msra.mxu0 %v403
      %701 = vmatprep.subr.mxu0 0.0
      %702 = vmatpush1.msra.mxu0 %v404
      %703 = vmatprep.subr.mxu0 0.0
      %704 = vmatpush1.msra.mxu0 %v405
      %705 = vmatprep.subr.mxu0 0.0
      %706 = vmatpush1.msra.mxu0 %v406
      %707 = vmatprep.subr.mxu0 0.0
      %708 = vmatpush1.msra.mxu0 %v407
      %709 = vmatprep.subr.mxu0 0.0
      %710 = vmatpush1.msra.mxu0 %v408
      %711 = vmatprep.subr.mxu0 0.0
      %712 = vmatpush1.msra.mxu0 %v409
      %713 = vmatprep.subr.mxu0 0.0
      %714 = vmatpush1.msra.mxu0 %v410
      %715 = vmatprep.subr.mxu0 0.0
      %716 = vmatpush1.msra.mxu0 %v411
      %717 = vmatprep.subr.mxu0 0.0
      %718 = vmatpush1.msra.mxu0 %v412
      %719 = vmatprep.subr.mxu0 0.0
      %720 = vmatpush1.msra.mxu0 %v413
      %721 = vmatprep.subr.mxu0 0.0
      %722 = vmatpush1.msra.mxu0 %v414
      %723 = vmatprep.subr.mxu0 0.0
      %724 = vmatpush1.msra.mxu0 %v415
      %725 = vmatprep.subr.mxu0 0.0
      %726 = vmatpush1.msra.mxu0 %v416
      %727 = vmatprep.subr.mxu0 0.0
      %728 = vmatpush1.msra.mxu0 %v417
      %729 = vmatprep.subr.mxu0 0.0
      %730 = vmatpush1.msra.mxu0 %v418
      %731 = vmatprep.subr.mxu0 0.0
      %732 = vmatpush1.msra.mxu0 %v419
      %733 = vmatprep.subr.mxu0 0.0
      %734 = vmatpush1.msra.mxu0 %v420
      %735 = vmatprep.subr.mxu0 0.0
      %736 = vmatpush1.msra.mxu0 %v421
      %737 = vmatprep.subr.mxu0 0.0
      %738 = vmatpush1.msra.mxu0 %v422
      %739 = vmatprep.subr.mxu0 0.0
      %740 = vmatpush1.msra.mxu0 %v423
      %741 = vmatprep.subr.mxu0 0.0
      %742 = vmatpush1.msra.mxu0 %v424
      %743 = vmatprep.subr.mxu0 0.0
      %744 = vmatpush1.msra.mxu0 %v425
      %745 = vmatprep.subr.mxu0 0.0
      %746 = vmatpush1.msra.mxu0 %v426
      %747 = vmatprep.subr.mxu0 0.0
      %748 = vmatpush1.msra.mxu0 %v427
      %749 = vmatprep.subr.mxu0 0.0
      %750 = vmatpush1.msra.mxu0 %v428
      %751 = vmatprep.subr.mxu0 0.0
      %752 = vmatpush1.msra.mxu0 %v429
      %753 = vmatprep.subr.mxu0 0.0
      %754 = vmatpush1.msra.mxu0 %v430
      %755 = vmatprep.subr.mxu0 0.0
      %756 = vmatpush1.msra.mxu0 %v431
      %757 = vmatprep.subr.mxu0 0.0
      %758 = vmatpush1.msra.mxu0 %v432
      %759 = vmatprep.mubr.f32.mxu0 %v280
      %760 = vmatmul.mubr.f32.gmra.mrb[0].mxu0 %v279
      %v761 = vpop.f32.mrb[0].mxu0
      %v762 = vadd.f32 %v677, %v761
      %v763 = vpop.f32.mrb[0].mxu0
      %764 = vmatprep.mubr.f32.mxu0 %v288
      %765 = vmatmul.mubr.f32.gmra.mrb[0].mxu0 %v287
      %v766 = vpop.f32.mrb[0].mxu0
      %v767 = vadd.f32 %v682, %v766
      %v768 = vpop.f32.mrb[0].mxu0
      %769 = vmatprep.mubr.f32.mxu0 %v296
      %770 = vmatmul.mubr.f32.gmra.mrb[0].mxu0 %v295
      %v771 = vpop.f32.mrb[0].mxu0
      %v772 = vadd.f32 %v687, %v771
      %v773 = vpop.f32.mrb[0].mxu0
      %774 = vmatprep.mubr.f32.mxu0 %v304
      %775 = vmatmul.mubr.f32.gmra.mrb[0].mxu0 %v303
      %v776 = vpop.f32.mrb[0].mxu0
      %v777 = vadd.f32 %v692, %v776
      %v778 = vpop.f32.mrb[0].mxu0
      %779 = vdwg.mxu0
      %v780 = vmax.f32 %v762, 0.0
      %v781 = vmax.f32 %v767, 0.0
      %v782 = vmax.f32 %v772, 0.0
      %v783 = vmax.f32 %v777, 0.0
      %784 = vst [vmem:[%s271] sm:$0xff] %v780
      %785 = vst [vmem:[%s271 + $0x8] sm:$0xff] %v781
      %786 = vst [vmem:[%s271 + $0x10] sm:$0xff] %v782
      %787 = vst [vmem:[%s271 + $0x18] sm:$0xff] %v783
      %s788 = smul.u32 4, %s20
      %p789 = scmp.lt.s32.totalorder %s19, 3
      %s790 = scalar_select %p789, %s19, 3
      %p791 = scmp.lt.s32.totalorder %s788, 3
      %s792 = scalar_select %p791, %s788, 3
      %p793 = scmp.lt.s32.totalorder %s21, 0
      %s794 = scalar_select %p793, %s21, 0
      %s795 = sadd.s32 %s794, %s792
      %s796 = smul.addr %s790, 4
      %s797 = sadd.s32 %s795, %s796
      %s798 = smul.addr %s797, 8
      %s799 = scalar_lea.vmem %s3, %s798
      // Predicated region
      $region33: #{generator_forward.5} parent=31 // pred_check
        %p800 = pneg %p137
      $region34: #{generator_forward.5} parent=31 // pred_check_branch
        %802 = sbr.rel (%p800) target = $region36
      $region35: #{generator_forward.5} parent=31 // pred_region
        %s803 = smul.u32 4, %s20
      $region36: #{generator_forward.5} parent=31 // pred_fallthru
        _
    $region32: #{generator_forward.5} parent=5 // pred_fallthru
      _
    %p804 = scmp.le.s32.totalorder 2, %s9
    // Predicated region
    $region37: #{generator_forward.5} parent=5 // pred_check
      %p805 = pneg %p804
    $region38: #{generator_forward.5} parent=5 // pred_check_branch
      %807 = sbr.rel (%p805) target = $region40
    $region39: #{generator_forward.5} parent=5 // pred_region
      %s808 = ssub.s32 %s9, 2
      // Predicated region
      $region41: #{generator_forward.5} parent=39 // pred_check
        %p809 = pneg %p143
      $region42: #{generator_forward.5} parent=39 // pred_check_branch
        %811 = sbr.rel (%p809) target = $region44
      $region43: #{generator_forward.5} parent=39 // pred_region
        %s812 = smul.u32 4, %s23
        %p813 = scmp.lt.s32.totalorder %s22, 3
        %s814 = scalar_select %p813, %s22, 3
        %p815 = scmp.lt.s32.totalorder %s812, 3
        %s816 = scalar_select %p815, %s812, 3
        %p817 = scmp.lt.s32.totalorder %s24, 0
        %s818 = scalar_select %p817, %s24, 0
        %s819 = sadd.s32 %s818, %s816
        %s820 = smul.addr %s814, 4
        %s821 = sadd.s32 %s819, %s820
        %s822 = smul.addr %s821, 8
        %s823 = scalar_lea.vmem %s3, %s822
      $region44: #{generator_forward.5} parent=39 // pred_fallthru
        _
    $region40: #{generator_forward.5} parent=5 // pred_fallthru
      _
  $region6: #{generator_forward.5} parent=0 // loop_footer
    %s13 = sadd.s32 1, %s9
  $region7: #{generator_forward.5} parent=0 // loop_footer_branch
    %8 = sbr.rel target = $region3
  $region8: #{generator_forward.5} parent=0 // loop_exit
    _

// kernel: generator_forward.6
$region0: #{generator_forward.6}
  #allocation0 [shape = 'u32[]', space=smem, size = 0x4, offset = 0x4, fixed_abs, tag = 'smem constant byte address 0x4 - core index']
  #allocation1 [shape = 'u32[144,128]{1,0:T(1,128)}', space=vmem, size = 0x12000, scoped, tag = 'internal scratch']
  %s0 = inlined_call_operand.vmem [shape: f32[4,128,512], index: 0, kind: input, shape index: {}]
  %s1 = inlined_call_operand.vmem [shape: f32[4,512,128], index: 1, kind: input, shape index: {}]
  %s2 = inlined_call_operand.vmem [shape: f32[1,128], index: 2, kind: input, shape index: {}]
  %s3 = inlined_call_operand.vmem [shape: f32[4,128,128], index: 3, kind: output, shape index: {}]
  %s4 = sld [smem:[#allocation0]]
  $region45: #{generator_forward.6} parent=0
    _
  %s6 = ssub.s32 1, %s4
  %s7 = scalar_select 0, %s6, %s4
  loop: start=0, step=1, limit=6
  $region2: #{generator_forward.6} parent=0 // loop_pre_header
    _
  $region3: #{generator_forward.6} parent=0 // loop_header
    %s9 = sphi 0, %s13
    %p10 = scmp.ge.s32.totalorder %s9, 6
    %s16 = sphi 0, %s35
    %s17 = sphi 0, %s31
    %s18 = sphi 0, %s27
    %s19 = sphi 0, %s16
    %s20 = sphi 0, %s17
    %s21 = sphi 0, %s18
    %s22 = sphi 0, %s19
    %s23 = sphi 0, %s20
    %s24 = sphi 0, %s21
    %s40 = sphi 0, %s42
    %s43 = sphi 0, %s40
    %s44 = sphi 0, %s43
    %s60 = sphi 0, %s44
    %s68 = sphi 0, %s70
    %s71 = sphi 0, %s68
    %s72 = sphi 0, %s71
    %s88 = sphi 0, %s72
    %s94 = sphi 0, %s96
    %s97 = sphi 0, %s94
    %s98 = sphi 0, %s97
    %s114 = sphi 0, %s98
    %s124 = sphi 0, %s126
    %s127 = sphi 0, %s124
    %s128 = sphi 0, %s127
    %s144 = sphi 0, %s128
  $region4: #{generator_forward.6} parent=0 // loop_header_branch
    %12 = sbr.rel (%p10) target = $region8
  $region5: #{generator_forward.6} parent=0 // loop_body
    %s14 = ssub.s32 %s9, 1
    %s15 = ssub.s32 %s9, 2
    %s25 = sadd.s32 1, %s18
    %p26 = scmp.ge.s32.totalorder %s25, 1
    %s27 = scalar_select %p26, 0, %s25
    %s28 = sadd.s32 1, %s17
    %s29 = scalar_select %p26, %s28, %s17
    %p30 = scmp.ge.s32.totalorder %s29, 1
    %s31 = scalar_select %p30, 0, %s29
    %s32 = sadd.s32 1, %s16
    %s33 = scalar_select %p30, %s32, %s16
    %p34 = scmp.ge.s32.totalorder %s33, 4
    %s35 = scalar_select %p34, 0, %s33
    %s36 = ssub.s32 %s16, %s35
    %s37 = ssub.s32 %s17, %s31
    %s38 = sor.u32 %s36, %s37
    %p39 = scmp.eq.s32.totalorder %s38, 0
    %s41 = sadd.s32 %s40, 1
    %s42 = scalar_select %p39, %s40, %s41
    %p45 = pneg %p39
    %p46 = scmp.eq.s32.totalorder %s9, 3
    %p47 = por %p45, %p46
    %p48 = scmp.ne.s32.totalorder %s40, %s43
    %p49 = scmp.eq.s32.totalorder %s9, 0
    %p50 = por %p48, %p49
    %p51 = scmp.ne.s32.totalorder %s40, %s43
    %p52 = scmp.eq.s32.totalorder %s14, 3
    %p53 = por %p51, %p52
    %p54 = scmp.ne.s32.totalorder %s43, %s44
    %p55 = scmp.eq.s32.totalorder %s14, 0
    %p56 = por %p54, %p55
    %p57 = scmp.ne.s32.totalorder %s43, %s44
    %p58 = scmp.eq.s32.totalorder %s15, 3
    %p59 = por %p57, %p58
    %p61 = scmp.ne.s32.totalorder %s44, %s60
    %p62 = scmp.eq.s32.totalorder %s15, 0
    %p63 = por %p61, %p62
    %s64 = ssub.s32 %s16, %s35
    %s65 = ssub.s32 %s18, %s27
    %s66 = sor.u32 %s64, %s65
    %p67 = scmp.eq.s32.totalorder %s66, 0
    %s69 = sadd.s32 %s68, 1
    %s70 = scalar_select %p67, %s68, %s69
    %p73 = pneg %p67
    %p74 = scmp.eq.s32.totalorder %s9, 3
    %p75 = por %p73, %p74
    %p76 = scmp.ne.s32.totalorder %s68, %s71
    %p77 = scmp.eq.s32.totalorder %s9, 0
    %p78 = por %p76, %p77
    %p79 = scmp.ne.s32.totalorder %s68, %s71
    %p80 = scmp.eq.s32.totalorder %s14, 3
    %p81 = por %p79, %p80
    %p82 = scmp.ne.s32.totalorder %s71, %s72
    %p83 = scmp.eq.s32.totalorder %s14, 0
    %p84 = por %p82, %p83
    %p85 = scmp.ne.s32.totalorder %s71, %s72
    %p86 = scmp.eq.s32.totalorder %s15, 3
    %p87 = por %p85, %p86
    %p89 = scmp.ne.s32.totalorder %s72, %s88
    %p90 = scmp.eq.s32.totalorder %s15, 0
    %p91 = por %p89, %p90
    %s92 = ssub.s32 %s18, %s27
    %p93 = scmp.eq.s32.totalorder %s92, 0
    %s95 = sadd.s32 %s94, 1
    %s96 = scalar_select %p93, %s94, %s95
    %p99 = pneg %p93
    %p100 = scmp.eq.s32.totalorder %s9, 3
    %p101 = por %p99, %p100
    %p102 = scmp.ne.s32.totalorder %s94, %s97
    %p103 = scmp.eq.s32.totalorder %s9, 0
    %p104 = por %p102, %p103
    %p105 = scmp.ne.s32.totalorder %s94, %s97
    %p106 = scmp.eq.s32.totalorder %s14, 3
    %p107 = por %p105, %p106
    %p108 = scmp.ne.s32.totalorder %s97, %s98
    %p109 = scmp.eq.s32.totalorder %s14, 0
    %p110 = por %p108, %p109
    %p111 = scmp.ne.s32.totalorder %s97, %s98
    %p112 = scmp.eq.s32.totalorder %s15, 3
    %p113 = por %p111, %p112
    %p115 = scmp.ne.s32.totalorder %s98, %s114
    %p116 = scmp.eq.s32.totalorder %s15, 0
    %p117 = por %p115, %p116
    %s118 = ssub.s32 %s16, %s35
    %s119 = ssub.s32 %s17, %s31
    %s120 = sor.u32 %s118, %s119
    %s121 = ssub.s32 %s18, %s27
    %s122 = sor.u32 %s120, %s121
    %p123 = scmp.eq.s32.totalorder %s122, 0
    %s125 = sadd.s32 %s124, 1
    %s126 = scalar_select %p123, %s124, %s125
    %p129 = pneg %p123
    %p130 = scmp.eq.s32.totalorder %s9, 3
    %p131 = por %p129, %p130
    %p132 = scmp.ne.s32.totalorder %s124, %s127
    %p133 = scmp.eq.s32.totalorder %s9, 0
    %p134 = por %p132, %p133
    %p135 = scmp.ne.s32.totalorder %s124, %s127
    %p136 = scmp.eq.s32.totalorder %s14, 3
    %p137 = por %p135, %p136
    %p138 = scmp.ne.s32.totalorder %s127, %s128
    %p139 = scmp.eq.s32.totalorder %s14, 0
    %p140 = por %p138, %p139
    %p141 = scmp.ne.s32.totalorder %s127, %s128
    %p142 = scmp.eq.s32.totalorder %s15, 3
    %p143 = por %p141, %p142
    %p145 = scmp.ne.s32.totalorder %s128, %s144
    %p146 = scmp.eq.s32.totalorder %s15, 0
    %p147 = por %p145, %p146
    %p148 = scmp.le.s32.totalorder 1, %s9
    %p149 = scmp.lt.s32.totalorder %s9, 5
    %p150 = pnand %p148, %p149
    %p151 = pneg %p150
    // Predicated region
    $region9: #{generator_forward.6} parent=5 // pred_check
      _
    $region10: #{generator_forward.6} parent=5 // pred_check_branch
      %153 = sbr.rel (%p150) target = $region12
    $region11: #{generator_forward.6} parent=5 // pred_region
      %s154 = ssub.s32 %s9, 1
      // Predicated region
      $region13: #{generator_forward.6} parent=11 // pred_check
        %p155 = pneg %p110
      $region14: #{generator_forward.6} parent=11 // pred_check_branch
        %157 = sbr.rel (%p155) target = $region16
      $region15: #{generator_forward.6} parent=11 // pred_region
        %p158 = scmp.lt.s32.totalorder %s21, 0
        %s159 = scalar_select %p158, %s21, 0
        %s160 = scalar_lea.vmem %s2, %s159
      $region16: #{generator_forward.6} parent=11 // pred_fallthru
        _
    $region12: #{generator_forward.6} parent=5 // pred_fallthru
      _
    %p161 = scmp.lt.s32.totalorder %s9, 4
    // Predicated region
    $region17: #{generator_forward.6} parent=5 // pred_check
      %p162 = pneg %p161
    $region18: #{generator_forward.6} parent=5 // pred_check_branch
      %164 = sbr.rel (%p162) target = $region20
    $region19: #{generator_forward.6} parent=5 // pred_region
      // Predicated region
      $region21: #{generator_forward.6} parent=19 // pred_check
        %p165 = pneg %p50
      $region22: #{generator_forward.6} parent=19 // pred_check_branch
        %167 = sbr.rel (%p165) target = $region24
      $region23: #{generator_forward.6} parent=19 // pred_region
        %s168 = smul.u32 16, %s17
        %p169 = scmp.lt.s32.totalorder %s16, 3
        %s170 = scalar_select %p169, %s16, 3
        %p171 = scmp.lt.s32.totalorder %s168, 15
        %s172 = scalar_select %p171, %s168, 15
        %s173 = smul.addr %s172, 4
        %s174 = smul.addr %s170, 64
        %s175 = sadd.s32 %s173, %s174
        %s176 = smul.addr %s175, 8
        %s177 = scalar_lea.vmem %s0, %s176
        %s178 = smul.u32 16, %s17
      $region24: #{generator_forward.6} parent=19 // pred_fallthru
        _
      // Predicated region
      $region25: #{generator_forward.6} parent=19 // pred_check
        %p179 = pneg %p78
      $region26: #{generator_forward.6} parent=19 // pred_check_branch
        %181 = sbr.rel (%p179) target = $region28
      $region27: #{generator_forward.6} parent=19 // pred_region
        %p182 = scmp.lt.s32.totalorder %s16, 3
        %s183 = scalar_select %p182, %s16, 3
        %p184 = scmp.lt.s32.totalorder %s18, 0
        %s185 = scalar_select %p184, %s18, 0
        %s186 = smul.addr %s183, 64
        %s187 = sadd.s32 %s185, %s186
        %s188 = smul.addr %s187, 8
        %s189 = scalar_lea.vmem %s1, %s188
      $region28: #{generator_forward.6} parent=19 // pred_fallthru
        _
    $region20: #{generator_forward.6} parent=5 // pred_fallthru
      _
    %p190 = scmp.le.s32.totalorder 1, %s9
    %p191 = scmp.lt.s32.totalorder %s9, 5
    %p192 = pnand %p190, %p191
    %p193 = pneg %p192
    // Predicated region
    $region29: #{generator_forward.6} parent=5 // pred_check
      _
    $region30: #{generator_forward.6} parent=5 // pred_check_branch
      %195 = sbr.rel (%p192) target = $region32
    $region31: #{generator_forward.6} parent=5 // pred_region
      %s196 = ssub.s32 %s9, 1
      %s197 = smul.u32 16, %s20
      %p198 = scmp.lt.s32.totalorder %s19, 3
      %s199 = scalar_select %p198, %s19, 3
      %p200 = scmp.lt.s32.totalorder %s197, 15
      %s201 = scalar_select %p200, %s197, 15
      %s202 = smul.addr %s201, 4
      %s203 = smul.addr %s199, 64
      %s204 = sadd.s32 %s202, %s203
      %s205 = smul.addr %s204, 8
      %s206 = scalar_lea.vmem %s0, %s205
      %p207 = pneg %p56
      %p208 = pneg %p53
      %p209 = scmp.lt.s32.totalorder %s19, 3
      %s210 = scalar_select %p209, %s19, 3
      %p211 = scmp.lt.s32.totalorder %s21, 0
      %s212 = scalar_select %p211, %s21, 0
      %s213 = smul.addr %s210, 64
      %s214 = sadd.s32 %s212, %s213
      %s215 = smul.addr %s214, 8
      %s216 = scalar_lea.vmem %s1, %s215
      %p217 = pneg %p84
      %p218 = pneg %p81
      %p219 = scmp.lt.s32.totalorder %s21, 0
      %s220 = scalar_select %p219, %s21, 0
      %s221 = scalar_lea.vmem %s2, %s220
      %p222 = pneg %p110
      %p223 = pneg %p107
      %p224 = pneg %p140
      %p225 = pneg %p137
      %s226 = smul.u32 16, %s20
      %p227 = scmp.lt.s32.totalorder %s19, 3
      %s228 = scalar_select %p227, %s19, 3
      %p229 = scmp.lt.s32.totalorder %s226, 15
      %s230 = scalar_select %p229, %s226, 15
      %p231 = scmp.lt.s32.totalorder %s21, 0
      %s232 = scalar_select %p231, %s21, 0
      %s233 = sadd.s32 %s232, %s230
      %s234 = smul.addr %s228, 16
      %s235 = sadd.s32 %s233, %s234
      %s236 = smul.addr %s235, 8
      %s237 = scalar_lea.vmem %s3, %s236
      %s238 = smul.u32 16, %s20
      %p239 = scmp.lt.s32.totalorder %s19, 3
      %s240 = scalar_select %p239, %s19, 3
      %p241 = scmp.lt.s32.totalorder %s238, 15
      %s242 = scalar_select %p241, %s238, 15
      %s243 = smul.addr %s242, 4
      %s244 = smul.addr %s240, 64
      %s245 = sadd.s32 %s243, %s244
      %s246 = smul.addr %s245, 8
      %s247 = scalar_lea.vmem %s0, %s246
      %s248 = smul.u32 16, %s20
      %p249 = scmp.lt.s32.totalorder %s19, 3
      %s250 = scalar_select %p249, %s19, 3
      %p251 = scmp.lt.s32.totalorder %s21, 0
      %s252 = scalar_select %p251, %s21, 0
      %s253 = smul.addr %s250, 64
      %s254 = sadd.s32 %s252, %s253
      %s255 = smul.addr %s254, 8
      %s256 = scalar_lea.vmem %s1, %s255
      %p257 = scmp.lt.s32.totalorder %s21, 0
      %s258 = scalar_select %p257, %s21, 0
      %s259 = scalar_lea.vmem %s2, %s258
      %s260 = smul.u32 16, %s20
      %p261 = scmp.lt.s32.totalorder %s19, 3
      %s262 = scalar_select %p261, %s19, 3
      %p263 = scmp.lt.s32.totalorder %s260, 15
      %s264 = scalar_select %p263, %s260, 15
      %p265 = scmp.lt.s32.totalorder %s21, 0
      %s266 = scalar_select %p265, %s21, 0
      %s267 = sadd.s32 %s266, %s264
      %s268 = smul.addr %s262, 16
      %s269 = sadd.s32 %s267, %s268
      %s270 = smul.addr %s269, 8
      %s271 = scalar_lea.vmem %s3, %s270
      %s272 = smul.u32 16, %s20
      %v273 = vld [vmem:[%s247] sm:$0xff]
      %v274 = vld [vmem:[%s247 + $0x8] sm:$0xff]
      %v275 = vld [vmem:[%s247 + $0x10] sm:$0xff]
      %v276 = vld [vmem:[%s247 + $0x18] sm:$0xff]
      %v277 = vld [vmem:[%s247 + $0x20] sm:$0xff]
      %v278 = vld [vmem:[%s247 + $0x28] sm:$0xff]
      %v279 = vld [vmem:[%s247 + $0x30] sm:$0xff]
      %v280 = vld [vmem:[%s247 + $0x38] sm:$0xff]
      %v281 = vld [vmem:[%s247 + $0x40] sm:$0xff]
      %v282 = vld [vmem:[%s247 + $0x48] sm:$0xff]
      %v283 = vld [vmem:[%s247 + $0x50] sm:$0xff]
      %v284 = vld [vmem:[%s247 + $0x58] sm:$0xff]
      %v285 = vld [vmem:[%s247 + $0x60] sm:$0xff]
      %v286 = vld [vmem:[%s247 + $0x68] sm:$0xff]
      %v287 = vld [vmem:[%s247 + $0x70] sm:$0xff]
      %v288 = vld [vmem:[%s247 + $0x78] sm:$0xff]
      %v289 = vld [vmem:[%s247 + $0x80] sm:$0xff]
      %v290 = vld [vmem:[%s247 + $0x88] sm:$0xff]
      %v291 = vld [vmem:[%s247 + $0x90] sm:$0xff]
      %v292 = vld [vmem:[%s247 + $0x98] sm:$0xff]
      %v293 = vld [vmem:[%s247 + $0xa0] sm:$0xff]
      %v294 = vld [vmem:[%s247 + $0xa8] sm:$0xff]
      %v295 = vld [vmem:[%s247 + $0xb0] sm:$0xff]
      %v296 = vld [vmem:[%s247 + $0xb8] sm:$0xff]
      %v297 = vld [vmem:[%s247 + $0xc0] sm:$0xff]
      %v298 = vld [vmem:[%s247 + $0xc8] sm:$0xff]
      %v299 = vld [vmem:[%s247 + $0xd0] sm:$0xff]
      %v300 = vld [vmem:[%s247 + $0xd8] sm:$0xff]
      %v301 = vld [vmem:[%s247 + $0xe0] sm:$0xff]
      %v302 = vld [vmem:[%s247 + $0xe8] sm:$0xff]
      %v303 = vld [vmem:[%s247 + $0xf0] sm:$0xff]
      %v304 = vld [vmem:[%s247 + $0xf8] sm:$0xff]
      %v305 = vld [vmem:[%s247 + $0x100] sm:$0xff]
      %v306 = vld [vmem:[%s247 + $0x108] sm:$0xff]
      %v307 = vld [vmem:[%s247 + $0x110] sm:$0xff]
      %v308 = vld [vmem:[%s247 + $0x118] sm:$0xff]
      %v309 = vld [vmem:[%s247 + $0x120] sm:$0xff]
      %v310 = vld [vmem:[%s247 + $0x128] sm:$0xff]
      %v311 = vld [vmem:[%s247 + $0x130] sm:$0xff]
      %v312 = vld [vmem:[%s247 + $0x138] sm:$0xff]
      %v313 = vld [vmem:[%s247 + $0x140] sm:$0xff]
      %v314 = vld [vmem:[%s247 + $0x148] sm:$0xff]
      %v315 = vld [vmem:[%s247 + $0x150] sm:$0xff]
      %v316 = vld [vmem:[%s247 + $0x158] sm:$0xff]
      %v317 = vld [vmem:[%s247 + $0x160] sm:$0xff]
      %v318 = vld [vmem:[%s247 + $0x168] sm:$0xff]
      %v319 = vld [vmem:[%s247 + $0x170] sm:$0xff]
      %v320 = vld [vmem:[%s247 + $0x178] sm:$0xff]
      %v321 = vld [vmem:[%s247 + $0x180] sm:$0xff]
      %v322 = vld [vmem:[%s247 + $0x188] sm:$0xff]
      %v323 = vld [vmem:[%s247 + $0x190] sm:$0xff]
      %v324 = vld [vmem:[%s247 + $0x198] sm:$0xff]
      %v325 = vld [vmem:[%s247 + $0x1a0] sm:$0xff]
      %v326 = vld [vmem:[%s247 + $0x1a8] sm:$0xff]
      %v327 = vld [vmem:[%s247 + $0x1b0] sm:$0xff]
      %v328 = vld [vmem:[%s247 + $0x1b8] sm:$0xff]
      %v329 = vld [vmem:[%s247 + $0x1c0] sm:$0xff]
      %v330 = vld [vmem:[%s247 + $0x1c8] sm:$0xff]
      %v331 = vld [vmem:[%s247 + $0x1d0] sm:$0xff]
      %v332 = vld [vmem:[%s247 + $0x1d8] sm:$0xff]
      %v333 = vld [vmem:[%s247 + $0x1e0] sm:$0xff]
      %v334 = vld [vmem:[%s247 + $0x1e8] sm:$0xff]
      %v335 = vld [vmem:[%s247 + $0x1f0] sm:$0xff]
      %v336 = vld [vmem:[%s247 + $0x1f8] sm:$0xff]
      %v337 = vld [vmem:[%s256] sm:$0xff]
      %v338 = vld [vmem:[%s256 + $0x8] sm:$0xff]
      %v339 = vld [vmem:[%s256 + $0x10] sm:$0xff]
      %v340 = vld [vmem:[%s256 + $0x18] sm:$0xff]
      %v341 = vld [vmem:[%s256 + $0x20] sm:$0xff]
      %v342 = vld [vmem:[%s256 + $0x28] sm:$0xff]
      %v343 = vld [vmem:[%s256 + $0x30] sm:$0xff]
      %v344 = vld [vmem:[%s256 + $0x38] sm:$0xff]
      %v345 = vld [vmem:[%s256 + $0x40] sm:$0xff]
      %v346 = vld [vmem:[%s256 + $0x48] sm:$0xff]
      %v347 = vld [vmem:[%s256 + $0x50] sm:$0xff]
      %v348 = vld [vmem:[%s256 + $0x58] sm:$0xff]
      %v349 = vld [vmem:[%s256 + $0x60] sm:$0xff]
      %v350 = vld [vmem:[%s256 + $0x68] sm:$0xff]
      %v351 = vld [vmem:[%s256 + $0x70] sm:$0xff]
      %v352 = vld [vmem:[%s256 + $0x78] sm:$0xff]
      %v353 = vld [vmem:[%s256 + $0x80] sm:$0xff]
      %v354 = vld [vmem:[%s256 + $0x88] sm:$0xff]
      %v355 = vld [vmem:[%s256 + $0x90] sm:$0xff]
      %v356 = vld [vmem:[%s256 + $0x98] sm:$0xff]
      %v357 = vld [vmem:[%s256 + $0xa0] sm:$0xff]
      %v358 = vld [vmem:[%s256 + $0xa8] sm:$0xff]
      %v359 = vld [vmem:[%s256 + $0xb0] sm:$0xff]
      %v360 = vld [vmem:[%s256 + $0xb8] sm:$0xff]
      %v361 = vld [vmem:[%s256 + $0xc0] sm:$0xff]
      %v362 = vld [vmem:[%s256 + $0xc8] sm:$0xff]
      %v363 = vld [vmem:[%s256 + $0xd0] sm:$0xff]
      %v364 = vld [vmem:[%s256 + $0xd8] sm:$0xff]
      %v365 = vld [vmem:[%s256 + $0xe0] sm:$0xff]
      %v366 = vld [vmem:[%s256 + $0xe8] sm:$0xff]
      %v367 = vld [vmem:[%s256 + $0xf0] sm:$0xff]
      %v368 = vld [vmem:[%s256 + $0xf8] sm:$0xff]
      %v369 = vld [vmem:[%s256 + $0x100] sm:$0xff]
      %v370 = vld [vmem:[%s256 + $0x108] sm:$0xff]
      %v371 = vld [vmem:[%s256 + $0x110] sm:$0xff]
      %v372 = vld [vmem:[%s256 + $0x118] sm:$0xff]
      %v373 = vld [vmem:[%s256 + $0x120] sm:$0xff]
      %v374 = vld [vmem:[%s256 + $0x128] sm:$0xff]
      %v375 = vld [vmem:[%s256 + $0x130] sm:$0xff]
      %v376 = vld [vmem:[%s256 + $0x138] sm:$0xff]
      %v377 = vld [vmem:[%s256 + $0x140] sm:$0xff]
      %v378 = vld [vmem:[%s256 + $0x148] sm:$0xff]
      %v379 = vld [vmem:[%s256 + $0x150] sm:$0xff]
      %v380 = vld [vmem:[%s256 + $0x158] sm:$0xff]
      %v381 = vld [vmem:[%s256 + $0x160] sm:$0xff]
      %v382 = vld [vmem:[%s256 + $0x168] sm:$0xff]
      %v383 = vld [vmem:[%s256 + $0x170] sm:$0xff]
      %v384 = vld [vmem:[%s256 + $0x178] sm:$0xff]
      %v385 = vld [vmem:[%s256 + $0x180] sm:$0xff]
      %v386 = vld [vmem:[%s256 + $0x188] sm:$0xff]
      %v387 = vld [vmem:[%s256 + $0x190] sm:$0xff]
      %v388 = vld [vmem:[%s256 + $0x198] sm:$0xff]
      %v389 = vld [vmem:[%s256 + $0x1a0] sm:$0xff]
      %v390 = vld [vmem:[%s256 + $0x1a8] sm:$0xff]
      %v391 = vld [vmem:[%s256 + $0x1b0] sm:$0xff]
      %v392 = vld [vmem:[%s256 + $0x1b8] sm:$0xff]
      %v393 = vld [vmem:[%s256 + $0x1c0] sm:$0xff]
      %v394 = vld [vmem:[%s256 + $0x1c8] sm:$0xff]
      %v395 = vld [vmem:[%s256 + $0x1d0] sm:$0xff]
      %v396 = vld [vmem:[%s256 + $0x1d8] sm:$0xff]
      %v397 = vld [vmem:[%s256 + $0x1e0] sm:$0xff]
      %v398 = vld [vmem:[%s256 + $0x1e8] sm:$0xff]
      %v399 = vld [vmem:[%s256 + $0x1f0] sm:$0xff]
      %v400 = vld [vmem:[%s256 + $0x1f8] sm:$0xff]
      %v401 = vld [vmem:[%s259] sm:$0x1]
      %v403 = vlaneseq
      %v404 = vshrl.u32 %v403, 7
      %v405 = vsub.s32 0, %v404
      %v406 = vrot.slane %v401, %v405
      %408 = vmatprep.subr.mxu0 0.0
      %409 = vmatpush1.msra.mxu0 %v337
      %410 = vmatprep.subr.mxu0 0.0
      %411 = vmatpush1.msra.mxu0 %v338
      %412 = vmatprep.subr.mxu0 0.0
      %413 = vmatpush1.msra.mxu0 %v339
      %414 = vmatprep.subr.mxu0 0.0
      %415 = vmatpush1.msra.mxu0 %v340
      %416 = vmatprep.subr.mxu0 0.0
      %417 = vmatpush1.msra.mxu0 %v341
      %418 = vmatprep.subr.mxu0 0.0
      %419 = vmatpush1.msra.mxu0 %v342
      %420 = vmatprep.subr.mxu0 0.0
      %421 = vmatpush1.msra.mxu0 %v343
      %422 = vmatprep.subr.mxu0 0.0
      %423 = vmatpush1.msra.mxu0 %v344
      %424 = vmatprep.subr.mxu0 0.0
      %425 = vmatpush1.msra.mxu0 %v345
      %426 = vmatprep.subr.mxu0 0.0
      %427 = vmatpush1.msra.mxu0 %v346
      %428 = vmatprep.subr.mxu0 0.0
      %429 = vmatpush1.msra.mxu0 %v347
      %430 = vmatprep.subr.mxu0 0.0
      %431 = vmatpush1.msra.mxu0 %v348
      %432 = vmatprep.subr.mxu0 0.0
      %433 = vmatpush1.msra.mxu0 %v349
      %434 = vmatprep.subr.mxu0 0.0
      %435 = vmatpush1.msra.mxu0 %v350
      %436 = vmatprep.subr.mxu0 0.0
      %437 = vmatpush1.msra.mxu0 %v351
      %438 = vmatprep.subr.mxu0 0.0
      %439 = vmatpush1.msra.mxu0 %v352
      %440 = vmatprep.subr.mxu0 0.0
      %441 = vmatpush1.msra.mxu0 %v353
      %442 = vmatprep.subr.mxu0 0.0
      %443 = vmatpush1.msra.mxu0 %v354
      %444 = vmatprep.subr.mxu0 0.0
      %445 = vmatpush1.msra.mxu0 %v355
      %446 = vmatprep.subr.mxu0 0.0
      %447 = vmatpush1.msra.mxu0 %v356
      %448 = vmatprep.subr.mxu0 0.0
      %449 = vmatpush1.msra.mxu0 %v357
      %450 = vmatprep.subr.mxu0 0.0
      %451 = vmatpush1.msra.mxu0 %v358
      %452 = vmatprep.subr.mxu0 0.0
      %453 = vmatpush1.msra.mxu0 %v359
      %454 = vmatprep.subr.mxu0 0.0
      %455 = vmatpush1.msra.mxu0 %v360
      %456 = vmatprep.subr.mxu0 0.0
      %457 = vmatpush1.msra.mxu0 %v361
      %458 = vmatprep.subr.mxu0 0.0
      %459 = vmatpush1.msra.mxu0 %v362
      %460 = vmatprep.subr.mxu0 0.0
      %461 = vmatpush1.msra.mxu0 %v363
      %462 = vmatprep.subr.mxu0 0.0
      %463 = vmatpush1.msra.mxu0 %v364
      %464 = vmatprep.subr.mxu0 0.0
      %465 = vmatpush1.msra.mxu0 %v365
      %466 = vmatprep.subr.mxu0 0.0
      %467 = vmatpush1.msra.mxu0 %v366
      %468 = vmatprep.subr.mxu0 0.0
      %469 = vmatpush1.msra.mxu0 %v367
      %470 = vmatprep.subr.mxu0 0.0
      %471 = vmatpush1.msra.mxu0 %v368
      %472 = vmatprep.mubr.f32.mxu0 %v274
      %473 = vmatmul.mubr.f32.gmra.mrb[0].mxu0 %v273
      %v474 = vpop.f32.mrb[0].mxu0
      %v475 = vadd.f32 %v406, %v474
      %v476 = vpop.f32.mrb[0].mxu0
      %477 = vmatprep.mubr.f32.mxu0 %v278
      %478 = vmatmul.mubr.f32.gmra.mrb[0].mxu0 %v277
      %v479 = vpop.f32.mrb[0].mxu0
      %v480 = vadd.f32 %v406, %v479
      %v481 = vpop.f32.mrb[0].mxu0
      %482 = vmatprep.mubr.f32.mxu0 %v282
      %483 = vmatmul.mubr.f32.gmra.mrb[0].mxu0 %v281
      %v484 = vpop.f32.mrb[0].mxu0
      %v485 = vadd.f32 %v406, %v484
      %v486 = vpop.f32.mrb[0].mxu0
      %487 = vmatprep.mubr.f32.mxu0 %v286
      %488 = vmatmul.mubr.f32.gmra.mrb[0].mxu0 %v285
      %v489 = vpop.f32.mrb[0].mxu0
      %v490 = vadd.f32 %v406, %v489
      %v491 = vpop.f32.mrb[0].mxu0
      %492 = vmatprep.mubr.f32.mxu0 %v290
      %493 = vmatmul.mubr.f32.gmra.mrb[0].mxu0 %v289
      %v494 = vpop.f32.mrb[0].mxu0
      %v495 = vadd.f32 %v406, %v494
      %v496 = vpop.f32.mrb[0].mxu0
      %497 = vmatprep.mubr.f32.mxu0 %v294
      %498 = vmatmul.mubr.f32.gmra.mrb[0].mxu0 %v293
      %v499 = vpop.f32.mrb[0].mxu0
      %v500 = vadd.f32 %v406, %v499
      %v501 = vpop.f32.mrb[0].mxu0
      %502 = vmatprep.mubr.f32.mxu0 %v298
      %503 = vmatmul.mubr.f32.gmra.mrb[0].mxu0 %v297
      %v504 = vpop.f32.mrb[0].mxu0
      %v505 = vadd.f32 %v406, %v504
      %v506 = vpop.f32.mrb[0].mxu0
      %507 = vmatprep.mubr.f32.mxu0 %v302
      %508 = vmatmul.mubr.f32.gmra.mrb[0].mxu0 %v301
      %v509 = vpop.f32.mrb[0].mxu0
      %v510 = vadd.f32 %v406, %v509
      %v511 = vpop.f32.mrb[0].mxu0
      %512 = vmatprep.mubr.f32.mxu0 %v306
      %513 = vmatmul.mubr.f32.gmra.mrb[0].mxu0 %v305
      %v514 = vpop.f32.mrb[0].mxu0
      %v515 = vadd.f32 %v406, %v514
      %v516 = vpop.f32.mrb[0].mxu0
      %517 = vmatprep.mubr.f32.mxu0 %v310
      %518 = vmatmul.mubr.f32.gmra.mrb[0].mxu0 %v309
      %v519 = vpop.f32.mrb[0].mxu0
      %v520 = vadd.f32 %v406, %v519
      %v521 = vpop.f32.mrb[0].mxu0
      %522 = vmatprep.mubr.f32.mxu0 %v314
      %523 = vmatmul.mubr.f32.gmra.mrb[0].mxu0 %v313
      %v524 = vpop.f32.mrb[0].mxu0
      %v525 = vadd.f32 %v406, %v524
      %v526 = vpop.f32.mrb[0].mxu0
      %527 = vmatprep.mubr.f32.mxu0 %v318
      %528 = vmatmul.mubr.f32.gmra.mrb[0].mxu0 %v317
      %v529 = vpop.f32.mrb[0].mxu0
      %v530 = vadd.f32 %v406, %v529
      %v531 = vpop.f32.mrb[0].mxu0
      %532 = vmatprep.mubr.f32.mxu0 %v322
      %533 = vmatmul.mubr.f32.gmra.mrb[0].mxu0 %v321
      %v534 = vpop.f32.mrb[0].mxu0
      %v535 = vadd.f32 %v406, %v534
      %v536 = vpop.f32.mrb[0].mxu0
      %537 = vmatprep.mubr.f32.mxu0 %v326
      %538 = vmatmul.mubr.f32.gmra.mrb[0].mxu0 %v325
      %v539 = vpop.f32.mrb[0].mxu0
      %v540 = vadd.f32 %v406, %v539
      %v541 = vpop.f32.mrb[0].mxu0
      %542 = vmatprep.mubr.f32.mxu0 %v330
      %543 = vmatmul.mubr.f32.gmra.mrb[0].mxu0 %v329
      %v544 = vpop.f32.mrb[0].mxu0
      %v545 = vadd.f32 %v406, %v544
      %v546 = vpop.f32.mrb[0].mxu0
      %547 = vmatprep.mubr.f32.mxu0 %v334
      %548 = vmatmul.mubr.f32.gmra.mrb[0].mxu0 %v333
      %v549 = vpop.f32.mrb[0].mxu0
      %v550 = vadd.f32 %v406, %v549
      %v551 = vpop.f32.mrb[0].mxu0
      %552 = vdwg.mxu0
      %553 = vmatprep.subr.mxu0 0.0
      %554 = vmatpush1.msra.mxu0 %v369
      %555 = vmatprep.subr.mxu0 0.0
      %556 = vmatpush1.msra.mxu0 %v370
      %557 = vmatprep.subr.mxu0 0.0
      %558 = vmatpush1.msra.mxu0 %v371
      %559 = vmatprep.subr.mxu0 0.0
      %560 = vmatpush1.msra.mxu0 %v372
      %561 = vmatprep.subr.mxu0 0.0
      %562 = vmatpush1.msra.mxu0 %v373
      %563 = vmatprep.subr.mxu0 0.0
      %564 = vmatpush1.msra.mxu0 %v374
      %565 = vmatprep.subr.mxu0 0.0
      %566 = vmatpush1.msra.mxu0 %v375
      %567 = vmatprep.subr.mxu0 0.0
      %568 = vmatpush1.msra.mxu0 %v376
      %569 = vmatprep.subr.mxu0 0.0
      %570 = vmatpush1.msra.mxu0 %v377
      %571 = vmatprep.subr.mxu0 0.0
      %572 = vmatpush1.msra.mxu0 %v378
      %573 = vmatprep.subr.mxu0 0.0
      %574 = vmatpush1.msra.mxu0 %v379
      %575 = vmatprep.subr.mxu0 0.0
      %576 = vmatpush1.msra.mxu0 %v380
      %577 = vmatprep.subr.mxu0 0.0
      %578 = vmatpush1.msra.mxu0 %v381
      %579 = vmatprep.subr.mxu0 0.0
      %580 = vmatpush1.msra.mxu0 %v382
      %581 = vmatprep.subr.mxu0 0.0
      %582 = vmatpush1.msra.mxu0 %v383
      %583 = vmatprep.subr.mxu0 0.0
      %584 = vmatpush1.msra.mxu0 %v384
      %585 = vmatprep.subr.mxu0 0.0
      %586 = vmatpush1.msra.mxu0 %v385
      %587 = vmatprep.subr.mxu0 0.0
      %588 = vmatpush1.msra.mxu0 %v386
      %589 = vmatprep.subr.mxu0 0.0
      %590 = vmatpush1.msra.mxu0 %v387
      %591 = vmatprep.subr.mxu0 0.0
      %592 = vmatpush1.msra.mxu0 %v388
      %593 = vmatprep.subr.mxu0 0.0
      %594 = vmatpush1.msra.mxu0 %v389
      %595 = vmatprep.subr.mxu0 0.0
      %596 = vmatpush1.msra.mxu0 %v390
      %597 = vmatprep.subr.mxu0 0.0
      %598 = vmatpush1.msra.mxu0 %v391
      %599 = vmatprep.subr.mxu0 0.0
      %600 = vmatpush1.msra.mxu0 %v392
      %601 = vmatprep.subr.mxu0 0.0
      %602 = vmatpush1.msra.mxu0 %v393
      %603 = vmatprep.subr.mxu0 0.0
      %604 = vmatpush1.msra.mxu0 %v394
      %605 = vmatprep.subr.mxu0 0.0
      %606 = vmatpush1.msra.mxu0 %v395
      %607 = vmatprep.subr.mxu0 0.0
      %608 = vmatpush1.msra.mxu0 %v396
      %609 = vmatprep.subr.mxu0 0.0
      %610 = vmatpush1.msra.mxu0 %v397
      %611 = vmatprep.subr.mxu0 0.0
      %612 = vmatpush1.msra.mxu0 %v398
      %613 = vmatprep.subr.mxu0 0.0
      %614 = vmatpush1.msra.mxu0 %v399
      %615 = vmatprep.subr.mxu0 0.0
      %616 = vmatpush1.msra.mxu0 %v400
      %617 = vmatprep.mubr.f32.mxu0 %v276
      %618 = vmatmul.mubr.f32.gmra.mrb[0].mxu0 %v275
      %v619 = vpop.f32.mrb[0].mxu0
      %v620 = vadd.f32 %v475, %v619
      %v621 = vpop.f32.mrb[0].mxu0
      %622 = vmatprep.mubr.f32.mxu0 %v280
      %623 = vmatmul.mubr.f32.gmra.mrb[0].mxu0 %v279
      %v624 = vpop.f32.mrb[0].mxu0
      %v625 = vadd.f32 %v480, %v624
      %v626 = vpop.f32.mrb[0].mxu0
      %627 = vmatprep.mubr.f32.mxu0 %v284
      %628 = vmatmul.mubr.f32.gmra.mrb[0].mxu0 %v283
      %v629 = vpop.f32.mrb[0].mxu0
      %v630 = vadd.f32 %v485, %v629
      %v631 = vpop.f32.mrb[0].mxu0
      %632 = vmatprep.mubr.f32.mxu0 %v288
      %633 = vmatmul.mubr.f32.gmra.mrb[0].mxu0 %v287
      %v634 = vpop.f32.mrb[0].mxu0
      %v635 = vadd.f32 %v490, %v634
      %v636 = vpop.f32.mrb[0].mxu0
      %637 = vmatprep.mubr.f32.mxu0 %v292
      %638 = vmatmul.mubr.f32.gmra.mrb[0].mxu0 %v291
      %v639 = vpop.f32.mrb[0].mxu0
      %v640 = vadd.f32 %v495, %v639
      %v641 = vpop.f32.mrb[0].mxu0
      %642 = vmatprep.mubr.f32.mxu0 %v296
      %643 = vmatmul.mubr.f32.gmra.mrb[0].mxu0 %v295
      %v644 = vpop.f32.mrb[0].mxu0
      %v645 = vadd.f32 %v500, %v644
      %v646 = vpop.f32.mrb[0].mxu0
      %647 = vmatprep.mubr.f32.mxu0 %v300
      %648 = vmatmul.mubr.f32.gmra.mrb[0].mxu0 %v299
      %v649 = vpop.f32.mrb[0].mxu0
      %v650 = vadd.f32 %v505, %v649
      %v651 = vpop.f32.mrb[0].mxu0
      %652 = vmatprep.mubr.f32.mxu0 %v304
      %653 = vmatmul.mubr.f32.gmra.mrb[0].mxu0 %v303
      %v654 = vpop.f32.mrb[0].mxu0
      %v655 = vadd.f32 %v510, %v654
      %v656 = vpop.f32.mrb[0].mxu0
      %657 = vmatprep.mubr.f32.mxu0 %v308
      %658 = vmatmul.mubr.f32.gmra.mrb[0].mxu0 %v307
      %v659 = vpop.f32.mrb[0].mxu0
      %v660 = vadd.f32 %v515, %v659
      %v661 = vpop.f32.mrb[0].mxu0
      %662 = vmatprep.mubr.f32.mxu0 %v312
      %663 = vmatmul.mubr.f32.gmra.mrb[0].mxu0 %v311
      %v664 = vpop.f32.mrb[0].mxu0
      %v665 = vadd.f32 %v520, %v664
      %v666 = vpop.f32.mrb[0].mxu0
      %667 = vmatprep.mubr.f32.mxu0 %v316
      %668 = vmatmul.mubr.f32.gmra.mrb[0].mxu0 %v315
      %v669 = vpop.f32.mrb[0].mxu0
      %v670 = vadd.f32 %v525, %v669
      %v671 = vpop.f32.mrb[0].mxu0
      %672 = vmatprep.mubr.f32.mxu0 %v320
      %673 = vmatmul.mubr.f32.gmra.mrb[0].mxu0 %v319
      %v674 = vpop.f32.mrb[0].mxu0
      %v675 = vadd.f32 %v530, %v674
      %v676 = vpop.f32.mrb[0].mxu0
      %677 = vmatprep.mubr.f32.mxu0 %v324
      %678 = vmatmul.mubr.f32.gmra.mrb[0].mxu0 %v323
      %v679 = vpop.f32.mrb[0].mxu0
      %v680 = vadd.f32 %v535, %v679
      %v681 = vpop.f32.mrb[0].mxu0
      %682 = vmatprep.mubr.f32.mxu0 %v328
      %683 = vmatmul.mubr.f32.gmra.mrb[0].mxu0 %v327
      %v684 = vpop.f32.mrb[0].mxu0
      %v685 = vadd.f32 %v540, %v684
      %v686 = vpop.f32.mrb[0].mxu0
      %687 = vmatprep.mubr.f32.mxu0 %v332
      %688 = vmatmul.mubr.f32.gmra.mrb[0].mxu0 %v331
      %v689 = vpop.f32.mrb[0].mxu0
      %v690 = vadd.f32 %v545, %v689
      %v691 = vpop.f32.mrb[0].mxu0
      %692 = vmatprep.mubr.f32.mxu0 %v336
      %693 = vmatmul.mubr.f32.gmra.mrb[0].mxu0 %v335
      %v694 = vpop.f32.mrb[0].mxu0
      %v695 = vadd.f32 %v550, %v694
      %v696 = vpop.f32.mrb[0].mxu0
      %697 = vdwg.mxu0
      %v698 = vmax.f32 %v620, 0.0
      %v699 = vmax.f32 %v625, 0.0
      %v700 = vmax.f32 %v630, 0.0
      %v701 = vmax.f32 %v635, 0.0
      %v702 = vmax.f32 %v640, 0.0
      %v703 = vmax.f32 %v645, 0.0
      %v704 = vmax.f32 %v650, 0.0
      %v705 = vmax.f32 %v655, 0.0
      %v706 = vmax.f32 %v660, 0.0
      %v707 = vmax.f32 %v665, 0.0
      %v708 = vmax.f32 %v670, 0.0
      %v709 = vmax.f32 %v675, 0.0
      %v710 = vmax.f32 %v680, 0.0
      %v711 = vmax.f32 %v685, 0.0
      %v712 = vmax.f32 %v690, 0.0
      %v713 = vmax.f32 %v695, 0.0
      %714 = vst [vmem:[%s271] sm:$0xff] %v698
      %715 = vst [vmem:[%s271 + $0x8] sm:$0xff] %v699
      %716 = vst [vmem:[%s271 + $0x10] sm:$0xff] %v700
      %717 = vst [vmem:[%s271 + $0x18] sm:$0xff] %v701
      %718 = vst [vmem:[%s271 + $0x20] sm:$0xff] %v702
      %719 = vst [vmem:[%s271 + $0x28] sm:$0xff] %v703
      %720 = vst [vmem:[%s271 + $0x30] sm:$0xff] %v704
      %721 = vst [vmem:[%s271 + $0x38] sm:$0xff] %v705
      %722 = vst [vmem:[%s271 + $0x40] sm:$0xff] %v706
      %723 = vst [vmem:[%s271 + $0x48] sm:$0xff] %v707
      %724 = vst [vmem:[%s271 + $0x50] sm:$0xff] %v708
      %725 = vst [vmem:[%s271 + $0x58] sm:$0xff] %v709
      %726 = vst [vmem:[%s271 + $0x60] sm:$0xff] %v710
      %727 = vst [vmem:[%s271 + $0x68] sm:$0xff] %v711
      %728 = vst [vmem:[%s271 + $0x70] sm:$0xff] %v712
      %729 = vst [vmem:[%s271 + $0x78] sm:$0xff] %v713
      %s730 = smul.u32 16, %s20
      %p731 = scmp.lt.s32.totalorder %s19, 3
      %s732 = scalar_select %p731, %s19, 3
      %p733 = scmp.lt.s32.totalorder %s730, 15
      %s734 = scalar_select %p733, %s730, 15
      %p735 = scmp.lt.s32.totalorder %s21, 0
      %s736 = scalar_select %p735, %s21, 0
      %s737 = sadd.s32 %s736, %s734
      %s738 = smul.addr %s732, 16
      %s739 = sadd.s32 %s737, %s738
      %s740 = smul.addr %s739, 8
      %s741 = scalar_lea.vmem %s3, %s740
      // Predicated region
      $region33: #{generator_forward.6} parent=31 // pred_check
        %p742 = pneg %p137
      $region34: #{generator_forward.6} parent=31 // pred_check_branch
        %744 = sbr.rel (%p742) target = $region36
      $region35: #{generator_forward.6} parent=31 // pred_region
        %s745 = smul.u32 16, %s20
      $region36: #{generator_forward.6} parent=31 // pred_fallthru
        _
    $region32: #{generator_forward.6} parent=5 // pred_fallthru
      _
    %p746 = scmp.le.s32.totalorder 2, %s9
    // Predicated region
    $region37: #{generator_forward.6} parent=5 // pred_check
      %p747 = pneg %p746
    $region38: #{generator_forward.6} parent=5 // pred_check_branch
      %749 = sbr.rel (%p747) target = $region40
    $region39: #{generator_forward.6} parent=5 // pred_region
      %s750 = ssub.s32 %s9, 2
      // Predicated region
      $region41: #{generator_forward.6} parent=39 // pred_check
        %p751 = pneg %p143
      $region42: #{generator_forward.6} parent=39 // pred_check_branch
        %753 = sbr.rel (%p751) target = $region44
      $region43: #{generator_forward.6} parent=39 // pred_region
        %s754 = smul.u32 16, %s23
        %p755 = scmp.lt.s32.totalorder %s22, 3
        %s756 = scalar_select %p755, %s22, 3
        %p757 = scmp.lt.s32.totalorder %s754, 15
        %s758 = scalar_select %p757, %s754, 15
        %p759 = scmp.lt.s32.totalorder %s24, 0
        %s760 = scalar_select %p759, %s24, 0
        %s761 = sadd.s32 %s760, %s758
        %s762 = smul.addr %s756, 16
        %s763 = sadd.s32 %s761, %s762
        %s764 = smul.addr %s763, 8
        %s765 = scalar_lea.vmem %s3, %s764
      $region44: #{generator_forward.6} parent=39 // pred_fallthru
        _
    $region40: #{generator_forward.6} parent=5 // pred_fallthru
      _
  $region6: #{generator_forward.6} parent=0 // loop_footer
    %s13 = sadd.s32 1, %s9
  $region7: #{generator_forward.6} parent=0 // loop_footer_branch
    %8 = sbr.rel target = $region3
  $region8: #{generator_forward.6} parent=0 // loop_exit
    _

// kernel: generator_forward.7
$region0: #{generator_forward.7}
  #allocation0 [shape = 'u32[]', space=smem, size = 0x4, offset = 0x4, fixed_abs, tag = 'smem constant byte address 0x4 - core index']
  #allocation1 [shape = 'u32[144,128]{1,0:T(1,128)}', space=vmem, size = 0x12000, scoped, tag = 'internal scratch']
  %s0 = inlined_call_operand.vmem [shape: f32[4,512,256], index: 0, kind: input, shape index: {}]
  %s1 = inlined_call_operand.vmem [shape: f32[4,256,128], index: 1, kind: input, shape index: {}]
  %s2 = inlined_call_operand.vmem [shape: f32[1,128], index: 2, kind: input, shape index: {}]
  %s3 = inlined_call_operand.vmem [shape: f32[4,512,128], index: 3, kind: output, shape index: {}]
  %s4 = sld [smem:[#allocation0]]
  $region45: #{generator_forward.7} parent=0
    _
  %s6 = ssub.s32 1, %s4
  %s7 = scalar_select 0, %s6, %s4
  loop: start=0, step=1, limit=6
  $region2: #{generator_forward.7} parent=0 // loop_pre_header
    _
  $region3: #{generator_forward.7} parent=0 // loop_header
    %s9 = sphi 0, %s13
    %p10 = scmp.ge.s32.totalorder %s9, 6
    %s16 = sphi 0, %s35
    %s17 = sphi 0, %s31
    %s18 = sphi 0, %s27
    %s19 = sphi 0, %s16
    %s20 = sphi 0, %s17
    %s21 = sphi 0, %s18
    %s22 = sphi 0, %s19
    %s23 = sphi 0, %s20
    %s24 = sphi 0, %s21
    %s40 = sphi 0, %s42
    %s43 = sphi 0, %s40
    %s44 = sphi 0, %s43
    %s60 = sphi 0, %s44
    %s68 = sphi 0, %s70
    %s71 = sphi 0, %s68
    %s72 = sphi 0, %s71
    %s88 = sphi 0, %s72
    %s94 = sphi 0, %s96
    %s97 = sphi 0, %s94
    %s98 = sphi 0, %s97
    %s114 = sphi 0, %s98
    %s124 = sphi 0, %s126
    %s127 = sphi 0, %s124
    %s128 = sphi 0, %s127
    %s144 = sphi 0, %s128
  $region4: #{generator_forward.7} parent=0 // loop_header_branch
    %12 = sbr.rel (%p10) target = $region8
  $region5: #{generator_forward.7} parent=0 // loop_body
    %s14 = ssub.s32 %s9, 1
    %s15 = ssub.s32 %s9, 2
    %s25 = sadd.s32 1, %s18
    %p26 = scmp.ge.s32.totalorder %s25, 1
    %s27 = scalar_select %p26, 0, %s25
    %s28 = sadd.s32 1, %s17
    %s29 = scalar_select %p26, %s28, %s17
    %p30 = scmp.ge.s32.totalorder %s29, 1
    %s31 = scalar_select %p30, 0, %s29
    %s32 = sadd.s32 1, %s16
    %s33 = scalar_select %p30, %s32, %s16
    %p34 = scmp.ge.s32.totalorder %s33, 4
    %s35 = scalar_select %p34, 0, %s33
    %s36 = ssub.s32 %s16, %s35
    %s37 = ssub.s32 %s17, %s31
    %s38 = sor.u32 %s36, %s37
    %p39 = scmp.eq.s32.totalorder %s38, 0
    %s41 = sadd.s32 %s40, 1
    %s42 = scalar_select %p39, %s40, %s41
    %p45 = pneg %p39
    %p46 = scmp.eq.s32.totalorder %s9, 3
    %p47 = por %p45, %p46
    %p48 = scmp.ne.s32.totalorder %s40, %s43
    %p49 = scmp.eq.s32.totalorder %s9, 0
    %p50 = por %p48, %p49
    %p51 = scmp.ne.s32.totalorder %s40, %s43
    %p52 = scmp.eq.s32.totalorder %s14, 3
    %p53 = por %p51, %p52
    %p54 = scmp.ne.s32.totalorder %s43, %s44
    %p55 = scmp.eq.s32.totalorder %s14, 0
    %p56 = por %p54, %p55
    %p57 = scmp.ne.s32.totalorder %s43, %s44
    %p58 = scmp.eq.s32.totalorder %s15, 3
    %p59 = por %p57, %p58
    %p61 = scmp.ne.s32.totalorder %s44, %s60
    %p62 = scmp.eq.s32.totalorder %s15, 0
    %p63 = por %p61, %p62
    %s64 = ssub.s32 %s16, %s35
    %s65 = ssub.s32 %s18, %s27
    %s66 = sor.u32 %s64, %s65
    %p67 = scmp.eq.s32.totalorder %s66, 0
    %s69 = sadd.s32 %s68, 1
    %s70 = scalar_select %p67, %s68, %s69
    %p73 = pneg %p67
    %p74 = scmp.eq.s32.totalorder %s9, 3
    %p75 = por %p73, %p74
    %p76 = scmp.ne.s32.totalorder %s68, %s71
    %p77 = scmp.eq.s32.totalorder %s9, 0
    %p78 = por %p76, %p77
    %p79 = scmp.ne.s32.totalorder %s68, %s71
    %p80 = scmp.eq.s32.totalorder %s14, 3
    %p81 = por %p79, %p80
    %p82 = scmp.ne.s32.totalorder %s71, %s72
    %p83 = scmp.eq.s32.totalorder %s14, 0
    %p84 = por %p82, %p83
    %p85 = scmp.ne.s32.totalorder %s71, %s72
    %p86 = scmp.eq.s32.totalorder %s15, 3
    %p87 = por %p85, %p86
    %p89 = scmp.ne.s32.totalorder %s72, %s88
    %p90 = scmp.eq.s32.totalorder %s15, 0
    %p91 = por %p89, %p90
    %s92 = ssub.s32 %s18, %s27
    %p93 = scmp.eq.s32.totalorder %s92, 0
    %s95 = sadd.s32 %s94, 1
    %s96 = scalar_select %p93, %s94, %s95
    %p99 = pneg %p93
    %p100 = scmp.eq.s32.totalorder %s9, 3
    %p101 = por %p99, %p100
    %p102 = scmp.ne.s32.totalorder %s94, %s97
    %p103 = scmp.eq.s32.totalorder %s9, 0
    %p104 = por %p102, %p103
    %p105 = scmp.ne.s32.totalorder %s94, %s97
    %p106 = scmp.eq.s32.totalorder %s14, 3
    %p107 = por %p105, %p106
    %p108 = scmp.ne.s32.totalorder %s97, %s98
    %p109 = scmp.eq.s32.totalorder %s14, 0
    %p110 = por %p108, %p109
    %p111 = scmp.ne.s32.totalorder %s97, %s98
    %p112 = scmp.eq.s32.totalorder %s15, 3
    %p113 = por %p111, %p112
    %p115 = scmp.ne.s32.totalorder %s98, %s114
    %p116 = scmp.eq.s32.totalorder %s15, 0
    %p117 = por %p115, %p116
    %s118 = ssub.s32 %s16, %s35
    %s119 = ssub.s32 %s17, %s31
    %s120 = sor.u32 %s118, %s119
    %s121 = ssub.s32 %s18, %s27
    %s122 = sor.u32 %s120, %s121
    %p123 = scmp.eq.s32.totalorder %s122, 0
    %s125 = sadd.s32 %s124, 1
    %s126 = scalar_select %p123, %s124, %s125
    %p129 = pneg %p123
    %p130 = scmp.eq.s32.totalorder %s9, 3
    %p131 = por %p129, %p130
    %p132 = scmp.ne.s32.totalorder %s124, %s127
    %p133 = scmp.eq.s32.totalorder %s9, 0
    %p134 = por %p132, %p133
    %p135 = scmp.ne.s32.totalorder %s124, %s127
    %p136 = scmp.eq.s32.totalorder %s14, 3
    %p137 = por %p135, %p136
    %p138 = scmp.ne.s32.totalorder %s127, %s128
    %p139 = scmp.eq.s32.totalorder %s14, 0
    %p140 = por %p138, %p139
    %p141 = scmp.ne.s32.totalorder %s127, %s128
    %p142 = scmp.eq.s32.totalorder %s15, 3
    %p143 = por %p141, %p142
    %p145 = scmp.ne.s32.totalorder %s128, %s144
    %p146 = scmp.eq.s32.totalorder %s15, 0
    %p147 = por %p145, %p146
    %p148 = scmp.le.s32.totalorder 1, %s9
    %p149 = scmp.lt.s32.totalorder %s9, 5
    %p150 = pnand %p148, %p149
    %p151 = pneg %p150
    // Predicated region
    $region9: #{generator_forward.7} parent=5 // pred_check
      _
    $region10: #{generator_forward.7} parent=5 // pred_check_branch
      %153 = sbr.rel (%p150) target = $region12
    $region11: #{generator_forward.7} parent=5 // pred_region
      %s154 = ssub.s32 %s9, 1
      // Predicated region
      $region13: #{generator_forward.7} parent=11 // pred_check
        %p155 = pneg %p110
      $region14: #{generator_forward.7} parent=11 // pred_check_branch
        %157 = sbr.rel (%p155) target = $region16
      $region15: #{generator_forward.7} parent=11 // pred_region
        %p158 = scmp.lt.s32.totalorder %s21, 0
        %s159 = scalar_select %p158, %s21, 0
        %s160 = scalar_lea.vmem %s2, %s159
      $region16: #{generator_forward.7} parent=11 // pred_fallthru
        _
    $region12: #{generator_forward.7} parent=5 // pred_fallthru
      _
    %p161 = scmp.lt.s32.totalorder %s9, 4
    // Predicated region
    $region17: #{generator_forward.7} parent=5 // pred_check
      %p162 = pneg %p161
    $region18: #{generator_forward.7} parent=5 // pred_check_branch
      %164 = sbr.rel (%p162) target = $region20
    $region19: #{generator_forward.7} parent=5 // pred_region
      // Predicated region
      $region21: #{generator_forward.7} parent=19 // pred_check
        %p165 = pneg %p50
      $region22: #{generator_forward.7} parent=19 // pred_check_branch
        %167 = sbr.rel (%p165) target = $region24
      $region23: #{generator_forward.7} parent=19 // pred_region
        %s168 = smul.u32 64, %s17
        %p169 = scmp.lt.s32.totalorder %s16, 3
        %s170 = scalar_select %p169, %s16, 3
        %p171 = scmp.lt.s32.totalorder %s168, 63
        %s172 = scalar_select %p171, %s168, 63
        %s173 = smul.addr %s172, 2
        %s174 = smul.addr %s170, 128
        %s175 = sadd.s32 %s173, %s174
        %s176 = smul.addr %s175, 8
        %s177 = scalar_lea.vmem %s0, %s176
        %s178 = smul.u32 64, %s17
      $region24: #{generator_forward.7} parent=19 // pred_fallthru
        _
      // Predicated region
      $region25: #{generator_forward.7} parent=19 // pred_check
        %p179 = pneg %p78
      $region26: #{generator_forward.7} parent=19 // pred_check_branch
        %181 = sbr.rel (%p179) target = $region28
      $region27: #{generator_forward.7} parent=19 // pred_region
        %p182 = scmp.lt.s32.totalorder %s16, 3
        %s183 = scalar_select %p182, %s16, 3
        %p184 = scmp.lt.s32.totalorder %s18, 0
        %s185 = scalar_select %p184, %s18, 0
        %s186 = smul.addr %s183, 32
        %s187 = sadd.s32 %s185, %s186
        %s188 = smul.addr %s187, 8
        %s189 = scalar_lea.vmem %s1, %s188
      $region28: #{generator_forward.7} parent=19 // pred_fallthru
        _
    $region20: #{generator_forward.7} parent=5 // pred_fallthru
      _
    %p190 = scmp.le.s32.totalorder 1, %s9
    %p191 = scmp.lt.s32.totalorder %s9, 5
    %p192 = pnand %p190, %p191
    %p193 = pneg %p192
    // Predicated region
    $region29: #{generator_forward.7} parent=5 // pred_check
      _
    $region30: #{generator_forward.7} parent=5 // pred_check_branch
      %195 = sbr.rel (%p192) target = $region32
    $region31: #{generator_forward.7} parent=5 // pred_region
      %s196 = ssub.s32 %s9, 1
      %s197 = smul.u32 64, %s20
      %p198 = scmp.lt.s32.totalorder %s19, 3
      %s199 = scalar_select %p198, %s19, 3
      %p200 = scmp.lt.s32.totalorder %s197, 63
      %s201 = scalar_select %p200, %s197, 63
      %s202 = smul.addr %s201, 2
      %s203 = smul.addr %s199, 128
      %s204 = sadd.s32 %s202, %s203
      %s205 = smul.addr %s204, 8
      %s206 = scalar_lea.vmem %s0, %s205
      %p207 = pneg %p56
      %p208 = pneg %p53
      %p209 = scmp.lt.s32.totalorder %s19, 3
      %s210 = scalar_select %p209, %s19, 3
      %p211 = scmp.lt.s32.totalorder %s21, 0
      %s212 = scalar_select %p211, %s21, 0
      %s213 = smul.addr %s210, 32
      %s214 = sadd.s32 %s212, %s213
      %s215 = smul.addr %s214, 8
      %s216 = scalar_lea.vmem %s1, %s215
      %p217 = pneg %p84
      %p218 = pneg %p81
      %p219 = scmp.lt.s32.totalorder %s21, 0
      %s220 = scalar_select %p219, %s21, 0
      %s221 = scalar_lea.vmem %s2, %s220
      %p222 = pneg %p110
      %p223 = pneg %p107
      %p224 = pneg %p140
      %p225 = pneg %p137
      %s226 = smul.u32 64, %s20
      %p227 = scmp.lt.s32.totalorder %s19, 3
      %s228 = scalar_select %p227, %s19, 3
      %p229 = scmp.lt.s32.totalorder %s226, 63
      %s230 = scalar_select %p229, %s226, 63
      %p231 = scmp.lt.s32.totalorder %s21, 0
      %s232 = scalar_select %p231, %s21, 0
      %s233 = sadd.s32 %s232, %s230
      %s234 = smul.addr %s228, 64
      %s235 = sadd.s32 %s233, %s234
      %s236 = smul.addr %s235, 8
      %s237 = scalar_lea.vmem %s3, %s236
      %s238 = smul.u32 64, %s20
      %p239 = scmp.lt.s32.totalorder %s19, 3
      %s240 = scalar_select %p239, %s19, 3
      %p241 = scmp.lt.s32.totalorder %s238, 63
      %s242 = scalar_select %p241, %s238, 63
      %s243 = smul.addr %s242, 2
      %s244 = smul.addr %s240, 128
      %s245 = sadd.s32 %s243, %s244
      %s246 = smul.addr %s245, 8
      %s247 = scalar_lea.vmem %s0, %s246
      %s248 = smul.u32 64, %s20
      %p249 = scmp.lt.s32.totalorder %s19, 3
      %s250 = scalar_select %p249, %s19, 3
      %p251 = scmp.lt.s32.totalorder %s21, 0
      %s252 = scalar_select %p251, %s21, 0
      %s253 = smul.addr %s250, 32
      %s254 = sadd.s32 %s252, %s253
      %s255 = smul.addr %s254, 8
      %s256 = scalar_lea.vmem %s1, %s255
      %p257 = scmp.lt.s32.totalorder %s21, 0
      %s258 = scalar_select %p257, %s21, 0
      %s259 = scalar_lea.vmem %s2, %s258
      %s260 = smul.u32 64, %s20
      %p261 = scmp.lt.s32.totalorder %s19, 3
      %s262 = scalar_select %p261, %s19, 3
      %p263 = scmp.lt.s32.totalorder %s260, 63
      %s264 = scalar_select %p263, %s260, 63
      %p265 = scmp.lt.s32.totalorder %s21, 0
      %s266 = scalar_select %p265, %s21, 0
      %s267 = sadd.s32 %s266, %s264
      %s268 = smul.addr %s262, 64
      %s269 = sadd.s32 %s267, %s268
      %s270 = smul.addr %s269, 8
      %s271 = scalar_lea.vmem %s3, %s270
      %s272 = smul.u32 64, %s20
      %v273 = vld [vmem:[%s247] sm:$0xff]
      %v274 = vld [vmem:[%s247 + $0x8] sm:$0xff]
      %v275 = vld [vmem:[%s247 + $0x10] sm:$0xff]
      %v276 = vld [vmem:[%s247 + $0x18] sm:$0xff]
      %v277 = vld [vmem:[%s247 + $0x20] sm:$0xff]
      %v278 = vld [vmem:[%s247 + $0x28] sm:$0xff]
      %v279 = vld [vmem:[%s247 + $0x30] sm:$0xff]
      %v280 = vld [vmem:[%s247 + $0x38] sm:$0xff]
      %v281 = vld [vmem:[%s247 + $0x40] sm:$0xff]
      %v282 = vld [vmem:[%s247 + $0x48] sm:$0xff]
      %v283 = vld [vmem:[%s247 + $0x50] sm:$0xff]
      %v284 = vld [vmem:[%s247 + $0x58] sm:$0xff]
      %v285 = vld [vmem:[%s247 + $0x60] sm:$0xff]
      %v286 = vld [vmem:[%s247 + $0x68] sm:$0xff]
      %v287 = vld [vmem:[%s247 + $0x70] sm:$0xff]
      %v288 = vld [vmem:[%s247 + $0x78] sm:$0xff]
      %v289 = vld [vmem:[%s247 + $0x80] sm:$0xff]
      %v290 = vld [vmem:[%s247 + $0x88] sm:$0xff]
      %v291 = vld [vmem:[%s247 + $0x90] sm:$0xff]
      %v292 = vld [vmem:[%s247 + $0x98] sm:$0xff]
      %v293 = vld [vmem:[%s247 + $0xa0] sm:$0xff]
      %v294 = vld [vmem:[%s247 + $0xa8] sm:$0xff]
      %v295 = vld [vmem:[%s247 + $0xb0] sm:$0xff]
      %v296 = vld [vmem:[%s247 + $0xb8] sm:$0xff]
      %v297 = vld [vmem:[%s247 + $0xc0] sm:$0xff]
      %v298 = vld [vmem:[%s247 + $0xc8] sm:$0xff]
      %v299 = vld [vmem:[%s247 + $0xd0] sm:$0xff]
      %v300 = vld [vmem:[%s247 + $0xd8] sm:$0xff]
      %v301 = vld [vmem:[%s247 + $0xe0] sm:$0xff]
      %v302 = vld [vmem:[%s247 + $0xe8] sm:$0xff]
      %v303 = vld [vmem:[%s247 + $0xf0] sm:$0xff]
      %v304 = vld [vmem:[%s247 + $0xf8] sm:$0xff]
      %v305 = vld [vmem:[%s247 + $0x100] sm:$0xff]
      %v306 = vld [vmem:[%s247 + $0x108] sm:$0xff]
      %v307 = vld [vmem:[%s247 + $0x110] sm:$0xff]
      %v308 = vld [vmem:[%s247 + $0x118] sm:$0xff]
      %v309 = vld [vmem:[%s247 + $0x120] sm:$0xff]
      %v310 = vld [vmem:[%s247 + $0x128] sm:$0xff]
      %v311 = vld [vmem:[%s247 + $0x130] sm:$0xff]
      %v312 = vld [vmem:[%s247 + $0x138] sm:$0xff]
      %v313 = vld [vmem:[%s247 + $0x140] sm:$0xff]
      %v314 = vld [vmem:[%s247 + $0x148] sm:$0xff]
      %v315 = vld [vmem:[%s247 + $0x150] sm:$0xff]
      %v316 = vld [vmem:[%s247 + $0x158] sm:$0xff]
      %v317 = vld [vmem:[%s247 + $0x160] sm:$0xff]
      %v318 = vld [vmem:[%s247 + $0x168] sm:$0xff]
      %v319 = vld [vmem:[%s247 + $0x170] sm:$0xff]
      %v320 = vld [vmem:[%s247 + $0x178] sm:$0xff]
      %v321 = vld [vmem:[%s247 + $0x180] sm:$0xff]
      %v322 = vld [vmem:[%s247 + $0x188] sm:$0xff]
      %v323 = vld [vmem:[%s247 + $0x190] sm:$0xff]
      %v324 = vld [vmem:[%s247 + $0x198] sm:$0xff]
      %v325 = vld [vmem:[%s247 + $0x1a0] sm:$0xff]
      %v326 = vld [vmem:[%s247 + $0x1a8] sm:$0xff]
      %v327 = vld [vmem:[%s247 + $0x1b0] sm:$0xff]
      %v328 = vld [vmem:[%s247 + $0x1b8] sm:$0xff]
      %v329 = vld [vmem:[%s247 + $0x1c0] sm:$0xff]
      %v330 = vld [vmem:[%s247 + $0x1c8] sm:$0xff]
      %v331 = vld [vmem:[%s247 + $0x1d0] sm:$0xff]
      %v332 = vld [vmem:[%s247 + $0x1d8] sm:$0xff]
      %v333 = vld [vmem:[%s247 + $0x1e0] sm:$0xff]
      %v334 = vld [vmem:[%s247 + $0x1e8] sm:$0xff]
      %v335 = vld [vmem:[%s247 + $0x1f0] sm:$0xff]
      %v336 = vld [vmem:[%s247 + $0x1f8] sm:$0xff]
      %v337 = vld [vmem:[%s247 + $0x200] sm:$0xff]
      %v338 = vld [vmem:[%s247 + $0x208] sm:$0xff]
      %v339 = vld [vmem:[%s247 + $0x210] sm:$0xff]
      %v340 = vld [vmem:[%s247 + $0x218] sm:$0xff]
      %v341 = vld [vmem:[%s247 + $0x220] sm:$0xff]
      %v342 = vld [vmem:[%s247 + $0x228] sm:$0xff]
      %v343 = vld [vmem:[%s247 + $0x230] sm:$0xff]
      %v344 = vld [vmem:[%s247 + $0x238] sm:$0xff]
      %v345 = vld [vmem:[%s247 + $0x240] sm:$0xff]
      %v346 = vld [vmem:[%s247 + $0x248] sm:$0xff]
      %v347 = vld [vmem:[%s247 + $0x250] sm:$0xff]
      %v348 = vld [vmem:[%s247 + $0x258] sm:$0xff]
      %v349 = vld [vmem:[%s247 + $0x260] sm:$0xff]
      %v350 = vld [vmem:[%s247 + $0x268] sm:$0xff]
      %v351 = vld [vmem:[%s247 + $0x270] sm:$0xff]
      %v352 = vld [vmem:[%s247 + $0x278] sm:$0xff]
      %v353 = vld [vmem:[%s247 + $0x280] sm:$0xff]
      %v354 = vld [vmem:[%s247 + $0x288] sm:$0xff]
      %v355 = vld [vmem:[%s247 + $0x290] sm:$0xff]
      %v356 = vld [vmem:[%s247 + $0x298] sm:$0xff]
      %v357 = vld [vmem:[%s247 + $0x2a0] sm:$0xff]
      %v358 = vld [vmem:[%s247 + $0x2a8] sm:$0xff]
      %v359 = vld [vmem:[%s247 + $0x2b0] sm:$0xff]
      %v360 = vld [vmem:[%s247 + $0x2b8] sm:$0xff]
      %v361 = vld [vmem:[%s247 + $0x2c0] sm:$0xff]
      %v362 = vld [vmem:[%s247 + $0x2c8] sm:$0xff]
      %v363 = vld [vmem:[%s247 + $0x2d0] sm:$0xff]
      %v364 = vld [vmem:[%s247 + $0x2d8] sm:$0xff]
      %v365 = vld [vmem:[%s247 + $0x2e0] sm:$0xff]
      %v366 = vld [vmem:[%s247 + $0x2e8] sm:$0xff]
      %v367 = vld [vmem:[%s247 + $0x2f0] sm:$0xff]
      %v368 = vld [vmem:[%s247 + $0x2f8] sm:$0xff]
      %v369 = vld [vmem:[%s247 + $0x300] sm:$0xff]
      %v370 = vld [vmem:[%s247 + $0x308] sm:$0xff]
      %v371 = vld [vmem:[%s247 + $0x310] sm:$0xff]
      %v372 = vld [vmem:[%s247 + $0x318] sm:$0xff]
      %v373 = vld [vmem:[%s247 + $0x320] sm:$0xff]
      %v374 = vld [vmem:[%s247 + $0x328] sm:$0xff]
      %v375 = vld [vmem:[%s247 + $0x330] sm:$0xff]
      %v376 = vld [vmem:[%s247 + $0x338] sm:$0xff]
      %v377 = vld [vmem:[%s247 + $0x340] sm:$0xff]
      %v378 = vld [vmem:[%s247 + $0x348] sm:$0xff]
      %v379 = vld [vmem:[%s247 + $0x350] sm:$0xff]
      %v380 = vld [vmem:[%s247 + $0x358] sm:$0xff]
      %v381 = vld [vmem:[%s247 + $0x360] sm:$0xff]
      %v382 = vld [vmem:[%s247 + $0x368] sm:$0xff]
      %v383 = vld [vmem:[%s247 + $0x370] sm:$0xff]
      %v384 = vld [vmem:[%s247 + $0x378] sm:$0xff]
      %v385 = vld [vmem:[%s247 + $0x380] sm:$0xff]
      %v386 = vld [vmem:[%s247 + $0x388] sm:$0xff]
      %v387 = vld [vmem:[%s247 + $0x390] sm:$0xff]
      %v388 = vld [vmem:[%s247 + $0x398] sm:$0xff]
      %v389 = vld [vmem:[%s247 + $0x3a0] sm:$0xff]
      %v390 = vld [vmem:[%s247 + $0x3a8] sm:$0xff]
      %v391 = vld [vmem:[%s247 + $0x3b0] sm:$0xff]
      %v392 = vld [vmem:[%s247 + $0x3b8] sm:$0xff]
      %v393 = vld [vmem:[%s247 + $0x3c0] sm:$0xff]
      %v394 = vld [vmem:[%s247 + $0x3c8] sm:$0xff]
      %v395 = vld [vmem:[%s247 + $0x3d0] sm:$0xff]
      %v396 = vld [vmem:[%s247 + $0x3d8] sm:$0xff]
      %v397 = vld [vmem:[%s247 + $0x3e0] sm:$0xff]
      %v398 = vld [vmem:[%s247 + $0x3e8] sm:$0xff]
      %v399 = vld [vmem:[%s247 + $0x3f0] sm:$0xff]
      %v400 = vld [vmem:[%s247 + $0x3f8] sm:$0xff]
      %v401 = vld [vmem:[%s256] sm:$0xff]
      %v402 = vld [vmem:[%s256 + $0x8] sm:$0xff]
      %v403 = vld [vmem:[%s256 + $0x10] sm:$0xff]
      %v404 = vld [vmem:[%s256 + $0x18] sm:$0xff]
      %v405 = vld [vmem:[%s256 + $0x20] sm:$0xff]
      %v406 = vld [vmem:[%s256 + $0x28] sm:$0xff]
      %v407 = vld [vmem:[%s256 + $0x30] sm:$0xff]
      %v408 = vld [vmem:[%s256 + $0x38] sm:$0xff]
      %v409 = vld [vmem:[%s256 + $0x40] sm:$0xff]
      %v410 = vld [vmem:[%s256 + $0x48] sm:$0xff]
      %v411 = vld [vmem:[%s256 + $0x50] sm:$0xff]
      %v412 = vld [vmem:[%s256 + $0x58] sm:$0xff]
      %v413 = vld [vmem:[%s256 + $0x60] sm:$0xff]
      %v414 = vld [vmem:[%s256 + $0x68] sm:$0xff]
      %v415 = vld [vmem:[%s256 + $0x70] sm:$0xff]
      %v416 = vld [vmem:[%s256 + $0x78] sm:$0xff]
      %v417 = vld [vmem:[%s256 + $0x80] sm:$0xff]
      %v418 = vld [vmem:[%s256 + $0x88] sm:$0xff]
      %v419 = vld [vmem:[%s256 + $0x90] sm:$0xff]
      %v420 = vld [vmem:[%s256 + $0x98] sm:$0xff]
      %v421 = vld [vmem:[%s256 + $0xa0] sm:$0xff]
      %v422 = vld [vmem:[%s256 + $0xa8] sm:$0xff]
      %v423 = vld [vmem:[%s256 + $0xb0] sm:$0xff]
      %v424 = vld [vmem:[%s256 + $0xb8] sm:$0xff]
      %v425 = vld [vmem:[%s256 + $0xc0] sm:$0xff]
      %v426 = vld [vmem:[%s256 + $0xc8] sm:$0xff]
      %v427 = vld [vmem:[%s256 + $0xd0] sm:$0xff]
      %v428 = vld [vmem:[%s256 + $0xd8] sm:$0xff]
      %v429 = vld [vmem:[%s256 + $0xe0] sm:$0xff]
      %v430 = vld [vmem:[%s256 + $0xe8] sm:$0xff]
      %v431 = vld [vmem:[%s256 + $0xf0] sm:$0xff]
      %v432 = vld [vmem:[%s256 + $0xf8] sm:$0xff]
      %v433 = vld [vmem:[%s259] sm:$0x1]
      %v435 = vlaneseq
      %v436 = vshrl.u32 %v435, 7
      %v437 = vsub.s32 0, %v436
      %v438 = vrot.slane %v433, %v437
      %440 = vmatprep.subr.mxu0 0.0
      %441 = vmatpush1.msra.mxu0 %v401
      %442 = vmatprep.subr.mxu0 0.0
      %443 = vmatpush1.msra.mxu0 %v402
      %444 = vmatprep.subr.mxu0 0.0
      %445 = vmatpush1.msra.mxu0 %v403
      %446 = vmatprep.subr.mxu0 0.0
      %447 = vmatpush1.msra.mxu0 %v404
      %448 = vmatprep.subr.mxu0 0.0
      %449 = vmatpush1.msra.mxu0 %v405
      %450 = vmatprep.subr.mxu0 0.0
      %451 = vmatpush1.msra.mxu0 %v406
      %452 = vmatprep.subr.mxu0 0.0
      %453 = vmatpush1.msra.mxu0 %v407
      %454 = vmatprep.subr.mxu0 0.0
      %455 = vmatpush1.msra.mxu0 %v408
      %456 = vmatprep.subr.mxu0 0.0
      %457 = vmatpush1.msra.mxu0 %v409
      %458 = vmatprep.subr.mxu0 0.0
      %459 = vmatpush1.msra.mxu0 %v410
      %460 = vmatprep.subr.mxu0 0.0
      %461 = vmatpush1.msra.mxu0 %v411
      %462 = vmatprep.subr.mxu0 0.0
      %463 = vmatpush1.msra.mxu0 %v412
      %464 = vmatprep.subr.mxu0 0.0
      %465 = vmatpush1.msra.mxu0 %v413
      %466 = vmatprep.subr.mxu0 0.0
      %467 = vmatpush1.msra.mxu0 %v414
      %468 = vmatprep.subr.mxu0 0.0
      %469 = vmatpush1.msra.mxu0 %v415
      %470 = vmatprep.subr.mxu0 0.0
      %471 = vmatpush1.msra.mxu0 %v416
      %472 = vmatprep.subr.mxu0 0.0
      %473 = vmatpush1.msra.mxu0 %v417
      %474 = vmatprep.subr.mxu0 0.0
      %475 = vmatpush1.msra.mxu0 %v418
      %476 = vmatprep.subr.mxu0 0.0
      %477 = vmatpush1.msra.mxu0 %v419
      %478 = vmatprep.subr.mxu0 0.0
      %479 = vmatpush1.msra.mxu0 %v420
      %480 = vmatprep.subr.mxu0 0.0
      %481 = vmatpush1.msra.mxu0 %v421
      %482 = vmatprep.subr.mxu0 0.0
      %483 = vmatpush1.msra.mxu0 %v422
      %484 = vmatprep.subr.mxu0 0.0
      %485 = vmatpush1.msra.mxu0 %v423
      %486 = vmatprep.subr.mxu0 0.0
      %487 = vmatpush1.msra.mxu0 %v424
      %488 = vmatprep.subr.mxu0 0.0
      %489 = vmatpush1.msra.mxu0 %v425
      %490 = vmatprep.subr.mxu0 0.0
      %491 = vmatpush1.msra.mxu0 %v426
      %492 = vmatprep.subr.mxu0 0.0
      %493 = vmatpush1.msra.mxu0 %v427
      %494 = vmatprep.subr.mxu0 0.0
      %495 = vmatpush1.msra.mxu0 %v428
      %496 = vmatprep.subr.mxu0 0.0
      %497 = vmatpush1.msra.mxu0 %v429
      %498 = vmatprep.subr.mxu0 0.0
      %499 = vmatpush1.msra.mxu0 %v430
      %500 = vmatprep.subr.mxu0 0.0
      %501 = vmatpush1.msra.mxu0 %v431
      %502 = vmatprep.subr.mxu0 0.0
      %503 = vmatpush1.msra.mxu0 %v432
      %504 = vmatprep.mubr.f32.mxu0 %v274
      %505 = vmatmul.mubr.f32.gmra.mrb[0].mxu0 %v273
      %v506 = vpop.f32.mrb[0].mxu0
      %v507 = vadd.f32 %v438, %v506
      %v508 = vpop.f32.mrb[0].mxu0
      %509 = vmatprep.mubr.f32.mxu0 %v276
      %510 = vmatmul.mubr.f32.gmra.mrb[0].mxu0 %v275
      %v511 = vpop.f32.mrb[0].mxu0
      %v512 = vadd.f32 %v438, %v511
      %v513 = vpop.f32.mrb[0].mxu0
      %514 = vmatprep.mubr.f32.mxu0 %v278
      %515 = vmatmul.mubr.f32.gmra.mrb[0].mxu0 %v277
      %v516 = vpop.f32.mrb[0].mxu0
      %v517 = vadd.f32 %v438, %v516
      %v518 = vpop.f32.mrb[0].mxu0
      %519 = vmatprep.mubr.f32.mxu0 %v280
      %520 = vmatmul.mubr.f32.gmra.mrb[0].mxu0 %v279
      %v521 = vpop.f32.mrb[0].mxu0
      %v522 = vadd.f32 %v438, %v521
      %v523 = vpop.f32.mrb[0].mxu0
      %524 = vmatprep.mubr.f32.mxu0 %v282
      %525 = vmatmul.mubr.f32.gmra.mrb[0].mxu0 %v281
      %v526 = vpop.f32.mrb[0].mxu0
      %v527 = vadd.f32 %v438, %v526
      %v528 = vpop.f32.mrb[0].mxu0
      %529 = vmatprep.mubr.f32.mxu0 %v284
      %530 = vmatmul.mubr.f32.gmra.mrb[0].mxu0 %v283
      %v531 = vpop.f32.mrb[0].mxu0
      %v532 = vadd.f32 %v438, %v531
      %v533 = vpop.f32.mrb[0].mxu0
      %534 = vmatprep.mubr.f32.mxu0 %v286
      %535 = vmatmul.mubr.f32.gmra.mrb[0].mxu0 %v285
      %v536 = vpop.f32.mrb[0].mxu0
      %v537 = vadd.f32 %v438, %v536
      %v538 = vpop.f32.mrb[0].mxu0
      %539 = vmatprep.mubr.f32.mxu0 %v288
      %540 = vmatmul.mubr.f32.gmra.mrb[0].mxu0 %v287
      %v541 = vpop.f32.mrb[0].mxu0
      %v542 = vadd.f32 %v438, %v541
      %v543 = vpop.f32.mrb[0].mxu0
      %544 = vmatprep.mubr.f32.mxu0 %v290
      %545 = vmatmul.mubr.f32.gmra.mrb[0].mxu0 %v289
      %v546 = vpop.f32.mrb[0].mxu0
      %v547 = vadd.f32 %v438, %v546
      %v548 = vpop.f32.mrb[0].mxu0
      %549 = vmatprep.mubr.f32.mxu0 %v292
      %550 = vmatmul.mubr.f32.gmra.mrb[0].mxu0 %v291
      %v551 = vpop.f32.mrb[0].mxu0
      %v552 = vadd.f32 %v438, %v551
      %v553 = vpop.f32.mrb[0].mxu0
      %554 = vmatprep.mubr.f32.mxu0 %v294
      %555 = vmatmul.mubr.f32.gmra.mrb[0].mxu0 %v293
      %v556 = vpop.f32.mrb[0].mxu0
      %v557 = vadd.f32 %v438, %v556
      %v558 = vpop.f32.mrb[0].mxu0
      %559 = vmatprep.mubr.f32.mxu0 %v296
      %560 = vmatmul.mubr.f32.gmra.mrb[0].mxu0 %v295
      %v561 = vpop.f32.mrb[0].mxu0
      %v562 = vadd.f32 %v438, %v561
      %v563 = vpop.f32.mrb[0].mxu0
      %564 = vmatprep.mubr.f32.mxu0 %v298
      %565 = vmatmul.mubr.f32.gmra.mrb[0].mxu0 %v297
      %v566 = vpop.f32.mrb[0].mxu0
      %v567 = vadd.f32 %v438, %v566
      %v568 = vpop.f32.mrb[0].mxu0
      %569 = vmatprep.mubr.f32.mxu0 %v300
      %570 = vmatmul.mubr.f32.gmra.mrb[0].mxu0 %v299
      %v571 = vpop.f32.mrb[0].mxu0
      %v572 = vadd.f32 %v438, %v571
      %v573 = vpop.f32.mrb[0].mxu0
      %574 = vmatprep.mubr.f32.mxu0 %v302
      %575 = vmatmul.mubr.f32.gmra.mrb[0].mxu0 %v301
      %v576 = vpop.f32.mrb[0].mxu0
      %v577 = vadd.f32 %v438, %v576
      %v578 = vpop.f32.mrb[0].mxu0
      %579 = vmatprep.mubr.f32.mxu0 %v304
      %580 = vmatmul.mubr.f32.gmra.mrb[0].mxu0 %v303
      %v581 = vpop.f32.mrb[0].mxu0
      %v582 = vadd.f32 %v438, %v581
      %v583 = vpop.f32.mrb[0].mxu0
      %584 = vmatprep.mubr.f32.mxu0 %v306
      %585 = vmatmul.mubr.f32.gmra.mrb[0].mxu0 %v305
      %v586 = vpop.f32.mrb[0].mxu0
      %v587 = vadd.f32 %v438, %v586
      %v588 = vpop.f32.mrb[0].mxu0
      %589 = vmatprep.mubr.f32.mxu0 %v308
      %590 = vmatmul.mubr.f32.gmra.mrb[0].mxu0 %v307
      %v591 = vpop.f32.mrb[0].mxu0
      %v592 = vadd.f32 %v438, %v591
      %v593 = vpop.f32.mrb[0].mxu0
      %594 = vmatprep.mubr.f32.mxu0 %v310
      %595 = vmatmul.mubr.f32.gmra.mrb[0].mxu0 %v309
      %v596 = vpop.f32.mrb[0].mxu0
      %v597 = vadd.f32 %v438, %v596
      %v598 = vpop.f32.mrb[0].mxu0
      %599 = vmatprep.mubr.f32.mxu0 %v312
      %600 = vmatmul.mubr.f32.gmra.mrb[0].mxu0 %v311
      %v601 = vpop.f32.mrb[0].mxu0
      %v602 = vadd.f32 %v438, %v601
      %v603 = vpop.f32.mrb[0].mxu0
      %604 = vmatprep.mubr.f32.mxu0 %v314
      %605 = vmatmul.mubr.f32.gmra.mrb[0].mxu0 %v313
      %v606 = vpop.f32.mrb[0].mxu0
      %v607 = vadd.f32 %v438, %v606
      %v608 = vpop.f32.mrb[0].mxu0
      %609 = vmatprep.mubr.f32.mxu0 %v316
      %610 = vmatmul.mubr.f32.gmra.mrb[0].mxu0 %v315
      %v611 = vpop.f32.mrb[0].mxu0
      %v612 = vadd.f32 %v438, %v611
      %v613 = vpop.f32.mrb[0].mxu0
      %614 = vmatprep.mubr.f32.mxu0 %v318
      %615 = vmatmul.mubr.f32.gmra.mrb[0].mxu0 %v317
      %v616 = vpop.f32.mrb[0].mxu0
      %v617 = vadd.f32 %v438, %v616
      %v618 = vpop.f32.mrb[0].mxu0
      %619 = vmatprep.mubr.f32.mxu0 %v320
      %620 = vmatmul.mubr.f32.gmra.mrb[0].mxu0 %v319
      %v621 = vpop.f32.mrb[0].mxu0
      %v622 = vadd.f32 %v438, %v621
      %v623 = vpop.f32.mrb[0].mxu0
      %624 = vmatprep.mubr.f32.mxu0 %v322
      %625 = vmatmul.mubr.f32.gmra.mrb[0].mxu0 %v321
      %v626 = vpop.f32.mrb[0].mxu0
      %v627 = vadd.f32 %v438, %v626
      %v628 = vpop.f32.mrb[0].mxu0
      %629 = vmatprep.mubr.f32.mxu0 %v324
      %630 = vmatmul.mubr.f32.gmra.mrb[0].mxu0 %v323
      %v631 = vpop.f32.mrb[0].mxu0
      %v632 = vadd.f32 %v438, %v631
      %v633 = vpop.f32.mrb[0].mxu0
      %634 = vmatprep.mubr.f32.mxu0 %v326
      %635 = vmatmul.mubr.f32.gmra.mrb[0].mxu0 %v325
      %v636 = vpop.f32.mrb[0].mxu0
      %v637 = vadd.f32 %v438, %v636
      %v638 = vpop.f32.mrb[0].mxu0
      %639 = vmatprep.mubr.f32.mxu0 %v328
      %640 = vmatmul.mubr.f32.gmra.mrb[0].mxu0 %v327
      %v641 = vpop.f32.mrb[0].mxu0
      %v642 = vadd.f32 %v438, %v641
      %v643 = vpop.f32.mrb[0].mxu0
      %644 = vmatprep.mubr.f32.mxu0 %v330
      %645 = vmatmul.mubr.f32.gmra.mrb[0].mxu0 %v329
      %v646 = vpop.f32.mrb[0].mxu0
      %v647 = vadd.f32 %v438, %v646
      %v648 = vpop.f32.mrb[0].mxu0
      %649 = vmatprep.mubr.f32.mxu0 %v332
      %650 = vmatmul.mubr.f32.gmra.mrb[0].mxu0 %v331
      %v651 = vpop.f32.mrb[0].mxu0
      %v652 = vadd.f32 %v438, %v651
      %v653 = vpop.f32.mrb[0].mxu0
      %654 = vmatprep.mubr.f32.mxu0 %v334
      %655 = vmatmul.mubr.f32.gmra.mrb[0].mxu0 %v333
      %v656 = vpop.f32.mrb[0].mxu0
      %v657 = vadd.f32 %v438, %v656
      %v658 = vpop.f32.mrb[0].mxu0
      %659 = vmatprep.mubr.f32.mxu0 %v336
      %660 = vmatmul.mubr.f32.gmra.mrb[0].mxu0 %v335
      %v661 = vpop.f32.mrb[0].mxu0
      %v662 = vadd.f32 %v438, %v661
      %v663 = vpop.f32.mrb[0].mxu0
      %664 = vmatprep.mubr.f32.mxu0 %v338
      %665 = vmatmul.mubr.f32.gmra.mrb[0].mxu0 %v337
      %v666 = vpop.f32.mrb[0].mxu0
      %v667 = vadd.f32 %v438, %v666
      %v668 = vpop.f32.mrb[0].mxu0
      %669 = vmatprep.mubr.f32.mxu0 %v340
      %670 = vmatmul.mubr.f32.gmra.mrb[0].mxu0 %v339
      %v671 = vpop.f32.mrb[0].mxu0
      %v672 = vadd.f32 %v438, %v671
      %v673 = vpop.f32.mrb[0].mxu0
      %674 = vmatprep.mubr.f32.mxu0 %v342
      %675 = vmatmul.mubr.f32.gmra.mrb[0].mxu0 %v341
      %v676 = vpop.f32.mrb[0].mxu0
      %v677 = vadd.f32 %v438, %v676
      %v678 = vpop.f32.mrb[0].mxu0
      %679 = vmatprep.mubr.f32.mxu0 %v344
      %680 = vmatmul.mubr.f32.gmra.mrb[0].mxu0 %v343
      %v681 = vpop.f32.mrb[0].mxu0
      %v682 = vadd.f32 %v438, %v681
      %v683 = vpop.f32.mrb[0].mxu0
      %684 = vmatprep.mubr.f32.mxu0 %v346
      %685 = vmatmul.mubr.f32.gmra.mrb[0].mxu0 %v345
      %v686 = vpop.f32.mrb[0].mxu0
      %v687 = vadd.f32 %v438, %v686
      %v688 = vpop.f32.mrb[0].mxu0
      %689 = vmatprep.mubr.f32.mxu0 %v348
      %690 = vmatmul.mubr.f32.gmra.mrb[0].mxu0 %v347
      %v691 = vpop.f32.mrb[0].mxu0
      %v692 = vadd.f32 %v438, %v691
      %v693 = vpop.f32.mrb[0].mxu0
      %694 = vmatprep.mubr.f32.mxu0 %v350
      %695 = vmatmul.mubr.f32.gmra.mrb[0].mxu0 %v349
      %v696 = vpop.f32.mrb[0].mxu0
      %v697 = vadd.f32 %v438, %v696
      %v698 = vpop.f32.mrb[0].mxu0
      %699 = vmatprep.mubr.f32.mxu0 %v352
      %700 = vmatmul.mubr.f32.gmra.mrb[0].mxu0 %v351
      %v701 = vpop.f32.mrb[0].mxu0
      %v702 = vadd.f32 %v438, %v701
      %v703 = vpop.f32.mrb[0].mxu0
      %704 = vmatprep.mubr.f32.mxu0 %v354
      %705 = vmatmul.mubr.f32.gmra.mrb[0].mxu0 %v353
      %v706 = vpop.f32.mrb[0].mxu0
      %v707 = vadd.f32 %v438, %v706
      %v708 = vpop.f32.mrb[0].mxu0
      %709 = vmatprep.mubr.f32.mxu0 %v356
      %710 = vmatmul.mubr.f32.gmra.mrb[0].mxu0 %v355
      %v711 = vpop.f32.mrb[0].mxu0
      %v712 = vadd.f32 %v438, %v711
      %v713 = vpop.f32.mrb[0].mxu0
      %714 = vmatprep.mubr.f32.mxu0 %v358
      %715 = vmatmul.mubr.f32.gmra.mrb[0].mxu0 %v357
      %v716 = vpop.f32.mrb[0].mxu0
      %v717 = vadd.f32 %v438, %v716
      %v718 = vpop.f32.mrb[0].mxu0
      %719 = vmatprep.mubr.f32.mxu0 %v360
      %720 = vmatmul.mubr.f32.gmra.mrb[0].mxu0 %v359
      %v721 = vpop.f32.mrb[0].mxu0
      %v722 = vadd.f32 %v438, %v721
      %v723 = vpop.f32.mrb[0].mxu0
      %724 = vmatprep.mubr.f32.mxu0 %v362
      %725 = vmatmul.mubr.f32.gmra.mrb[0].mxu0 %v361
      %v726 = vpop.f32.mrb[0].mxu0
      %v727 = vadd.f32 %v438, %v726
      %v728 = vpop.f32.mrb[0].mxu0
      %729 = vmatprep.mubr.f32.mxu0 %v364
      %730 = vmatmul.mubr.f32.gmra.mrb[0].mxu0 %v363
      %v731 = vpop.f32.mrb[0].mxu0
      %v732 = vadd.f32 %v438, %v731
      %v733 = vpop.f32.mrb[0].mxu0
      %734 = vmatprep.mubr.f32.mxu0 %v366
      %735 = vmatmul.mubr.f32.gmra.mrb[0].mxu0 %v365
      %v736 = vpop.f32.mrb[0].mxu0
      %v737 = vadd.f32 %v438, %v736
      %v738 = vpop.f32.mrb[0].mxu0
      %739 = vmatprep.mubr.f32.mxu0 %v368
      %740 = vmatmul.mubr.f32.gmra.mrb[0].mxu0 %v367
      %v741 = vpop.f32.mrb[0].mxu0
      %v742 = vadd.f32 %v438, %v741
      %v743 = vpop.f32.mrb[0].mxu0
      %744 = vmatprep.mubr.f32.mxu0 %v370
      %745 = vmatmul.mubr.f32.gmra.mrb[0].mxu0 %v369
      %v746 = vpop.f32.mrb[0].mxu0
      %v747 = vadd.f32 %v438, %v746
      %v748 = vpop.f32.mrb[0].mxu0
      %749 = vmatprep.mubr.f32.mxu0 %v372
      %750 = vmatmul.mubr.f32.gmra.mrb[0].mxu0 %v371
      %v751 = vpop.f32.mrb[0].mxu0
      %v752 = vadd.f32 %v438, %v751
      %v753 = vpop.f32.mrb[0].mxu0
      %754 = vmatprep.mubr.f32.mxu0 %v374
      %755 = vmatmul.mubr.f32.gmra.mrb[0].mxu0 %v373
      %v756 = vpop.f32.mrb[0].mxu0
      %v757 = vadd.f32 %v438, %v756
      %v758 = vpop.f32.mrb[0].mxu0
      %759 = vmatprep.mubr.f32.mxu0 %v376
      %760 = vmatmul.mubr.f32.gmra.mrb[0].mxu0 %v375
      %v761 = vpop.f32.mrb[0].mxu0
      %v762 = vadd.f32 %v438, %v761
      %v763 = vpop.f32.mrb[0].mxu0
      %764 = vmatprep.mubr.f32.mxu0 %v378
      %765 = vmatmul.mubr.f32.gmra.mrb[0].mxu0 %v377
      %v766 = vpop.f32.mrb[0].mxu0
      %v767 = vadd.f32 %v438, %v766
      %v768 = vpop.f32.mrb[0].mxu0
      %769 = vmatprep.mubr.f32.mxu0 %v380
      %770 = vmatmul.mubr.f32.gmra.mrb[0].mxu0 %v379
      %v771 = vpop.f32.mrb[0].mxu0
      %v772 = vadd.f32 %v438, %v771
      %v773 = vpop.f32.mrb[0].mxu0
      %774 = vmatprep.mubr.f32.mxu0 %v382
      %775 = vmatmul.mubr.f32.gmra.mrb[0].mxu0 %v381
      %v776 = vpop.f32.mrb[0].mxu0
      %v777 = vadd.f32 %v438, %v776
      %v778 = vpop.f32.mrb[0].mxu0
      %779 = vmatprep.mubr.f32.mxu0 %v384
      %780 = vmatmul.mubr.f32.gmra.mrb[0].mxu0 %v383
      %v781 = vpop.f32.mrb[0].mxu0
      %v782 = vadd.f32 %v438, %v781
      %v783 = vpop.f32.mrb[0].mxu0
      %784 = vmatprep.mubr.f32.mxu0 %v386
      %785 = vmatmul.mubr.f32.gmra.mrb[0].mxu0 %v385
      %v786 = vpop.f32.mrb[0].mxu0
      %v787 = vadd.f32 %v438, %v786
      %v788 = vpop.f32.mrb[0].mxu0
      %789 = vmatprep.mubr.f32.mxu0 %v388
      %790 = vmatmul.mubr.f32.gmra.mrb[0].mxu0 %v387
      %v791 = vpop.f32.mrb[0].mxu0
      %v792 = vadd.f32 %v438, %v791
      %v793 = vpop.f32.mrb[0].mxu0
      %794 = vmatprep.mubr.f32.mxu0 %v390
      %795 = vmatmul.mubr.f32.gmra.mrb[0].mxu0 %v389
      %v796 = vpop.f32.mrb[0].mxu0
      %v797 = vadd.f32 %v438, %v796
      %v798 = vpop.f32.mrb[0].mxu0
      %799 = vmatprep.mubr.f32.mxu0 %v392
      %800 = vmatmul.mubr.f32.gmra.mrb[0].mxu0 %v391
      %v801 = vpop.f32.mrb[0].mxu0
      %v802 = vadd.f32 %v438, %v801
      %v803 = vpop.f32.mrb[0].mxu0
      %804 = vmatprep.mubr.f32.mxu0 %v394
      %805 = vmatmul.mubr.f32.gmra.mrb[0].mxu0 %v393
      %v806 = vpop.f32.mrb[0].mxu0
      %v807 = vadd.f32 %v438, %v806
      %v808 = vpop.f32.mrb[0].mxu0
      %809 = vmatprep.mubr.f32.mxu0 %v396
      %810 = vmatmul.mubr.f32.gmra.mrb[0].mxu0 %v395
      %v811 = vpop.f32.mrb[0].mxu0
      %v812 = vadd.f32 %v438, %v811
      %v813 = vpop.f32.mrb[0].mxu0
      %814 = vmatprep.mubr.f32.mxu0 %v398
      %815 = vmatmul.mubr.f32.gmra.mrb[0].mxu0 %v397
      %v816 = vpop.f32.mrb[0].mxu0
      %v817 = vadd.f32 %v438, %v816
      %v818 = vpop.f32.mrb[0].mxu0
      %819 = vmatprep.mubr.f32.mxu0 %v400
      %820 = vmatmul.mubr.f32.gmra.mrb[0].mxu0 %v399
      %v821 = vpop.f32.mrb[0].mxu0
      %v822 = vadd.f32 %v438, %v821
      %v823 = vpop.f32.mrb[0].mxu0
      %824 = vdwg.mxu0
      %v825 = vtanh.pop %v507
      %v826 = vtanh.pop %v512
      %v827 = vtanh.pop %v517
      %v828 = vtanh.pop %v522
      %v829 = vtanh.pop %v527
      %v830 = vtanh.pop %v532
      %v831 = vtanh.pop %v537
      %v832 = vtanh.pop %v542
      %v833 = vtanh.pop %v547
      %v834 = vtanh.pop %v552
      %v835 = vtanh.pop %v557
      %v836 = vtanh.pop %v562
      %v837 = vtanh.pop %v567
      %v838 = vtanh.pop %v572
      %v839 = vtanh.pop %v577
      %v840 = vtanh.pop %v582
      %v841 = vtanh.pop %v587
      %v842 = vtanh.pop %v592
      %v843 = vtanh.pop %v597
      %v844 = vtanh.pop %v602
      %v845 = vtanh.pop %v607
      %v846 = vtanh.pop %v612
      %v847 = vtanh.pop %v617
      %v848 = vtanh.pop %v622
      %v849 = vtanh.pop %v627
      %v850 = vtanh.pop %v632
      %v851 = vtanh.pop %v637
      %v852 = vtanh.pop %v642
      %v853 = vtanh.pop %v647
      %v854 = vtanh.pop %v652
      %v855 = vtanh.pop %v657
      %v856 = vtanh.pop %v662
      %v857 = vtanh.pop %v667
      %v858 = vtanh.pop %v672
      %v859 = vtanh.pop %v677
      %v860 = vtanh.pop %v682
      %v861 = vtanh.pop %v687
      %v862 = vtanh.pop %v692
      %v863 = vtanh.pop %v697
      %v864 = vtanh.pop %v702
      %v865 = vtanh.pop %v707
      %v866 = vtanh.pop %v712
      %v867 = vtanh.pop %v717
      %v868 = vtanh.pop %v722
      %v869 = vtanh.pop %v727
      %v870 = vtanh.pop %v732
      %v871 = vtanh.pop %v737
      %v872 = vtanh.pop %v742
      %v873 = vtanh.pop %v747
      %v874 = vtanh.pop %v752
      %v875 = vtanh.pop %v757
      %v876 = vtanh.pop %v762
      %v877 = vtanh.pop %v767
      %v878 = vtanh.pop %v772
      %v879 = vtanh.pop %v777
      %v880 = vtanh.pop %v782
      %v881 = vtanh.pop %v787
      %v882 = vtanh.pop %v792
      %v883 = vtanh.pop %v797
      %v884 = vtanh.pop %v802
      %v885 = vtanh.pop %v807
      %v886 = vtanh.pop %v812
      %v887 = vtanh.pop %v817
      %v888 = vtanh.pop %v822
      %889 = vst [vmem:[%s271] sm:$0xff] %v825
      %890 = vst [vmem:[%s271 + $0x8] sm:$0xff] %v826
      %891 = vst [vmem:[%s271 + $0x10] sm:$0xff] %v827
      %892 = vst [vmem:[%s271 + $0x18] sm:$0xff] %v828
      %893 = vst [vmem:[%s271 + $0x20] sm:$0xff] %v829
      %894 = vst [vmem:[%s271 + $0x28] sm:$0xff] %v830
      %895 = vst [vmem:[%s271 + $0x30] sm:$0xff] %v831
      %896 = vst [vmem:[%s271 + $0x38] sm:$0xff] %v832
      %897 = vst [vmem:[%s271 + $0x40] sm:$0xff] %v833
      %898 = vst [vmem:[%s271 + $0x48] sm:$0xff] %v834
      %899 = vst [vmem:[%s271 + $0x50] sm:$0xff] %v835
      %900 = vst [vmem:[%s271 + $0x58] sm:$0xff] %v836
      %901 = vst [vmem:[%s271 + $0x60] sm:$0xff] %v837
      %902 = vst [vmem:[%s271 + $0x68] sm:$0xff] %v838
      %903 = vst [vmem:[%s271 + $0x70] sm:$0xff] %v839
      %904 = vst [vmem:[%s271 + $0x78] sm:$0xff] %v840
      %905 = vst [vmem:[%s271 + $0x80] sm:$0xff] %v841
      %906 = vst [vmem:[%s271 + $0x88] sm:$0xff] %v842
      %907 = vst [vmem:[%s271 + $0x90] sm:$0xff] %v843
      %908 = vst [vmem:[%s271 + $0x98] sm:$0xff] %v844
      %909 = vst [vmem:[%s271 + $0xa0] sm:$0xff] %v845
      %910 = vst [vmem:[%s271 + $0xa8] sm:$0xff] %v846
      %911 = vst [vmem:[%s271 + $0xb0] sm:$0xff] %v847
      %912 = vst [vmem:[%s271 + $0xb8] sm:$0xff] %v848
      %913 = vst [vmem:[%s271 + $0xc0] sm:$0xff] %v849
      %914 = vst [vmem:[%s271 + $0xc8] sm:$0xff] %v850
      %915 = vst [vmem:[%s271 + $0xd0] sm:$0xff] %v851
      %916 = vst [vmem:[%s271 + $0xd8] sm:$0xff] %v852
      %917 = vst [vmem:[%s271 + $0xe0] sm:$0xff] %v853
      %918 = vst [vmem:[%s271 + $0xe8] sm:$0xff] %v854
      %919 = vst [vmem:[%s271 + $0xf0] sm:$0xff] %v855
      %920 = vst [vmem:[%s271 + $0xf8] sm:$0xff] %v856
      %921 = vst [vmem:[%s271 + $0x100] sm:$0xff] %v857
      %922 = vst [vmem:[%s271 + $0x108] sm:$0xff] %v858
      %923 = vst [vmem:[%s271 + $0x110] sm:$0xff] %v859
      %924 = vst [vmem:[%s271 + $0x118] sm:$0xff] %v860
      %925 = vst [vmem:[%s271 + $0x120] sm:$0xff] %v861
      %926 = vst [vmem:[%s271 + $0x128] sm:$0xff] %v862
      %927 = vst [vmem:[%s271 + $0x130] sm:$0xff] %v863
      %928 = vst [vmem:[%s271 + $0x138] sm:$0xff] %v864
      %929 = vst [vmem:[%s271 + $0x140] sm:$0xff] %v865
      %930 = vst [vmem:[%s271 + $0x148] sm:$0xff] %v866
      %931 = vst [vmem:[%s271 + $0x150] sm:$0xff] %v867
      %932 = vst [vmem:[%s271 + $0x158] sm:$0xff] %v868
      %933 = vst [vmem:[%s271 + $0x160] sm:$0xff] %v869
      %934 = vst [vmem:[%s271 + $0x168] sm:$0xff] %v870
      %935 = vst [vmem:[%s271 + $0x170] sm:$0xff] %v871
      %936 = vst [vmem:[%s271 + $0x178] sm:$0xff] %v872
      %937 = vst [vmem:[%s271 + $0x180] sm:$0xff] %v873
      %938 = vst [vmem:[%s271 + $0x188] sm:$0xff] %v874
      %939 = vst [vmem:[%s271 + $0x190] sm:$0xff] %v875
      %940 = vst [vmem:[%s271 + $0x198] sm:$0xff] %v876
      %941 = vst [vmem:[%s271 + $0x1a0] sm:$0xff] %v877
      %942 = vst [vmem:[%s271 + $0x1a8] sm:$0xff] %v878
      %943 = vst [vmem:[%s271 + $0x1b0] sm:$0xff] %v879
      %944 = vst [vmem:[%s271 + $0x1b8] sm:$0xff] %v880
      %945 = vst [vmem:[%s271 + $0x1c0] sm:$0xff] %v881
      %946 = vst [vmem:[%s271 + $0x1c8] sm:$0xff] %v882
      %947 = vst [vmem:[%s271 + $0x1d0] sm:$0xff] %v883
      %948 = vst [vmem:[%s271 + $0x1d8] sm:$0xff] %v884
      %949 = vst [vmem:[%s271 + $0x1e0] sm:$0xff] %v885
      %950 = vst [vmem:[%s271 + $0x1e8] sm:$0xff] %v886
      %951 = vst [vmem:[%s271 + $0x1f0] sm:$0xff] %v887
      %952 = vst [vmem:[%s271 + $0x1f8] sm:$0xff] %v888
      %s953 = smul.u32 64, %s20
      %p954 = scmp.lt.s32.totalorder %s19, 3
      %s955 = scalar_select %p954, %s19, 3
      %p956 = scmp.lt.s32.totalorder %s953, 63
      %s957 = scalar_select %p956, %s953, 63
      %p958 = scmp.lt.s32.totalorder %s21, 0
      %s959 = scalar_select %p958, %s21, 0
      %s960 = sadd.s32 %s959, %s957
      %s961 = smul.addr %s955, 64
      %s962 = sadd.s32 %s960, %s961
      %s963 = smul.addr %s962, 8
      %s964 = scalar_lea.vmem %s3, %s963
      // Predicated region
      $region33: #{generator_forward.7} parent=31 // pred_check
        %p965 = pneg %p137
      $region34: #{generator_forward.7} parent=31 // pred_check_branch
        %967 = sbr.rel (%p965) target = $region36
      $region35: #{generator_forward.7} parent=31 // pred_region
        %s968 = smul.u32 64, %s20
      $region36: #{generator_forward.7} parent=31 // pred_fallthru
        _
    $region32: #{generator_forward.7} parent=5 // pred_fallthru
      _
    %p969 = scmp.le.s32.totalorder 2, %s9
    // Predicated region
    $region37: #{generator_forward.7} parent=5 // pred_check
      %p970 = pneg %p969
    $region38: #{generator_forward.7} parent=5 // pred_check_branch
      %972 = sbr.rel (%p970) target = $region40
    $region39: #{generator_forward.7} parent=5 // pred_region
      %s973 = ssub.s32 %s9, 2
      // Predicated region
      $region41: #{generator_forward.7} parent=39 // pred_check
        %p974 = pneg %p143
      $region42: #{generator_forward.7} parent=39 // pred_check_branch
        %976 = sbr.rel (%p974) target = $region44
      $region43: #{generator_forward.7} parent=39 // pred_region
        %s977 = smul.u32 64, %s23
        %p978 = scmp.lt.s32.totalorder %s22, 3
        %s979 = scalar_select %p978, %s22, 3
        %p980 = scmp.lt.s32.totalorder %s977, 63
        %s981 = scalar_select %p980, %s977, 63
        %p982 = scmp.lt.s32.totalorder %s24, 0
        %s983 = scalar_select %p982, %s24, 0
        %s984 = sadd.s32 %s983, %s981
        %s985 = smul.addr %s979, 64
        %s986 = sadd.s32 %s984, %s985
        %s987 = smul.addr %s986, 8
        %s988 = scalar_lea.vmem %s3, %s987
      $region44: #{generator_forward.7} parent=39 // pred_fallthru
        _
    $region40: #{generator_forward.7} parent=5 // pred_fallthru
      _
  $region6: #{generator_forward.7} parent=0 // loop_footer
    %s13 = sadd.s32 1, %s9
  $region7: #{generator_forward.7} parent=0 // loop_footer_branch
    %8 = sbr.rel target = $region3
  $region8: #{generator_forward.7} parent=0 // loop_exit
    _

</llo_original>
